<compile_context>
chip_gen: v7x
topology: tpu7x:2x2x1
jax: 0.10.0
libtpu: 0.0.40
codegen_flags: <defaults>
</compile_context>

<pallas_src>
import numpy as np
import jax
import jax.numpy as jnp
from jax.experimental import pallas as pl
from jax.experimental.pallas import tpu as pltpu

LEAK = 0.01      # nn.LeakyReLU default negative_slope
BN_EPS = 1e-5    # nn.BatchNorm2d default eps
OUT_PAD = 128    # final Cout=1 padded to a full lane group


# ----------------------------- fused Pallas kernel ----------------------------

def _lrelu(z):
    return jnp.where(z > 0, z, LEAK * z)


def _bn_lrelu(y, gamma, beta):
    # BatchNorm2d (training mode): per-channel stats over all (N, OH, OW) rows,
    # biased variance, everything in f32.
    mean = jnp.mean(y, axis=0, keepdims=True)
    var = jnp.mean(jnp.square(y - mean), axis=0, keepdims=True)
    z = (y - mean) * jax.lax.rsqrt(var + BN_EPS) * gamma + beta
    return _lrelu(z)


def _disc_kernel(x1_ref, w1_ref, b1_ref,
                 w2_ref, gam2_ref, bet2_ref,
                 w3_ref, gam3_ref, bet3_ref,
                 w4_ref, b4_ref,
                 o_ref, a1_ref, a2_ref, a3_ref):
    n = o_ref.shape[0]           # batch
    c = w1_ref.shape[1]          # hidden channels H

    # ---- Layer 1: Conv(1->H, 3, s2) + LeakyReLU ------------------------------
    # Input taps were pre-gathered in the wrapper (1-channel input, tiny), so
    # this is one K=9 matmul.  a1 layout (column-parity split, batch innermost):
    #   row = ((ih*2 + (iw & 1)) * 7 + iw // 2) * n + b          ih, iw in 0..12
    # so that every stride-2 tap of layer 2 is one contiguous sublane slice.
    y1 = jnp.dot(x1_ref[...], w1_ref[...], preferred_element_type=jnp.float32)
    a1_ref[...] = _lrelu(y1 + b1_ref[...])                       # (182n, C) f32

    # ---- Layer 2: Conv(H->H, 3, s2) + BatchNorm + LeakyReLU ------------------
    # Conv bias dropped: exactly cancelled by the training-mode BN mean.
    # Per output row: gather 9 contiguous tap slices, lane-concat into the
    # im2col patch (6n, 9C) and do ONE K=9C matmul.
    for r in range(6):
        taps = []
        for i in range(3):
            for j in range(3):
                start = (((2 * r + i) * 2 + (j & 1)) * 7 + (j >> 1)) * n
                taps.append(a1_ref[pl.ds(start, 6 * n), :])
        patch = jnp.concatenate(taps, axis=-1).astype(jnp.bfloat16)   # (6n, 9C)
        a2_ref[pl.ds(r * 6 * n, 6 * n), :] = jnp.dot(
            patch, w2_ref[...], preferred_element_type=jnp.float32)
    a2_ref[...] = _bn_lrelu(a2_ref[...], gam2_ref[...], bet2_ref[...])  # (36n, C)

    # ---- Layer 3: Conv(H->H, 3, s1) + BatchNorm + LeakyReLU ------------------
    # a2 layout: row = (r2*6 + c2)*n + b  -> stride-1 taps are contiguous.
    for r in range(4):
        taps = []
        for i in range(3):
            for j in range(3):
                start = ((r + i) * 6 + j) * n
                taps.append(a2_ref[pl.ds(start, 4 * n), :])
        patch = jnp.concatenate(taps, axis=-1).astype(jnp.bfloat16)   # (4n, 9C)
        a3_ref[pl.ds(r * 4 * n, 4 * n), :] = jnp.dot(
            patch, w3_ref[...], preferred_element_type=jnp.float32)
    a3_ref[...] = _bn_lrelu(a3_ref[...], gam3_ref[...], bet3_ref[...])  # (16n, C)

    # ---- Layer 4: Conv(H->1, 3, s2) -> 1x1, Cout padded to 128, + Sigmoid ----
    taps = [a3_ref[pl.ds((i * 4 + j) * n, n), :]
            for i in range(3) for j in range(3)]
    patch = jnp.concatenate(taps, axis=-1).astype(jnp.bfloat16)       # (n, 9C)
    y4 = jnp.dot(patch, w4_ref[...], preferred_element_type=jnp.float32) + b4_ref[...]
    o_ref[...] = jax.nn.sigmoid(y4)                                   # (n, 128)


# --------------------------- one-time parameter prep ---------------------------

def _wcat(w):
    """PyTorch conv weight (Cout, Cin, 3, 3) -> stacked (9*Cin, Cout),
    row = (i*3 + j)*Cin + cin, matching the lane-concat tap order."""
    cout, cin = w.shape[0], w.shape[1]
    return jnp.transpose(w, (2, 3, 1, 0)).reshape(9 * cin, cout)


def prepare_discriminator(params):
    """Hoisted, batch-size-independent preprocessing: weight layouts,
    lane padding and bf16 casts.  b2/b3 are intentionally dropped (cancelled
    by training-mode BatchNorm)."""
    H = params["w1"].shape[0]
    w4 = _wcat(params["w4"])                                   # (9H, 1)
    w4 = jnp.pad(w4, ((0, 0), (0, OUT_PAD - 1)))               # (9H, 128)
    b4 = jnp.pad(params["b4"], (0, OUT_PAD - 1)).reshape(1, OUT_PAD)
    return dict(
        w1=params["w1"].reshape(H, 9).T.astype(jnp.bfloat16),  # (9, H)
        b1=params["b1"].reshape(1, H),
        w2=_wcat(params["w2"]).astype(jnp.bfloat16),           # (9H, H)
        gam2=params["g2"].reshape(1, H), bet2=params["beta2"].reshape(1, H),
        w3=_wcat(params["w3"]).astype(jnp.bfloat16),           # (9H, H)
        gam3=params["g3"].reshape(1, H), bet3=params["beta3"].reshape(1, H),
        w4=w4.astype(jnp.bfloat16),                            # (9H, 128)
        b4=b4,
    )


# ---------------------------------- forward -----------------------------------

def _pad_bytes(shape, dtype):
    """Padded VMEM footprint of a (possibly leading-dim) 2-D array."""
    it = jnp.dtype(dtype).itemsize
    sub = 32 // it                                   # native sublanes per tile
    rows = -(-shape[-2] // sub) * sub
    cols = -(-shape[-1] // 128) * 128
    lead = int(np.prod(shape[:-2])) if len(shape) > 2 else 1
    return lead * rows * cols * it


def discriminator_forward(prep, x):
    """x: (N, 1, 28, 28) f32 -> (N, 1) f32 sigmoid probabilities."""
    n, cin, ih, iw = x.shape
    assert cin == 1 and (ih, iw) == (28, 28), "expects 28x28 1-channel input"
    c = prep["w1"].shape[1]

    # Tap-expand only the raw 1-channel input (tiny, once, in XLA) and lay it
    # out to match the in-kernel parity-split a1 layout:
    #   row = ((ih_out*2 + (iw_out & 1)) * 7 + iw_out // 2) * N + b
    # (iw_out == 13 is a padded, never-read column.)
    x2 = x[:, 0]
    taps = [x2[:, i:i + 25:2, j:j + 25:2] for i in range(3) for j in range(3)]
    t = jnp.stack(taps, axis=-1)                               # (N, 13, 13, 9)
    t = jnp.pad(t, ((0, 0), (0, 0), (0, 1), (0, 0)))           # (N, 13, 14, 9)
    t = t.reshape(n, 13, 7, 2, 9).transpose(1, 3, 2, 0, 4)     # (13, 2, 7, N, 9)
    x1 = t.reshape(182 * n, 9).astype(jnp.bfloat16)

    inputs = (x1, prep["w1"], prep["b1"],
              prep["w2"], prep["gam2"], prep["bet2"],
              prep["w3"], prep["gam3"], prep["bet3"],
              prep["w4"], prep["b4"])

    scratch_shapes = [((182 * n, c), jnp.float32),   # a1 (post-LeakyReLU)
                      ((36 * n, c), jnp.float32),    # a2 (conv -> BN in place)
                      ((16 * n, c), jnp.float32)]    # a3 (conv -> BN in place)

    # VMEM budget from the actual padded footprint, with 2x headroom
    # (v5e scoped default is 16 MiB; v7x physical is 64 MiB).
    footprint = sum(_pad_bytes(tuple(a.shape), a.dtype) for a in inputs)
    footprint += _pad_bytes((n, OUT_PAD), jnp.float32)
    footprint += sum(_pad_bytes(s, d) for s, d in scratch_shapes)
    vmem_limit = int(min(64 << 20, max(4 << 20, 2 * footprint)))

    # Advisory cost estimate so XLA schedules the fused custom call sensibly.
    flops = 2 * 182 * n * 9 * c                   # layer 1
    flops += 2 * 36 * n * (9 * c) * c             # layer 2
    flops += 2 * 16 * n * (9 * c) * c             # layer 3
    flops += 2 * n * (9 * c) * OUT_PAD            # layer 4
    bytes_accessed = sum(int(np.prod(a.shape)) * a.dtype.itemsize for a in inputs)
    bytes_accessed += n * OUT_PAD * 4
    cost = pl.CostEstimate(flops=flops,
                           transcendentals=n * OUT_PAD + 4 * c,
                           bytes_accessed=bytes_accessed)

    out = pl.pallas_call(
        _disc_kernel,
        out_shape=jax.ShapeDtypeStruct((n, OUT_PAD), jnp.float32),
        in_specs=[pl.BlockSpec(memory_space=pltpu.MemorySpace.VMEM)] * len(inputs),
        out_specs=pl.BlockSpec(memory_space=pltpu.MemorySpace.VMEM),
        scratch_shapes=[pltpu.VMEM(s, d) for s, d in scratch_shapes],
        compiler_params=pltpu.CompilerParams(vmem_limit_bytes=vmem_limit),
        cost_estimate=cost,
    )(*inputs)

    # nn.Flatten(-3): (N, 1, 1, 1) -> (N, 1); drop the lane padding.
    return out[:, :1]


# --------------------------- Parameter construction ---------------------------

def init_params(key, H):
    """Deterministic synthetic init matching weights_init shapes/distributions."""
    ks = jax.random.split(key, 12)

    def conv_w(k, cout, cin, kh, kw):
        return 0.02 * jax.random.normal(k, (cout, cin, kh, kw), jnp.float32)

    def conv_b(k, cout, cin, kh, kw):
        bound = 1.0 / jnp.sqrt(cin * kh * kw)  # PyTorch default conv bias init
        return jax.random.uniform(k, (cout,), jnp.float32, -bound, bound)

    return {
        "w1": conv_w(ks[0], H, 1, 3, 3), "b1": conv_b(ks[1], H, 1, 3, 3),
        "w2": conv_w(ks[2], H, H, 3, 3), "b2": conv_b(ks[3], H, H, 3, 3),
        "g2": 1.0 + 0.02 * jax.random.normal(ks[4], (H,), jnp.float32),
        "beta2": jnp.zeros((H,), jnp.float32),
        "w3": conv_w(ks[5], H, H, 3, 3), "b3": conv_b(ks[6], H, H, 3, 3),
        "g3": 1.0 + 0.02 * jax.random.normal(ks[7], (H,), jnp.float32),
        "beta3": jnp.zeros((H,), jnp.float32),
        "w4": conv_w(ks[8], 1, H, 3, 3), "b4": conv_b(ks[9], 1, H, 3, 3),
    }


if __name__ == "__main__":
    key = jax.random.PRNGKey(0)
    H = 32            # C.hidden_size
    batch = 2
    pkey, xkey = jax.random.split(key)
    params = init_params(pkey, H)
    x = jax.random.normal(xkey, (batch, 1, 28, 28), jnp.float32)

    prep = prepare_discriminator(params)
    fwd = jax.jit(discriminator_forward)
    out = jax.block_until_ready(fwd(prep, x))

    assert out.shape == (batch, 1)
    assert bool(jnp.all(jnp.isfinite(out)))
    assert bool(jnp.all((out >= 0.0) & (out <= 1.0)))
    print("KERNEL_OK")
</pallas_src>

<mosaic_0001>
module attributes {stable_mosaic.version = 11 : i64} {
  func.func @_disc_kernel(%arg0: memref<364x9xbf16, #tpu.memory_space<vmem>>, %arg1: memref<9x32xbf16, #tpu.memory_space<vmem>>, %arg2: memref<1x32xf32, #tpu.memory_space<vmem>>, %arg3: memref<288x32xbf16, #tpu.memory_space<vmem>>, %arg4: memref<1x32xf32, #tpu.memory_space<vmem>>, %arg5: memref<1x32xf32, #tpu.memory_space<vmem>>, %arg6: memref<288x32xbf16, #tpu.memory_space<vmem>>, %arg7: memref<1x32xf32, #tpu.memory_space<vmem>>, %arg8: memref<1x32xf32, #tpu.memory_space<vmem>>, %arg9: memref<288x128xbf16, #tpu.memory_space<vmem>>, %arg10: memref<1x128xf32, #tpu.memory_space<vmem>>, %arg11: memref<2x128xf32, #tpu.memory_space<vmem>>, %arg12: memref<364x32xf32, #tpu.memory_space<vmem>>, %arg13: memref<72x32xf32, #tpu.memory_space<vmem>>, %arg14: memref<32x32xf32, #tpu.memory_space<vmem>>) attributes {dimension_semantics = [], scalar_prefetch = 0 : i64, scratch_operands = 3 : i64, tpu.core_type = #tpu.core_type<tc>} {
    %c0 = arith.constant 0 : index
    %c0_0 = arith.constant 0 : index
    %0 = vector.load %arg0[%c0, %c0_0] : memref<364x9xbf16, #tpu.memory_space<vmem>>, vector<364x9xbf16>
    %c0_1 = arith.constant 0 : index
    %c0_2 = arith.constant 0 : index
    %1 = vector.load %arg1[%c0_1, %c0_2] : memref<9x32xbf16, #tpu.memory_space<vmem>>, vector<9x32xbf16>
    %cst = arith.constant dense<0.000000e+00> : vector<364x32xf32>
    %2 = tpu.matmul %0, %1, %cst {dimension_numbers = #tpu.dot_dimension_numbers<[1], [0], [0], [1], [0, 0, 1, 1], [], []>} : vector<364x9xbf16>, vector<9x32xbf16>, vector<364x32xf32> -> vector<364x32xf32>
    %c0_3 = arith.constant 0 : index
    %c0_4 = arith.constant 0 : index
    %3 = vector.load %arg2[%c0_3, %c0_4] : memref<1x32xf32, #tpu.memory_space<vmem>>, vector<1x32xf32>
    %4 = vector.broadcast %3 : vector<1x32xf32> to vector<364x32xf32>
    %5 = arith.addf %2, %4 : vector<364x32xf32>
    %cst_5 = arith.constant 0.000000e+00 : f32
    %6 = vector.broadcast %cst_5 : f32 to vector<364x32xf32>
    %7 = arith.cmpf ogt, %5, %6 : vector<364x32xf32>
    %cst_6 = arith.constant 0.00999999977 : f32
    %8 = vector.broadcast %cst_6 : f32 to vector<364x32xf32>
    %9 = arith.mulf %8, %5 : vector<364x32xf32>
    %10 = arith.select %7, %5, %9 : vector<364x32xi1>, vector<364x32xf32>
    %c0_7 = arith.constant 0 : index
    %c0_8 = arith.constant 0 : index
    %11 = vector.load %arg12[%c0_7, %c0_8] : memref<364x32xf32, #tpu.memory_space<vmem>>, vector<364x32xf32>
    tpu.vector_store %arg12[%c0_7, %c0_8], %10 {strides = array<i32>} : memref<364x32xf32, #tpu.memory_space<vmem>>, vector<364x32xf32>,
    %c0_9 = arith.constant 0 : index
    %c0_10 = arith.constant 0 : index
    %12 = vector.load %arg12[%c0_9, %c0_10] : memref<364x32xf32, #tpu.memory_space<vmem>>, vector<12x32xf32>
    %c14 = arith.constant 14 : index
    %c0_11 = arith.constant 0 : index
    %13 = vector.load %arg12[%c14, %c0_11] : memref<364x32xf32, #tpu.memory_space<vmem>>, vector<12x32xf32>
    %c2 = arith.constant 2 : index
    %c0_12 = arith.constant 0 : index
    %14 = vector.load %arg12[%c2, %c0_12] : memref<364x32xf32, #tpu.memory_space<vmem>>, vector<12x32xf32>
    %c28 = arith.constant 28 : index
    %c0_13 = arith.constant 0 : index
    %15 = vector.load %arg12[%c28, %c0_13] : memref<364x32xf32, #tpu.memory_space<vmem>>, vector<12x32xf32>
    %c42 = arith.constant 42 : index
    %c0_14 = arith.constant 0 : index
    %16 = vector.load %arg12[%c42, %c0_14] : memref<364x32xf32, #tpu.memory_space<vmem>>, vector<12x32xf32>
    %c30 = arith.constant 30 : index
    %c0_15 = arith.constant 0 : index
    %17 = vector.load %arg12[%c30, %c0_15] : memref<364x32xf32, #tpu.memory_space<vmem>>, vector<12x32xf32>
    %c56 = arith.constant 56 : index
    %c0_16 = arith.constant 0 : index
    %18 = vector.load %arg12[%c56, %c0_16] : memref<364x32xf32, #tpu.memory_space<vmem>>, vector<12x32xf32>
    %c70 = arith.constant 70 : index
    %c0_17 = arith.constant 0 : index
    %19 = vector.load %arg12[%c70, %c0_17] : memref<364x32xf32, #tpu.memory_space<vmem>>, vector<12x32xf32>
    %c58 = arith.constant 58 : index
    %c0_18 = arith.constant 0 : index
    %20 = vector.load %arg12[%c58, %c0_18] : memref<364x32xf32, #tpu.memory_space<vmem>>, vector<12x32xf32>
    %21 = tpu.concatenate %12, %13, %14, %15, %16, %17, %18, %19, %20 in 1 : vector<12x32xf32>, vector<12x32xf32>, vector<12x32xf32>, vector<12x32xf32>, vector<12x32xf32>, vector<12x32xf32>, vector<12x32xf32>, vector<12x32xf32>, vector<12x32xf32> -> vector<12x288xf32>
    %22 = arith.truncf %21 : vector<12x288xf32> to vector<12x288xbf16>
    %c0_19 = arith.constant 0 : index
    %c0_20 = arith.constant 0 : index
    %23 = vector.load %arg3[%c0_19, %c0_20] : memref<288x32xbf16, #tpu.memory_space<vmem>>, vector<288x32xbf16>
    %cst_21 = arith.constant dense<0.000000e+00> : vector<12x32xf32>
    %24 = tpu.matmul %22, %23, %cst_21 {dimension_numbers = #tpu.dot_dimension_numbers<[1], [0], [0], [1], [0, 0, 1, 1], [], []>} : vector<12x288xbf16>, vector<288x32xbf16>, vector<12x32xf32> -> vector<12x32xf32>
    %c0_22 = arith.constant 0 : index
    %c0_23 = arith.constant 0 : index
    %25 = vector.load %arg13[%c0_22, %c0_23] : memref<72x32xf32, #tpu.memory_space<vmem>>, vector<12x32xf32>
    tpu.vector_store %arg13[%c0_22, %c0_23], %24 {strides = array<i32>} : memref<72x32xf32, #tpu.memory_space<vmem>>, vector<12x32xf32>,
    %c56_24 = arith.constant 56 : index
    %c0_25 = arith.constant 0 : index
    %26 = vector.load %arg12[%c56_24, %c0_25] : memref<364x32xf32, #tpu.memory_space<vmem>>, vector<12x32xf32>
    %c70_26 = arith.constant 70 : index
    %c0_27 = arith.constant 0 : index
    %27 = vector.load %arg12[%c70_26, %c0_27] : memref<364x32xf32, #tpu.memory_space<vmem>>, vector<12x32xf32>
    %c58_28 = arith.constant 58 : index
    %c0_29 = arith.constant 0 : index
    %28 = vector.load %arg12[%c58_28, %c0_29] : memref<364x32xf32, #tpu.memory_space<vmem>>, vector<12x32xf32>
    %c84 = arith.constant 84 : index
    %c0_30 = arith.constant 0 : index
    %29 = vector.load %arg12[%c84, %c0_30] : memref<364x32xf32, #tpu.memory_space<vmem>>, vector<12x32xf32>
    %c98 = arith.constant 98 : index
    %c0_31 = arith.constant 0 : index
    %30 = vector.load %arg12[%c98, %c0_31] : memref<364x32xf32, #tpu.memory_space<vmem>>, vector<12x32xf32>
    %c86 = arith.constant 86 : index
    %c0_32 = arith.constant 0 : index
    %31 = vector.load %arg12[%c86, %c0_32] : memref<364x32xf32, #tpu.memory_space<vmem>>, vector<12x32xf32>
    %c112 = arith.constant 112 : index
    %c0_33 = arith.constant 0 : index
    %32 = vector.load %arg12[%c112, %c0_33] : memref<364x32xf32, #tpu.memory_space<vmem>>, vector<12x32xf32>
    %c126 = arith.constant 126 : index
    %c0_34 = arith.constant 0 : index
    %33 = vector.load %arg12[%c126, %c0_34] : memref<364x32xf32, #tpu.memory_space<vmem>>, vector<12x32xf32>
    %c114 = arith.constant 114 : index
    %c0_35 = arith.constant 0 : index
    %34 = vector.load %arg12[%c114, %c0_35] : memref<364x32xf32, #tpu.memory_space<vmem>>, vector<12x32xf32>
    %35 = tpu.concatenate %26, %27, %28, %29, %30, %31, %32, %33, %34 in 1 : vector<12x32xf32>, vector<12x32xf32>, vector<12x32xf32>, vector<12x32xf32>, vector<12x32xf32>, vector<12x32xf32>, vector<12x32xf32>, vector<12x32xf32>, vector<12x32xf32> -> vector<12x288xf32>
    %36 = arith.truncf %35 : vector<12x288xf32> to vector<12x288xbf16>
    %c0_36 = arith.constant 0 : index
    %c0_37 = arith.constant 0 : index
    %37 = vector.load %arg3[%c0_36, %c0_37] : memref<288x32xbf16, #tpu.memory_space<vmem>>, vector<288x32xbf16>
    %cst_38 = arith.constant dense<0.000000e+00> : vector<12x32xf32>
    %38 = tpu.matmul %36, %37, %cst_38 {dimension_numbers = #tpu.dot_dimension_numbers<[1], [0], [0], [1], [0, 0, 1, 1], [], []>} : vector<12x288xbf16>, vector<288x32xbf16>, vector<12x32xf32> -> vector<12x32xf32>
    %c12 = arith.constant 12 : index
    %c0_39 = arith.constant 0 : index
    %39 = vector.load %arg13[%c12, %c0_39] : memref<72x32xf32, #tpu.memory_space<vmem>>, vector<12x32xf32>
    tpu.vector_store %arg13[%c12, %c0_39], %38 {strides = array<i32>} : memref<72x32xf32, #tpu.memory_space<vmem>>, vector<12x32xf32>,
    %c112_40 = arith.constant 112 : index
    %c0_41 = arith.constant 0 : index
    %40 = vector.load %arg12[%c112_40, %c0_41] : memref<364x32xf32, #tpu.memory_space<vmem>>, vector<12x32xf32>
    %c126_42 = arith.constant 126 : index
    %c0_43 = arith.constant 0 : index
    %41 = vector.load %arg12[%c126_42, %c0_43] : memref<364x32xf32, #tpu.memory_space<vmem>>, vector<12x32xf32>
    %c114_44 = arith.constant 114 : index
    %c0_45 = arith.constant 0 : index
    %42 = vector.load %arg12[%c114_44, %c0_45] : memref<364x32xf32, #tpu.memory_space<vmem>>, vector<12x32xf32>
    %c140 = arith.constant 140 : index
    %c0_46 = arith.constant 0 : index
    %43 = vector.load %arg12[%c140, %c0_46] : memref<364x32xf32, #tpu.memory_space<vmem>>, vector<12x32xf32>
    %c154 = arith.constant 154 : index
    %c0_47 = arith.constant 0 : index
    %44 = vector.load %arg12[%c154, %c0_47] : memref<364x32xf32, #tpu.memory_space<vmem>>, vector<12x32xf32>
    %c142 = arith.constant 142 : index
    %c0_48 = arith.constant 0 : index
    %45 = vector.load %arg12[%c142, %c0_48] : memref<364x32xf32, #tpu.memory_space<vmem>>, vector<12x32xf32>
    %c168 = arith.constant 168 : index
    %c0_49 = arith.constant 0 : index
    %46 = vector.load %arg12[%c168, %c0_49] : memref<364x32xf32, #tpu.memory_space<vmem>>, vector<12x32xf32>
    %c182 = arith.constant 182 : index
    %c0_50 = arith.constant 0 : index
    %47 = vector.load %arg12[%c182, %c0_50] : memref<364x32xf32, #tpu.memory_space<vmem>>, vector<12x32xf32>
    %c170 = arith.constant 170 : index
    %c0_51 = arith.constant 0 : index
    %48 = vector.load %arg12[%c170, %c0_51] : memref<364x32xf32, #tpu.memory_space<vmem>>, vector<12x32xf32>
    %49 = tpu.concatenate %40, %41, %42, %43, %44, %45, %46, %47, %48 in 1 : vector<12x32xf32>, vector<12x32xf32>, vector<12x32xf32>, vector<12x32xf32>, vector<12x32xf32>, vector<12x32xf32>, vector<12x32xf32>, vector<12x32xf32>, vector<12x32xf32> -> vector<12x288xf32>
    %50 = arith.truncf %49 : vector<12x288xf32> to vector<12x288xbf16>
    %c0_52 = arith.constant 0 : index
    %c0_53 = arith.constant 0 : index
    %51 = vector.load %arg3[%c0_52, %c0_53] : memref<288x32xbf16, #tpu.memory_space<vmem>>, vector<288x32xbf16>
    %cst_54 = arith.constant dense<0.000000e+00> : vector<12x32xf32>
    %52 = tpu.matmul %50, %51, %cst_54 {dimension_numbers = #tpu.dot_dimension_numbers<[1], [0], [0], [1], [0, 0, 1, 1], [], []>} : vector<12x288xbf16>, vector<288x32xbf16>, vector<12x32xf32> -> vector<12x32xf32>
    %c24 = arith.constant 24 : index
    %c0_55 = arith.constant 0 : index
    %53 = vector.load %arg13[%c24, %c0_55] : memref<72x32xf32, #tpu.memory_space<vmem>>, vector<12x32xf32>
    tpu.vector_store %arg13[%c24, %c0_55], %52 {strides = array<i32>} : memref<72x32xf32, #tpu.memory_space<vmem>>, vector<12x32xf32>,
    %c168_56 = arith.constant 168 : index
    %c0_57 = arith.constant 0 : index
    %54 = vector.load %arg12[%c168_56, %c0_57] : memref<364x32xf32, #tpu.memory_space<vmem>>, vector<12x32xf32>
    %c182_58 = arith.constant 182 : index
    %c0_59 = arith.constant 0 : index
    %55 = vector.load %arg12[%c182_58, %c0_59] : memref<364x32xf32, #tpu.memory_space<vmem>>, vector<12x32xf32>
    %c170_60 = arith.constant 170 : index
    %c0_61 = arith.constant 0 : index
    %56 = vector.load %arg12[%c170_60, %c0_61] : memref<364x32xf32, #tpu.memory_space<vmem>>, vector<12x32xf32>
    %c196 = arith.constant 196 : index
    %c0_62 = arith.constant 0 : index
    %57 = vector.load %arg12[%c196, %c0_62] : memref<364x32xf32, #tpu.memory_space<vmem>>, vector<12x32xf32>
    %c210 = arith.constant 210 : index
    %c0_63 = arith.constant 0 : index
    %58 = vector.load %arg12[%c210, %c0_63] : memref<364x32xf32, #tpu.memory_space<vmem>>, vector<12x32xf32>
    %c198 = arith.constant 198 : index
    %c0_64 = arith.constant 0 : index
    %59 = vector.load %arg12[%c198, %c0_64] : memref<364x32xf32, #tpu.memory_space<vmem>>, vector<12x32xf32>
    %c224 = arith.constant 224 : index
    %c0_65 = arith.constant 0 : index
    %60 = vector.load %arg12[%c224, %c0_65] : memref<364x32xf32, #tpu.memory_space<vmem>>, vector<12x32xf32>
    %c238 = arith.constant 238 : index
    %c0_66 = arith.constant 0 : index
    %61 = vector.load %arg12[%c238, %c0_66] : memref<364x32xf32, #tpu.memory_space<vmem>>, vector<12x32xf32>
    %c226 = arith.constant 226 : index
    %c0_67 = arith.constant 0 : index
    %62 = vector.load %arg12[%c226, %c0_67] : memref<364x32xf32, #tpu.memory_space<vmem>>, vector<12x32xf32>
    %63 = tpu.concatenate %54, %55, %56, %57, %58, %59, %60, %61, %62 in 1 : vector<12x32xf32>, vector<12x32xf32>, vector<12x32xf32>, vector<12x32xf32>, vector<12x32xf32>, vector<12x32xf32>, vector<12x32xf32>, vector<12x32xf32>, vector<12x32xf32> -> vector<12x288xf32>
    %64 = arith.truncf %63 : vector<12x288xf32> to vector<12x288xbf16>
    %c0_68 = arith.constant 0 : index
    %c0_69 = arith.constant 0 : index
    %65 = vector.load %arg3[%c0_68, %c0_69] : memref<288x32xbf16, #tpu.memory_space<vmem>>, vector<288x32xbf16>
    %cst_70 = arith.constant dense<0.000000e+00> : vector<12x32xf32>
    %66 = tpu.matmul %64, %65, %cst_70 {dimension_numbers = #tpu.dot_dimension_numbers<[1], [0], [0], [1], [0, 0, 1, 1], [], []>} : vector<12x288xbf16>, vector<288x32xbf16>, vector<12x32xf32> -> vector<12x32xf32>
    %c36 = arith.constant 36 : index
    %c0_71 = arith.constant 0 : index
    %67 = vector.load %arg13[%c36, %c0_71] : memref<72x32xf32, #tpu.memory_space<vmem>>, vector<12x32xf32>
    tpu.vector_store %arg13[%c36, %c0_71], %66 {strides = array<i32>} : memref<72x32xf32, #tpu.memory_space<vmem>>, vector<12x32xf32>,
    %c224_72 = arith.constant 224 : index
    %c0_73 = arith.constant 0 : index
    %68 = vector.load %arg12[%c224_72, %c0_73] : memref<364x32xf32, #tpu.memory_space<vmem>>, vector<12x32xf32>
    %c238_74 = arith.constant 238 : index
    %c0_75 = arith.constant 0 : index
    %69 = vector.load %arg12[%c238_74, %c0_75] : memref<364x32xf32, #tpu.memory_space<vmem>>, vector<12x32xf32>
    %c226_76 = arith.constant 226 : index
    %c0_77 = arith.constant 0 : index
    %70 = vector.load %arg12[%c226_76, %c0_77] : memref<364x32xf32, #tpu.memory_space<vmem>>, vector<12x32xf32>
    %c252 = arith.constant 252 : index
    %c0_78 = arith.constant 0 : index
    %71 = vector.load %arg12[%c252, %c0_78] : memref<364x32xf32, #tpu.memory_space<vmem>>, vector<12x32xf32>
    %c266 = arith.constant 266 : index
    %c0_79 = arith.constant 0 : index
    %72 = vector.load %arg12[%c266, %c0_79] : memref<364x32xf32, #tpu.memory_space<vmem>>, vector<12x32xf32>
    %c254 = arith.constant 254 : index
    %c0_80 = arith.constant 0 : index
    %73 = vector.load %arg12[%c254, %c0_80] : memref<364x32xf32, #tpu.memory_space<vmem>>, vector<12x32xf32>
    %c280 = arith.constant 280 : index
    %c0_81 = arith.constant 0 : index
    %74 = vector.load %arg12[%c280, %c0_81] : memref<364x32xf32, #tpu.memory_space<vmem>>, vector<12x32xf32>
    %c294 = arith.constant 294 : index
    %c0_82 = arith.constant 0 : index
    %75 = vector.load %arg12[%c294, %c0_82] : memref<364x32xf32, #tpu.memory_space<vmem>>, vector<12x32xf32>
    %c282 = arith.constant 282 : index
    %c0_83 = arith.constant 0 : index
    %76 = vector.load %arg12[%c282, %c0_83] : memref<364x32xf32, #tpu.memory_space<vmem>>, vector<12x32xf32>
    %77 = tpu.concatenate %68, %69, %70, %71, %72, %73, %74, %75, %76 in 1 : vector<12x32xf32>, vector<12x32xf32>, vector<12x32xf32>, vector<12x32xf32>, vector<12x32xf32>, vector<12x32xf32>, vector<12x32xf32>, vector<12x32xf32>, vector<12x32xf32> -> vector<12x288xf32>
    %78 = arith.truncf %77 : vector<12x288xf32> to vector<12x288xbf16>
    %c0_84 = arith.constant 0 : index
    %c0_85 = arith.constant 0 : index
    %79 = vector.load %arg3[%c0_84, %c0_85] : memref<288x32xbf16, #tpu.memory_space<vmem>>, vector<288x32xbf16>
    %cst_86 = arith.constant dense<0.000000e+00> : vector<12x32xf32>
    %80 = tpu.matmul %78, %79, %cst_86 {dimension_numbers = #tpu.dot_dimension_numbers<[1], [0], [0], [1], [0, 0, 1, 1], [], []>} : vector<12x288xbf16>, vector<288x32xbf16>, vector<12x32xf32> -> vector<12x32xf32>
    %c48 = arith.constant 48 : index
    %c0_87 = arith.constant 0 : index
    %81 = vector.load %arg13[%c48, %c0_87] : memref<72x32xf32, #tpu.memory_space<vmem>>, vector<12x32xf32>
    tpu.vector_store %arg13[%c48, %c0_87], %80 {strides = array<i32>} : memref<72x32xf32, #tpu.memory_space<vmem>>, vector<12x32xf32>,
    %c280_88 = arith.constant 280 : index
    %c0_89 = arith.constant 0 : index
    %82 = vector.load %arg12[%c280_88, %c0_89] : memref<364x32xf32, #tpu.memory_space<vmem>>, vector<12x32xf32>
    %c294_90 = arith.constant 294 : index
    %c0_91 = arith.constant 0 : index
    %83 = vector.load %arg12[%c294_90, %c0_91] : memref<364x32xf32, #tpu.memory_space<vmem>>, vector<12x32xf32>
    %c282_92 = arith.constant 282 : index
    %c0_93 = arith.constant 0 : index
    %84 = vector.load %arg12[%c282_92, %c0_93] : memref<364x32xf32, #tpu.memory_space<vmem>>, vector<12x32xf32>
    %c308 = arith.constant 308 : index
    %c0_94 = arith.constant 0 : index
    %85 = vector.load %arg12[%c308, %c0_94] : memref<364x32xf32, #tpu.memory_space<vmem>>, vector<12x32xf32>
    %c322 = arith.constant 322 : index
    %c0_95 = arith.constant 0 : index
    %86 = vector.load %arg12[%c322, %c0_95] : memref<364x32xf32, #tpu.memory_space<vmem>>, vector<12x32xf32>
    %c310 = arith.constant 310 : index
    %c0_96 = arith.constant 0 : index
    %87 = vector.load %arg12[%c310, %c0_96] : memref<364x32xf32, #tpu.memory_space<vmem>>, vector<12x32xf32>
    %c336 = arith.constant 336 : index
    %c0_97 = arith.constant 0 : index
    %88 = vector.load %arg12[%c336, %c0_97] : memref<364x32xf32, #tpu.memory_space<vmem>>, vector<12x32xf32>
    %c350 = arith.constant 350 : index
    %c0_98 = arith.constant 0 : index
    %89 = vector.load %arg12[%c350, %c0_98] : memref<364x32xf32, #tpu.memory_space<vmem>>, vector<12x32xf32>
    %c338 = arith.constant 338 : index
    %c0_99 = arith.constant 0 : index
    %90 = vector.load %arg12[%c338, %c0_99] : memref<364x32xf32, #tpu.memory_space<vmem>>, vector<12x32xf32>
    %91 = tpu.concatenate %82, %83, %84, %85, %86, %87, %88, %89, %90 in 1 : vector<12x32xf32>, vector<12x32xf32>, vector<12x32xf32>, vector<12x32xf32>, vector<12x32xf32>, vector<12x32xf32>, vector<12x32xf32>, vector<12x32xf32>, vector<12x32xf32> -> vector<12x288xf32>
    %92 = arith.truncf %91 : vector<12x288xf32> to vector<12x288xbf16>
    %c0_100 = arith.constant 0 : index
    %c0_101 = arith.constant 0 : index
    %93 = vector.load %arg3[%c0_100, %c0_101] : memref<288x32xbf16, #tpu.memory_space<vmem>>, vector<288x32xbf16>
    %cst_102 = arith.constant dense<0.000000e+00> : vector<12x32xf32>
    %94 = tpu.matmul %92, %93, %cst_102 {dimension_numbers = #tpu.dot_dimension_numbers<[1], [0], [0], [1], [0, 0, 1, 1], [], []>} : vector<12x288xbf16>, vector<288x32xbf16>, vector<12x32xf32> -> vector<12x32xf32>
    %c60 = arith.constant 60 : index
    %c0_103 = arith.constant 0 : index
    %95 = vector.load %arg13[%c60, %c0_103] : memref<72x32xf32, #tpu.memory_space<vmem>>, vector<12x32xf32>
    tpu.vector_store %arg13[%c60, %c0_103], %94 {strides = array<i32>} : memref<72x32xf32, #tpu.memory_space<vmem>>, vector<12x32xf32>,
    %c0_104 = arith.constant 0 : index
    %c0_105 = arith.constant 0 : index
    %96 = vector.load %arg13[%c0_104, %c0_105] : memref<72x32xf32, #tpu.memory_space<vmem>>, vector<72x32xf32>
    %c0_106 = arith.constant 0 : index
    %c0_107 = arith.constant 0 : index
    %97 = vector.load %arg4[%c0_106, %c0_107] : memref<1x32xf32, #tpu.memory_space<vmem>>, vector<1x32xf32>
    %c0_108 = arith.constant 0 : index
    %c0_109 = arith.constant 0 : index
    %98 = vector.load %arg5[%c0_108, %c0_109] : memref<1x32xf32, #tpu.memory_space<vmem>>, vector<1x32xf32>
    %cst_110 = arith.constant dense<0.000000e+00> : vector<32xf32>
    %99 = vector.multi_reduction <add>, %96, %cst_110 [0] : vector<72x32xf32> to vector<32xf32>
    %100 = vector.shape_cast %99 : vector<32xf32> to vector<1x32xf32>
    %cst_111 = arith.constant 7.200000e+01 : f32
    %101 = vector.broadcast %cst_111 : f32 to vector<1x32xf32>
    %102 = arith.divf %100, %101 : vector<1x32xf32>
    %103 = vector.broadcast %102 : vector<1x32xf32> to vector<72x32xf32>
    %104 = arith.subf %96, %103 : vector<72x32xf32>
    %105 = arith.mulf %104, %104 : vector<72x32xf32>
    %cst_112 = arith.constant dense<0.000000e+00> : vector<32xf32>
    %106 = vector.multi_reduction <add>, %105, %cst_112 [0] : vector<72x32xf32> to vector<32xf32>
    %107 = vector.shape_cast %106 : vector<32xf32> to vector<1x32xf32>
    %cst_113 = arith.constant 7.200000e+01 : f32
    %108 = vector.broadcast %cst_113 : f32 to vector<1x32xf32>
    %109 = arith.divf %107, %108 : vector<1x32xf32>
    %110 = vector.broadcast %102 : vector<1x32xf32> to vector<72x32xf32>
    %111 = arith.subf %96, %110 : vector<72x32xf32>
    %cst_114 = arith.constant 9.99999974E-6 : f32
    %112 = vector.broadcast %cst_114 : f32 to vector<1x32xf32>
    %113 = arith.addf %109, %112 : vector<1x32xf32>
    %114 = math.rsqrt %113 : vector<1x32xf32>
    %115 = vector.broadcast %114 : vector<1x32xf32> to vector<72x32xf32>
    %116 = arith.mulf %111, %115 : vector<72x32xf32>
    %117 = vector.broadcast %97 : vector<1x32xf32> to vector<72x32xf32>
    %118 = arith.mulf %116, %117 : vector<72x32xf32>
    %119 = vector.broadcast %98 : vector<1x32xf32> to vector<72x32xf32>
    %120 = arith.addf %118, %119 : vector<72x32xf32>
    %cst_115 = arith.constant 0.000000e+00 : f32
    %121 = vector.broadcast %cst_115 : f32 to vector<72x32xf32>
    %122 = arith.cmpf ogt, %120, %121 : vector<72x32xf32>
    %cst_116 = arith.constant 0.00999999977 : f32
    %123 = vector.broadcast %cst_116 : f32 to vector<72x32xf32>
    %124 = arith.mulf %123, %120 : vector<72x32xf32>
    %125 = arith.select %122, %120, %124 : vector<72x32xi1>, vector<72x32xf32>
    %c0_117 = arith.constant 0 : index
    %c0_118 = arith.constant 0 : index
    %126 = vector.load %arg13[%c0_117, %c0_118] : memref<72x32xf32, #tpu.memory_space<vmem>>, vector<72x32xf32>
    tpu.vector_store %arg13[%c0_117, %c0_118], %125 {strides = array<i32>} : memref<72x32xf32, #tpu.memory_space<vmem>>, vector<72x32xf32>,
    %c0_119 = arith.constant 0 : index
    %c0_120 = arith.constant 0 : index
    %127 = vector.load %arg13[%c0_119, %c0_120] : memref<72x32xf32, #tpu.memory_space<vmem>>, vector<8x32xf32>
    %c2_121 = arith.constant 2 : index
    %c0_122 = arith.constant 0 : index
    %128 = vector.load %arg13[%c2_121, %c0_122] : memref<72x32xf32, #tpu.memory_space<vmem>>, vector<8x32xf32>
    %c4 = arith.constant 4 : index
    %c0_123 = arith.constant 0 : index
    %129 = vector.load %arg13[%c4, %c0_123] : memref<72x32xf32, #tpu.memory_space<vmem>>, vector<8x32xf32>
    %c12_124 = arith.constant 12 : index
    %c0_125 = arith.constant 0 : index
    %130 = vector.load %arg13[%c12_124, %c0_125] : memref<72x32xf32, #tpu.memory_space<vmem>>, vector<8x32xf32>
    %c14_126 = arith.constant 14 : index
    %c0_127 = arith.constant 0 : index
    %131 = vector.load %arg13[%c14_126, %c0_127] : memref<72x32xf32, #tpu.memory_space<vmem>>, vector<8x32xf32>
    %c16 = arith.constant 16 : index
    %c0_128 = arith.constant 0 : index
    %132 = vector.load %arg13[%c16, %c0_128] : memref<72x32xf32, #tpu.memory_space<vmem>>, vector<8x32xf32>
    %c24_129 = arith.constant 24 : index
    %c0_130 = arith.constant 0 : index
    %133 = vector.load %arg13[%c24_129, %c0_130] : memref<72x32xf32, #tpu.memory_space<vmem>>, vector<8x32xf32>
    %c26 = arith.constant 26 : index
    %c0_131 = arith.constant 0 : index
    %134 = vector.load %arg13[%c26, %c0_131] : memref<72x32xf32, #tpu.memory_space<vmem>>, vector<8x32xf32>
    %c28_132 = arith.constant 28 : index
    %c0_133 = arith.constant 0 : index
    %135 = vector.load %arg13[%c28_132, %c0_133] : memref<72x32xf32, #tpu.memory_space<vmem>>, vector<8x32xf32>
    %136 = tpu.concatenate %127, %128, %129, %130, %131, %132, %133, %134, %135 in 1 : vector<8x32xf32>, vector<8x32xf32>, vector<8x32xf32>, vector<8x32xf32>, vector<8x32xf32>, vector<8x32xf32>, vector<8x32xf32>, vector<8x32xf32>, vector<8x32xf32> -> vector<8x288xf32>
    %137 = arith.truncf %136 : vector<8x288xf32> to vector<8x288xbf16>
    %c0_134 = arith.constant 0 : index
    %c0_135 = arith.constant 0 : index
    %138 = vector.load %arg6[%c0_134, %c0_135] : memref<288x32xbf16, #tpu.memory_space<vmem>>, vector<288x32xbf16>
    %cst_136 = arith.constant dense<0.000000e+00> : vector<8x32xf32>
    %139 = tpu.matmul %137, %138, %cst_136 {dimension_numbers = #tpu.dot_dimension_numbers<[1], [0], [0], [1], [0, 0, 1, 1], [], []>} : vector<8x288xbf16>, vector<288x32xbf16>, vector<8x32xf32> -> vector<8x32xf32>
    %c0_137 = arith.constant 0 : index
    %c0_138 = arith.constant 0 : index
    %140 = vector.load %arg14[%c0_137, %c0_138] : memref<32x32xf32, #tpu.memory_space<vmem>>, vector<8x32xf32>
    tpu.vector_store %arg14[%c0_137, %c0_138], %139 {strides = array<i32>} : memref<32x32xf32, #tpu.memory_space<vmem>>, vector<8x32xf32>,
    %c12_139 = arith.constant 12 : index
    %c0_140 = arith.constant 0 : index
    %141 = vector.load %arg13[%c12_139, %c0_140] : memref<72x32xf32, #tpu.memory_space<vmem>>, vector<8x32xf32>
    %c14_141 = arith.constant 14 : index
    %c0_142 = arith.constant 0 : index
    %142 = vector.load %arg13[%c14_141, %c0_142] : memref<72x32xf32, #tpu.memory_space<vmem>>, vector<8x32xf32>
    %c16_143 = arith.constant 16 : index
    %c0_144 = arith.constant 0 : index
    %143 = vector.load %arg13[%c16_143, %c0_144] : memref<72x32xf32, #tpu.memory_space<vmem>>, vector<8x32xf32>
    %c24_145 = arith.constant 24 : index
    %c0_146 = arith.constant 0 : index
    %144 = vector.load %arg13[%c24_145, %c0_146] : memref<72x32xf32, #tpu.memory_space<vmem>>, vector<8x32xf32>
    %c26_147 = arith.constant 26 : index
    %c0_148 = arith.constant 0 : index
    %145 = vector.load %arg13[%c26_147, %c0_148] : memref<72x32xf32, #tpu.memory_space<vmem>>, vector<8x32xf32>
    %c28_149 = arith.constant 28 : index
    %c0_150 = arith.constant 0 : index
    %146 = vector.load %arg13[%c28_149, %c0_150] : memref<72x32xf32, #tpu.memory_space<vmem>>, vector<8x32xf32>
    %c36_151 = arith.constant 36 : index
    %c0_152 = arith.constant 0 : index
    %147 = vector.load %arg13[%c36_151, %c0_152] : memref<72x32xf32, #tpu.memory_space<vmem>>, vector<8x32xf32>
    %c38 = arith.constant 38 : index
    %c0_153 = arith.constant 0 : index
    %148 = vector.load %arg13[%c38, %c0_153] : memref<72x32xf32, #tpu.memory_space<vmem>>, vector<8x32xf32>
    %c40 = arith.constant 40 : index
    %c0_154 = arith.constant 0 : index
    %149 = vector.load %arg13[%c40, %c0_154] : memref<72x32xf32, #tpu.memory_space<vmem>>, vector<8x32xf32>
    %150 = tpu.concatenate %141, %142, %143, %144, %145, %146, %147, %148, %149 in 1 : vector<8x32xf32>, vector<8x32xf32>, vector<8x32xf32>, vector<8x32xf32>, vector<8x32xf32>, vector<8x32xf32>, vector<8x32xf32>, vector<8x32xf32>, vector<8x32xf32> -> vector<8x288xf32>
    %151 = arith.truncf %150 : vector<8x288xf32> to vector<8x288xbf16>
    %c0_155 = arith.constant 0 : index
    %c0_156 = arith.constant 0 : index
    %152 = vector.load %arg6[%c0_155, %c0_156] : memref<288x32xbf16, #tpu.memory_space<vmem>>, vector<288x32xbf16>
    %cst_157 = arith.constant dense<0.000000e+00> : vector<8x32xf32>
    %153 = tpu.matmul %151, %152, %cst_157 {dimension_numbers = #tpu.dot_dimension_numbers<[1], [0], [0], [1], [0, 0, 1, 1], [], []>} : vector<8x288xbf16>, vector<288x32xbf16>, vector<8x32xf32> -> vector<8x32xf32>
    %c8 = arith.constant 8 : index
    %c0_158 = arith.constant 0 : index
    %154 = vector.load %arg14[%c8, %c0_158] : memref<32x32xf32, #tpu.memory_space<vmem>>, vector<8x32xf32>
    tpu.vector_store %arg14[%c8, %c0_158], %153 {strides = array<i32>} : memref<32x32xf32, #tpu.memory_space<vmem>>, vector<8x32xf32>,
    %c24_159 = arith.constant 24 : index
    %c0_160 = arith.constant 0 : index
    %155 = vector.load %arg13[%c24_159, %c0_160] : memref<72x32xf32, #tpu.memory_space<vmem>>, vector<8x32xf32>
    %c26_161 = arith.constant 26 : index
    %c0_162 = arith.constant 0 : index
    %156 = vector.load %arg13[%c26_161, %c0_162] : memref<72x32xf32, #tpu.memory_space<vmem>>, vector<8x32xf32>
    %c28_163 = arith.constant 28 : index
    %c0_164 = arith.constant 0 : index
    %157 = vector.load %arg13[%c28_163, %c0_164] : memref<72x32xf32, #tpu.memory_space<vmem>>, vector<8x32xf32>
    %c36_165 = arith.constant 36 : index
    %c0_166 = arith.constant 0 : index
    %158 = vector.load %arg13[%c36_165, %c0_166] : memref<72x32xf32, #tpu.memory_space<vmem>>, vector<8x32xf32>
    %c38_167 = arith.constant 38 : index
    %c0_168 = arith.constant 0 : index
    %159 = vector.load %arg13[%c38_167, %c0_168] : memref<72x32xf32, #tpu.memory_space<vmem>>, vector<8x32xf32>
    %c40_169 = arith.constant 40 : index
    %c0_170 = arith.constant 0 : index
    %160 = vector.load %arg13[%c40_169, %c0_170] : memref<72x32xf32, #tpu.memory_space<vmem>>, vector<8x32xf32>
    %c48_171 = arith.constant 48 : index
    %c0_172 = arith.constant 0 : index
    %161 = vector.load %arg13[%c48_171, %c0_172] : memref<72x32xf32, #tpu.memory_space<vmem>>, vector<8x32xf32>
    %c50 = arith.constant 50 : index
    %c0_173 = arith.constant 0 : index
    %162 = vector.load %arg13[%c50, %c0_173] : memref<72x32xf32, #tpu.memory_space<vmem>>, vector<8x32xf32>
    %c52 = arith.constant 52 : index
    %c0_174 = arith.constant 0 : index
    %163 = vector.load %arg13[%c52, %c0_174] : memref<72x32xf32, #tpu.memory_space<vmem>>, vector<8x32xf32>
    %164 = tpu.concatenate %155, %156, %157, %158, %159, %160, %161, %162, %163 in 1 : vector<8x32xf32>, vector<8x32xf32>, vector<8x32xf32>, vector<8x32xf32>, vector<8x32xf32>, vector<8x32xf32>, vector<8x32xf32>, vector<8x32xf32>, vector<8x32xf32> -> vector<8x288xf32>
    %165 = arith.truncf %164 : vector<8x288xf32> to vector<8x288xbf16>
    %c0_175 = arith.constant 0 : index
    %c0_176 = arith.constant 0 : index
    %166 = vector.load %arg6[%c0_175, %c0_176] : memref<288x32xbf16, #tpu.memory_space<vmem>>, vector<288x32xbf16>
    %cst_177 = arith.constant dense<0.000000e+00> : vector<8x32xf32>
    %167 = tpu.matmul %165, %166, %cst_177 {dimension_numbers = #tpu.dot_dimension_numbers<[1], [0], [0], [1], [0, 0, 1, 1], [], []>} : vector<8x288xbf16>, vector<288x32xbf16>, vector<8x32xf32> -> vector<8x32xf32>
    %c16_178 = arith.constant 16 : index
    %c0_179 = arith.constant 0 : index
    %168 = vector.load %arg14[%c16_178, %c0_179] : memref<32x32xf32, #tpu.memory_space<vmem>>, vector<8x32xf32>
    tpu.vector_store %arg14[%c16_178, %c0_179], %167 {strides = array<i32>} : memref<32x32xf32, #tpu.memory_space<vmem>>, vector<8x32xf32>,
    %c36_180 = arith.constant 36 : index
    %c0_181 = arith.constant 0 : index
    %169 = vector.load %arg13[%c36_180, %c0_181] : memref<72x32xf32, #tpu.memory_space<vmem>>, vector<8x32xf32>
    %c38_182 = arith.constant 38 : index
    %c0_183 = arith.constant 0 : index
    %170 = vector.load %arg13[%c38_182, %c0_183] : memref<72x32xf32, #tpu.memory_space<vmem>>, vector<8x32xf32>
    %c40_184 = arith.constant 40 : index
    %c0_185 = arith.constant 0 : index
    %171 = vector.load %arg13[%c40_184, %c0_185] : memref<72x32xf32, #tpu.memory_space<vmem>>, vector<8x32xf32>
    %c48_186 = arith.constant 48 : index
    %c0_187 = arith.constant 0 : index
    %172 = vector.load %arg13[%c48_186, %c0_187] : memref<72x32xf32, #tpu.memory_space<vmem>>, vector<8x32xf32>
    %c50_188 = arith.constant 50 : index
    %c0_189 = arith.constant 0 : index
    %173 = vector.load %arg13[%c50_188, %c0_189] : memref<72x32xf32, #tpu.memory_space<vmem>>, vector<8x32xf32>
    %c52_190 = arith.constant 52 : index
    %c0_191 = arith.constant 0 : index
    %174 = vector.load %arg13[%c52_190, %c0_191] : memref<72x32xf32, #tpu.memory_space<vmem>>, vector<8x32xf32>
    %c60_192 = arith.constant 60 : index
    %c0_193 = arith.constant 0 : index
    %175 = vector.load %arg13[%c60_192, %c0_193] : memref<72x32xf32, #tpu.memory_space<vmem>>, vector<8x32xf32>
    %c62 = arith.constant 62 : index
    %c0_194 = arith.constant 0 : index
    %176 = vector.load %arg13[%c62, %c0_194] : memref<72x32xf32, #tpu.memory_space<vmem>>, vector<8x32xf32>
    %c64 = arith.constant 64 : index
    %c0_195 = arith.constant 0 : index
    %177 = vector.load %arg13[%c64, %c0_195] : memref<72x32xf32, #tpu.memory_space<vmem>>, vector<8x32xf32>
    %178 = tpu.concatenate %169, %170, %171, %172, %173, %174, %175, %176, %177 in 1 : vector<8x32xf32>, vector<8x32xf32>, vector<8x32xf32>, vector<8x32xf32>, vector<8x32xf32>, vector<8x32xf32>, vector<8x32xf32>, vector<8x32xf32>, vector<8x32xf32> -> vector<8x288xf32>
    %179 = arith.truncf %178 : vector<8x288xf32> to vector<8x288xbf16>
    %c0_196 = arith.constant 0 : index
    %c0_197 = arith.constant 0 : index
    %180 = vector.load %arg6[%c0_196, %c0_197] : memref<288x32xbf16, #tpu.memory_space<vmem>>, vector<288x32xbf16>
    %cst_198 = arith.constant dense<0.000000e+00> : vector<8x32xf32>
    %181 = tpu.matmul %179, %180, %cst_198 {dimension_numbers = #tpu.dot_dimension_numbers<[1], [0], [0], [1], [0, 0, 1, 1], [], []>} : vector<8x288xbf16>, vector<288x32xbf16>, vector<8x32xf32> -> vector<8x32xf32>
    %c24_199 = arith.constant 24 : index
    %c0_200 = arith.constant 0 : index
    %182 = vector.load %arg14[%c24_199, %c0_200] : memref<32x32xf32, #tpu.memory_space<vmem>>, vector<8x32xf32>
    tpu.vector_store %arg14[%c24_199, %c0_200], %181 {strides = array<i32>} : memref<32x32xf32, #tpu.memory_space<vmem>>, vector<8x32xf32>,
    %c0_201 = arith.constant 0 : index
    %c0_202 = arith.constant 0 : index
    %183 = vector.load %arg14[%c0_201, %c0_202] : memref<32x32xf32, #tpu.memory_space<vmem>>, vector<32x32xf32>
    %c0_203 = arith.constant 0 : index
    %c0_204 = arith.constant 0 : index
    %184 = vector.load %arg7[%c0_203, %c0_204] : memref<1x32xf32, #tpu.memory_space<vmem>>, vector<1x32xf32>
    %c0_205 = arith.constant 0 : index
    %c0_206 = arith.constant 0 : index
    %185 = vector.load %arg8[%c0_205, %c0_206] : memref<1x32xf32, #tpu.memory_space<vmem>>, vector<1x32xf32>
    %cst_207 = arith.constant dense<0.000000e+00> : vector<32xf32>
    %186 = vector.multi_reduction <add>, %183, %cst_207 [0] : vector<32x32xf32> to vector<32xf32>
    %187 = vector.shape_cast %186 : vector<32xf32> to vector<1x32xf32>
    %cst_208 = arith.constant 3.200000e+01 : f32
    %188 = vector.broadcast %cst_208 : f32 to vector<1x32xf32>
    %189 = arith.divf %187, %188 : vector<1x32xf32>
    %190 = vector.broadcast %189 : vector<1x32xf32> to vector<32x32xf32>
    %191 = arith.subf %183, %190 : vector<32x32xf32>
    %192 = arith.mulf %191, %191 : vector<32x32xf32>
    %cst_209 = arith.constant dense<0.000000e+00> : vector<32xf32>
    %193 = vector.multi_reduction <add>, %192, %cst_209 [0] : vector<32x32xf32> to vector<32xf32>
    %194 = vector.shape_cast %193 : vector<32xf32> to vector<1x32xf32>
    %cst_210 = arith.constant 3.200000e+01 : f32
    %195 = vector.broadcast %cst_210 : f32 to vector<1x32xf32>
    %196 = arith.divf %194, %195 : vector<1x32xf32>
    %197 = vector.broadcast %189 : vector<1x32xf32> to vector<32x32xf32>
    %198 = arith.subf %183, %197 : vector<32x32xf32>
    %cst_211 = arith.constant 9.99999974E-6 : f32
    %199 = vector.broadcast %cst_211 : f32 to vector<1x32xf32>
    %200 = arith.addf %196, %199 : vector<1x32xf32>
    %201 = math.rsqrt %200 : vector<1x32xf32>
    %202 = vector.broadcast %201 : vector<1x32xf32> to vector<32x32xf32>
    %203 = arith.mulf %198, %202 : vector<32x32xf32>
    %204 = vector.broadcast %184 : vector<1x32xf32> to vector<32x32xf32>
    %205 = arith.mulf %203, %204 : vector<32x32xf32>
    %206 = vector.broadcast %185 : vector<1x32xf32> to vector<32x32xf32>
    %207 = arith.addf %205, %206 : vector<32x32xf32>
    %cst_212 = arith.constant 0.000000e+00 : f32
    %208 = vector.broadcast %cst_212 : f32 to vector<32x32xf32>
    %209 = arith.cmpf ogt, %207, %208 : vector<32x32xf32>
    %cst_213 = arith.constant 0.00999999977 : f32
    %210 = vector.broadcast %cst_213 : f32 to vector<32x32xf32>
    %211 = arith.mulf %210, %207 : vector<32x32xf32>
    %212 = arith.select %209, %207, %211 : vector<32x32xi1>, vector<32x32xf32>
    %c0_214 = arith.constant 0 : index
    %c0_215 = arith.constant 0 : index
    %213 = vector.load %arg14[%c0_214, %c0_215] : memref<32x32xf32, #tpu.memory_space<vmem>>, vector<32x32xf32>
    tpu.vector_store %arg14[%c0_214, %c0_215], %212 {strides = array<i32>} : memref<32x32xf32, #tpu.memory_space<vmem>>, vector<32x32xf32>,
    %c0_216 = arith.constant 0 : index
    %c0_217 = arith.constant 0 : index
    %214 = vector.load %arg14[%c0_216, %c0_217] : memref<32x32xf32, #tpu.memory_space<vmem>>, vector<2x32xf32>
    %c2_218 = arith.constant 2 : index
    %c0_219 = arith.constant 0 : index
    %215 = vector.load %arg14[%c2_218, %c0_219] : memref<32x32xf32, #tpu.memory_space<vmem>>, vector<2x32xf32>
    %c4_220 = arith.constant 4 : index
    %c0_221 = arith.constant 0 : index
    %216 = vector.load %arg14[%c4_220, %c0_221] : memref<32x32xf32, #tpu.memory_space<vmem>>, vector<2x32xf32>
    %c8_222 = arith.constant 8 : index
    %c0_223 = arith.constant 0 : index
    %217 = vector.load %arg14[%c8_222, %c0_223] : memref<32x32xf32, #tpu.memory_space<vmem>>, vector<2x32xf32>
    %c10 = arith.constant 10 : index
    %c0_224 = arith.constant 0 : index
    %218 = vector.load %arg14[%c10, %c0_224] : memref<32x32xf32, #tpu.memory_space<vmem>>, vector<2x32xf32>
    %c12_225 = arith.constant 12 : index
    %c0_226 = arith.constant 0 : index
    %219 = vector.load %arg14[%c12_225, %c0_226] : memref<32x32xf32, #tpu.memory_space<vmem>>, vector<2x32xf32>
    %c16_227 = arith.constant 16 : index
    %c0_228 = arith.constant 0 : index
    %220 = vector.load %arg14[%c16_227, %c0_228] : memref<32x32xf32, #tpu.memory_space<vmem>>, vector<2x32xf32>
    %c18 = arith.constant 18 : index
    %c0_229 = arith.constant 0 : index
    %221 = vector.load %arg14[%c18, %c0_229] : memref<32x32xf32, #tpu.memory_space<vmem>>, vector<2x32xf32>
    %c20 = arith.constant 20 : index
    %c0_230 = arith.constant 0 : index
    %222 = vector.load %arg14[%c20, %c0_230] : memref<32x32xf32, #tpu.memory_space<vmem>>, vector<2x32xf32>
    %223 = tpu.concatenate %214, %215, %216, %217, %218, %219, %220, %221, %222 in 1 : vector<2x32xf32>, vector<2x32xf32>, vector<2x32xf32>, vector<2x32xf32>, vector<2x32xf32>, vector<2x32xf32>, vector<2x32xf32>, vector<2x32xf32>, vector<2x32xf32> -> vector<2x288xf32>
    %224 = arith.truncf %223 : vector<2x288xf32> to vector<2x288xbf16>
    %c0_231 = arith.constant 0 : index
    %c0_232 = arith.constant 0 : index
    %225 = vector.load %arg9[%c0_231, %c0_232] : memref<288x128xbf16, #tpu.memory_space<vmem>>, vector<288x128xbf16>
    %cst_233 = arith.constant dense<0.000000e+00> : vector<2x128xf32>
    %226 = tpu.matmul %224, %225, %cst_233 {dimension_numbers = #tpu.dot_dimension_numbers<[1], [0], [0], [1], [0, 0, 1, 1], [], []>} : vector<2x288xbf16>, vector<288x128xbf16>, vector<2x128xf32> -> vector<2x128xf32>
    %c0_234 = arith.constant 0 : index
    %c0_235 = arith.constant 0 : index
    %227 = vector.load %arg10[%c0_234, %c0_235] : memref<1x128xf32, #tpu.memory_space<vmem>>, vector<1x128xf32>
    %228 = vector.broadcast %227 : vector<1x128xf32> to vector<2x128xf32>
    %229 = arith.addf %226, %228 : vector<2x128xf32>
    %230 = arith.negf %229 : vector<2x128xf32>
    %231 = math.exp %230 : vector<2x128xf32>
    %cst_236 = arith.constant 1.000000e+00 : f32
    %232 = vector.broadcast %cst_236 : f32 to vector<2x128xf32>
    %233 = arith.addf %232, %231 : vector<2x128xf32>
    %234 = arith.divf %232, %233 : vector<2x128xf32>
    %c0_237 = arith.constant 0 : index
    %c0_238 = arith.constant 0 : index
    %235 = vector.load %arg11[%c0_237, %c0_238] : memref<2x128xf32, #tpu.memory_space<vmem>>, vector<2x128xf32>
    tpu.vector_store %arg11[%c0_237, %c0_238], %234 {strides = array<i32>} : memref<2x128xf32, #tpu.memory_space<vmem>>, vector<2x128xf32>,
    return
  }
}

</mosaic_0001>

<llo_original>
// kernel: discriminator_forward.1
$region0: #{discriminator_forward.1}
  #allocation0 [shape = 'u32[]', space=smem, size = 0x4, offset = 0x4, fixed_abs, tag = 'smem constant byte address 0x4 - core index']
  #allocation1 [shape = 'u32[144,128]{1,0:T(1,128)}', space=vmem, size = 0x12000, scoped, tag = 'internal scratch']
  #allocation2 [shape = 'f32[364,32]{1,0:T(8,128)}', space=vmem, size = 0x2e000, scoped, tag = 'scratch operand']
  #allocation3 [shape = 'f32[72,32]{1,0:T(8,128)}', space=vmem, size = 0x9000, scoped, tag = 'scratch operand']
  #allocation4 [shape = 'f32[32,32]{1,0:T(8,128)}', space=vmem, size = 0x4000, scoped, tag = 'scratch operand']
  %s0 = inlined_call_operand.vmem [shape: bf16[364,9], index: 0, kind: input, shape index: {}]
  %s1 = inlined_call_operand.vmem [shape: bf16[9,32], index: 1, kind: input, shape index: {}]
  %s2 = inlined_call_operand.vmem [shape: f32[1,32], index: 2, kind: input, shape index: {}]
  %s3 = inlined_call_operand.vmem [shape: bf16[288,32], index: 3, kind: input, shape index: {}]
  %s4 = inlined_call_operand.vmem [shape: f32[1,32], index: 4, kind: input, shape index: {}]
  %s5 = inlined_call_operand.vmem [shape: f32[1,32], index: 5, kind: input, shape index: {}]
  %s6 = inlined_call_operand.vmem [shape: bf16[288,32], index: 6, kind: input, shape index: {}]
  %s7 = inlined_call_operand.vmem [shape: f32[1,32], index: 7, kind: input, shape index: {}]
  %s8 = inlined_call_operand.vmem [shape: f32[1,32], index: 8, kind: input, shape index: {}]
  %s9 = inlined_call_operand.vmem [shape: bf16[288,128], index: 9, kind: input, shape index: {}]
  %s10 = inlined_call_operand.vmem [shape: f32[1,128], index: 10, kind: input, shape index: {}]
  %s11 = inlined_call_operand.vmem [shape: f32[2,128], index: 11, kind: output, shape index: {}]
  %s12 = sld [smem:[#allocation0]]
  $region54: #{discriminator_forward.1} parent=0
    _
  %s14 = ssub.s32 1, %s12
  %s15 = scalar_select 0, %s14, %s12
  // Predicated region
  $region2: #{discriminator_forward.1} parent=0 // pred_check
    _
  $region3: #{discriminator_forward.1} parent=0 // pred_check_branch
    %17 = sbr.rel (0) target = $region5
  $region4: #{discriminator_forward.1} parent=0 // pred_region
    _
  $region5: #{discriminator_forward.1} parent=0 // pred_fallthru
    _
  // Predicated region
  $region6: #{discriminator_forward.1} parent=0 // pred_check
    _
  $region7: #{discriminator_forward.1} parent=0 // pred_check_branch
    %19 = sbr.rel (0) target = $region9
  $region8: #{discriminator_forward.1} parent=0 // pred_region
    _
  $region9: #{discriminator_forward.1} parent=0 // pred_fallthru
    _
  // Predicated region
  $region10: #{discriminator_forward.1} parent=0 // pred_check
    _
  $region11: #{discriminator_forward.1} parent=0 // pred_check_branch
    %21 = sbr.rel (0) target = $region13
  $region12: #{discriminator_forward.1} parent=0 // pred_region
    _
  $region13: #{discriminator_forward.1} parent=0 // pred_fallthru
    _
  // Predicated region
  $region14: #{discriminator_forward.1} parent=0 // pred_check
    _
  $region15: #{discriminator_forward.1} parent=0 // pred_check_branch
    %23 = sbr.rel (0) target = $region17
  $region16: #{discriminator_forward.1} parent=0 // pred_region
    _
  $region17: #{discriminator_forward.1} parent=0 // pred_fallthru
    _
  // Predicated region
  $region18: #{discriminator_forward.1} parent=0 // pred_check
    _
  $region19: #{discriminator_forward.1} parent=0 // pred_check_branch
    %25 = sbr.rel (0) target = $region21
  $region20: #{discriminator_forward.1} parent=0 // pred_region
    _
  $region21: #{discriminator_forward.1} parent=0 // pred_fallthru
    _
  // Predicated region
  $region22: #{discriminator_forward.1} parent=0 // pred_check
    _
  $region23: #{discriminator_forward.1} parent=0 // pred_check_branch
    %27 = sbr.rel (0) target = $region25
  $region24: #{discriminator_forward.1} parent=0 // pred_region
    _
  $region25: #{discriminator_forward.1} parent=0 // pred_fallthru
    _
  // Predicated region
  $region26: #{discriminator_forward.1} parent=0 // pred_check
    _
  $region27: #{discriminator_forward.1} parent=0 // pred_check_branch
    %29 = sbr.rel (0) target = $region29
  $region28: #{discriminator_forward.1} parent=0 // pred_region
    _
  $region29: #{discriminator_forward.1} parent=0 // pred_fallthru
    _
  // Predicated region
  $region30: #{discriminator_forward.1} parent=0 // pred_check
    _
  $region31: #{discriminator_forward.1} parent=0 // pred_check_branch
    %31 = sbr.rel (0) target = $region33
  $region32: #{discriminator_forward.1} parent=0 // pred_region
    _
  $region33: #{discriminator_forward.1} parent=0 // pred_fallthru
    _
  // Predicated region
  $region34: #{discriminator_forward.1} parent=0 // pred_check
    _
  $region35: #{discriminator_forward.1} parent=0 // pred_check_branch
    %33 = sbr.rel (0) target = $region37
  $region36: #{discriminator_forward.1} parent=0 // pred_region
    _
  $region37: #{discriminator_forward.1} parent=0 // pred_fallthru
    _
  // Predicated region
  $region38: #{discriminator_forward.1} parent=0 // pred_check
    _
  $region39: #{discriminator_forward.1} parent=0 // pred_check_branch
    %35 = sbr.rel (0) target = $region41
  $region40: #{discriminator_forward.1} parent=0 // pred_region
    _
  $region41: #{discriminator_forward.1} parent=0 // pred_fallthru
    _
  // Predicated region
  $region42: #{discriminator_forward.1} parent=0 // pred_check
    _
  $region43: #{discriminator_forward.1} parent=0 // pred_check_branch
    %37 = sbr.rel (0) target = $region45
  $region44: #{discriminator_forward.1} parent=0 // pred_region
    _
  $region45: #{discriminator_forward.1} parent=0 // pred_fallthru
    _
  %v39 = vld [vmem:[%s0] sm:$0xf]
  %v40 = vld [vmem:[%s0 + $0x4] sm:$0xf]
  %v41 = vld [vmem:[%s0 + $0x8] sm:$0xf]
  %v42 = vld [vmem:[%s0 + $0xc] sm:$0xf]
  %v43 = vld [vmem:[%s0 + $0x10] sm:$0xf]
  %v44 = vld [vmem:[%s0 + $0x14] sm:$0xf]
  %v45 = vld [vmem:[%s0 + $0x18] sm:$0xf]
  %v46 = vld [vmem:[%s0 + $0x1c] sm:$0xf]
  %v47 = vld [vmem:[%s0 + $0x20] sm:$0xf]
  %v48 = vld [vmem:[%s0 + $0x24] sm:$0xf]
  %v49 = vld [vmem:[%s0 + $0x28] sm:$0xf]
  %v50 = vld [vmem:[%s0 + $0x2c] sm:$0xf]
  %v51 = vld [vmem:[%s0 + $0x30] sm:$0xf]
  %v52 = vld [vmem:[%s0 + $0x34] sm:$0xf]
  %v53 = vld [vmem:[%s0 + $0x38] sm:$0xf]
  %v54 = vld [vmem:[%s0 + $0x3c] sm:$0xf]
  %v55 = vld [vmem:[%s0 + $0x40] sm:$0xf]
  %v56 = vld [vmem:[%s0 + $0x44] sm:$0xf]
  %v57 = vld [vmem:[%s0 + $0x48] sm:$0xf]
  %v58 = vld [vmem:[%s0 + $0x4c] sm:$0xf]
  %v59 = vld [vmem:[%s0 + $0x50] sm:$0xf]
  %v60 = vld [vmem:[%s0 + $0x54] sm:$0xf]
  %v61 = vld [vmem:[%s0 + $0x58] sm:$0xf]
  %v62 = vld [vmem:[%s0 + $0x5c] sm:$0xf]
  %v63 = vld [vmem:[%s0 + $0x60] sm:$0xf]
  %v64 = vld [vmem:[%s0 + $0x64] sm:$0xf]
  %v65 = vld [vmem:[%s0 + $0x68] sm:$0xf]
  %v66 = vld [vmem:[%s0 + $0x6c] sm:$0xf]
  %v67 = vld [vmem:[%s0 + $0x70] sm:$0xf]
  %v68 = vld [vmem:[%s0 + $0x74] sm:$0xf]
  %v69 = vld [vmem:[%s0 + $0x78] sm:$0xf]
  %v70 = vld [vmem:[%s0 + $0x7c] sm:$0xf]
  %v71 = vld [vmem:[%s0 + $0x80] sm:$0xf]
  %v72 = vld [vmem:[%s0 + $0x84] sm:$0xf]
  %v73 = vld [vmem:[%s0 + $0x88] sm:$0xf]
  %v74 = vld [vmem:[%s0 + $0x8c] sm:$0xf]
  %v75 = vld [vmem:[%s0 + $0x90] sm:$0xf]
  %v76 = vld [vmem:[%s0 + $0x94] sm:$0xf]
  %v77 = vld [vmem:[%s0 + $0x98] sm:$0xf]
  %v78 = vld [vmem:[%s0 + $0x9c] sm:$0xf]
  %v79 = vld [vmem:[%s0 + $0xa0] sm:$0xf]
  %v80 = vld [vmem:[%s0 + $0xa4] sm:$0xf]
  %v81 = vld [vmem:[%s0 + $0xa8] sm:$0xf]
  %v82 = vld [vmem:[%s0 + $0xac] sm:$0xf]
  %v83 = vld [vmem:[%s0 + $0xb0] sm:$0xf]
  %v84 = vld [vmem:[%s0 + $0xb4] sm:$0x3]
  %v85 = vld [vmem:[%s1] sm:$0xf]
  %v86 = vld [vmem:[%s1 + $0x4] sm:$0x1]
  %v87 = vld [vmem:[%s2] sm:$0x1]
  %v89 = vlaneseq
  %v90 = vshrl.u32 %v89, 7
  %v91 = vsub.s32 0, %v90
  %v92 = vrot.slane %v87, %v91
  %v140 = vunpack.c.l.b16 %v39
  %v141 = vunpack.c.l.b16 %v40
  %v142 = vunpack.c.l.b16 %v41
  %v143 = vunpack.c.l.b16 %v42
  %v144 = vunpack.c.l.b16 %v43
  %v145 = vunpack.c.l.b16 %v44
  %v146 = vunpack.c.l.b16 %v45
  %v147 = vunpack.c.l.b16 %v46
  %v148 = vunpack.c.l.b16 %v47
  %v149 = vunpack.c.l.b16 %v48
  %v150 = vunpack.c.l.b16 %v49
  %v151 = vunpack.c.l.b16 %v50
  %v152 = vunpack.c.l.b16 %v51
  %v153 = vunpack.c.l.b16 %v52
  %v154 = vunpack.c.l.b16 %v53
  %v155 = vunpack.c.l.b16 %v54
  %v156 = vunpack.c.l.b16 %v55
  %v157 = vunpack.c.l.b16 %v56
  %v158 = vunpack.c.l.b16 %v57
  %v159 = vunpack.c.l.b16 %v58
  %v160 = vunpack.c.l.b16 %v59
  %v161 = vunpack.c.l.b16 %v60
  %v162 = vunpack.c.l.b16 %v61
  %v163 = vunpack.c.l.b16 %v62
  %v164 = vunpack.c.l.b16 %v63
  %v165 = vunpack.c.l.b16 %v64
  %v166 = vunpack.c.l.b16 %v65
  %v167 = vunpack.c.l.b16 %v66
  %v168 = vunpack.c.l.b16 %v67
  %v169 = vunpack.c.l.b16 %v68
  %v170 = vunpack.c.l.b16 %v69
  %v171 = vunpack.c.l.b16 %v70
  %v172 = vunpack.c.l.b16 %v71
  %v173 = vunpack.c.l.b16 %v72
  %v174 = vunpack.c.l.b16 %v73
  %v175 = vunpack.c.l.b16 %v74
  %v176 = vunpack.c.l.b16 %v75
  %v177 = vunpack.c.l.b16 %v76
  %v178 = vunpack.c.l.b16 %v77
  %v179 = vunpack.c.l.b16 %v78
  %v180 = vunpack.c.l.b16 %v79
  %v181 = vunpack.c.l.b16 %v80
  %v182 = vunpack.c.l.b16 %v81
  %v183 = vunpack.c.l.b16 %v82
  %v184 = vunpack.c.l.b16 %v83
  %v185 = vunpack.c.l.b16 %v84
  %v186 = vpack.c.b16 %v141, %v140
  %v187 = vpack.c.b16 %v143, %v142
  %v188 = vpack.c.b16 %v145, %v144
  %v189 = vpack.c.b16 %v147, %v146
  %v190 = vpack.c.b16 %v149, %v148
  %v191 = vpack.c.b16 %v151, %v150
  %v192 = vpack.c.b16 %v153, %v152
  %v193 = vpack.c.b16 %v155, %v154
  %v194 = vpack.c.b16 %v157, %v156
  %v195 = vpack.c.b16 %v159, %v158
  %v196 = vpack.c.b16 %v161, %v160
  %v197 = vpack.c.b16 %v163, %v162
  %v198 = vpack.c.b16 %v165, %v164
  %v199 = vpack.c.b16 %v167, %v166
  %v200 = vpack.c.b16 %v169, %v168
  %v201 = vpack.c.b16 %v171, %v170
  %v202 = vpack.c.b16 %v173, %v172
  %v203 = vpack.c.b16 %v175, %v174
  %v204 = vpack.c.b16 %v177, %v176
  %v205 = vpack.c.b16 %v179, %v178
  %v206 = vpack.c.b16 %v181, %v180
  %v207 = vpack.c.b16 %v183, %v182
  %v208 = vpack.c.b16 %v185, %v184
  %v211 = vunpack.c.l.b16 %v85
  %v212 = vunpack.c.l.b16 %v86
  %v213 = vpack.c.b16 %v212, %v211
  %vm214 = vcmask 72704
  %v216 = vsel %vm214, %v186, 0
  %v219 = vsel %vm214, %v187, 0
  %v222 = vsel %vm214, %v188, 0
  %v225 = vsel %vm214, %v189, 0
  %v228 = vsel %vm214, %v190, 0
  %v231 = vsel %vm214, %v191, 0
  %v234 = vsel %vm214, %v192, 0
  %v237 = vsel %vm214, %v193, 0
  %v240 = vsel %vm214, %v194, 0
  %v243 = vsel %vm214, %v195, 0
  %v246 = vsel %vm214, %v196, 0
  %v249 = vsel %vm214, %v197, 0
  %v252 = vsel %vm214, %v198, 0
  %v255 = vsel %vm214, %v199, 0
  %v258 = vsel %vm214, %v200, 0
  %v261 = vsel %vm214, %v201, 0
  %v264 = vsel %vm214, %v202, 0
  %v267 = vsel %vm214, %v203, 0
  %v270 = vsel %vm214, %v204, 0
  %v273 = vsel %vm214, %v205, 0
  %v276 = vsel %vm214, %v206, 0
  %v279 = vsel %vm214, %v207, 0
  %v282 = vsel %vm214, %v208, 0
  %vm284 = vcmask 1043456
  %vm285 = vcmask 1044480
  %v286 = vsel %vm284, 4294967295, 65535
  %v287 = vsel %vm285, %v286, 0
  %v289 = vand.u32 %v213, %v287
  %291 = vmatprep.subr.bf16.mxu0 0
  %292 = vmatpush1.bf16.msra.mxu0 %v289
  %293 = vmatprep.subr.bf16.mxu0 0
  %294 = vmatpush1.bf16.msra.mxu0 0
  %295 = vmatprep.subr.bf16.mxu0 0
  %296 = vmatpush1.bf16.msra.mxu0 0
  %297 = vmatprep.subr.bf16.mxu0 0
  %298 = vmatpush1.bf16.msra.mxu0 0
  %299 = vmatprep.subr.bf16.mxu0 0
  %300 = vmatpush1.bf16.msra.mxu0 0
  %301 = vmatprep.subr.bf16.mxu0 0
  %302 = vmatpush1.bf16.msra.mxu0 0
  %303 = vmatprep.subr.bf16.mxu0 0
  %304 = vmatpush1.bf16.msra.mxu0 0
  %305 = vmatprep.subr.bf16.mxu0 0
  %306 = vmatpush1.bf16.msra.mxu0 0
  %307 = vmatprep.subr.bf16.mxu0 0
  %308 = vmatpush1.bf16.msra.mxu0 0
  %309 = vmatprep.subr.bf16.mxu0 0
  %310 = vmatpush1.bf16.msra.mxu0 0
  %311 = vmatprep.subr.bf16.mxu0 0
  %312 = vmatpush1.bf16.msra.mxu0 0
  %313 = vmatprep.subr.bf16.mxu0 0
  %314 = vmatpush1.bf16.msra.mxu0 0
  %315 = vmatprep.subr.bf16.mxu0 0
  %316 = vmatpush1.bf16.msra.mxu0 0
  %317 = vmatprep.subr.bf16.mxu0 0
  %318 = vmatpush1.bf16.msra.mxu0 0
  %319 = vmatprep.subr.bf16.mxu0 0
  %320 = vmatpush1.bf16.msra.mxu0 0
  %321 = vmatprep.subr.bf16.mxu0 0
  %322 = vmatpush1.bf16.msra.mxu0 0
  %323 = vmatprep.mubr.bf16.mxu0 0
  %324 = vmatmul.mubr.bf16.gmra.mrb[0].mxu0 %v216
  %v325 = vpop.f32.mrb[0].mxu0
  %v326 = vadd.f32 %v92, %v325
  %v327 = vpop.f32.mrb[0].mxu0
  %v328 = vpop.f32.mrb[0].mxu0
  %v329 = vadd.f32 %v92, %v328
  %v330 = vpop.f32.mrb[0].mxu0
  %331 = vmatprep.mubr.bf16.mxu0 0
  %332 = vmatmul.mubr.bf16.gmra.mrb[0].mxu0 %v219
  %v333 = vpop.f32.mrb[0].mxu0
  %v334 = vadd.f32 %v92, %v333
  %v335 = vpop.f32.mrb[0].mxu0
  %v336 = vpop.f32.mrb[0].mxu0
  %v337 = vadd.f32 %v92, %v336
  %v338 = vpop.f32.mrb[0].mxu0
  %339 = vmatprep.mubr.bf16.mxu0 0
  %340 = vmatmul.mubr.bf16.gmra.mrb[0].mxu0 %v222
  %v341 = vpop.f32.mrb[0].mxu0
  %v342 = vadd.f32 %v92, %v341
  %v343 = vpop.f32.mrb[0].mxu0
  %v344 = vpop.f32.mrb[0].mxu0
  %v345 = vadd.f32 %v92, %v344
  %v346 = vpop.f32.mrb[0].mxu0
  %347 = vmatprep.mubr.bf16.mxu0 0
  %348 = vmatmul.mubr.bf16.gmra.mrb[0].mxu0 %v225
  %v349 = vpop.f32.mrb[0].mxu0
  %v350 = vadd.f32 %v92, %v349
  %v351 = vpop.f32.mrb[0].mxu0
  %v352 = vpop.f32.mrb[0].mxu0
  %v353 = vadd.f32 %v92, %v352
  %v354 = vpop.f32.mrb[0].mxu0
  %355 = vmatprep.mubr.bf16.mxu0 0
  %356 = vmatmul.mubr.bf16.gmra.mrb[0].mxu0 %v228
  %v357 = vpop.f32.mrb[0].mxu0
  %v358 = vadd.f32 %v92, %v357
  %v359 = vpop.f32.mrb[0].mxu0
  %v360 = vpop.f32.mrb[0].mxu0
  %v361 = vadd.f32 %v92, %v360
  %v362 = vpop.f32.mrb[0].mxu0
  %363 = vmatprep.mubr.bf16.mxu0 0
  %364 = vmatmul.mubr.bf16.gmra.mrb[0].mxu0 %v231
  %v365 = vpop.f32.mrb[0].mxu0
  %v366 = vadd.f32 %v92, %v365
  %v367 = vpop.f32.mrb[0].mxu0
  %v368 = vpop.f32.mrb[0].mxu0
  %v369 = vadd.f32 %v92, %v368
  %v370 = vpop.f32.mrb[0].mxu0
  %371 = vmatprep.mubr.bf16.mxu0 0
  %372 = vmatmul.mubr.bf16.gmra.mrb[0].mxu0 %v234
  %v373 = vpop.f32.mrb[0].mxu0
  %v374 = vadd.f32 %v92, %v373
  %v375 = vpop.f32.mrb[0].mxu0
  %v376 = vpop.f32.mrb[0].mxu0
  %v377 = vadd.f32 %v92, %v376
  %v378 = vpop.f32.mrb[0].mxu0
  %379 = vmatprep.mubr.bf16.mxu0 0
  %380 = vmatmul.mubr.bf16.gmra.mrb[0].mxu0 %v237
  %v381 = vpop.f32.mrb[0].mxu0
  %v382 = vadd.f32 %v92, %v381
  %v383 = vpop.f32.mrb[0].mxu0
  %v384 = vpop.f32.mrb[0].mxu0
  %v385 = vadd.f32 %v92, %v384
  %v386 = vpop.f32.mrb[0].mxu0
  %387 = vmatprep.mubr.bf16.mxu0 0
  %388 = vmatmul.mubr.bf16.gmra.mrb[0].mxu0 %v240
  %v389 = vpop.f32.mrb[0].mxu0
  %v390 = vadd.f32 %v92, %v389
  %v391 = vpop.f32.mrb[0].mxu0
  %v392 = vpop.f32.mrb[0].mxu0
  %v393 = vadd.f32 %v92, %v392
  %v394 = vpop.f32.mrb[0].mxu0
  %395 = vmatprep.mubr.bf16.mxu0 0
  %396 = vmatmul.mubr.bf16.gmra.mrb[0].mxu0 %v243
  %v397 = vpop.f32.mrb[0].mxu0
  %v398 = vadd.f32 %v92, %v397
  %v399 = vpop.f32.mrb[0].mxu0
  %v400 = vpop.f32.mrb[0].mxu0
  %v401 = vadd.f32 %v92, %v400
  %v402 = vpop.f32.mrb[0].mxu0
  %403 = vmatprep.mubr.bf16.mxu0 0
  %404 = vmatmul.mubr.bf16.gmra.mrb[0].mxu0 %v246
  %v405 = vpop.f32.mrb[0].mxu0
  %v406 = vadd.f32 %v92, %v405
  %v407 = vpop.f32.mrb[0].mxu0
  %v408 = vpop.f32.mrb[0].mxu0
  %v409 = vadd.f32 %v92, %v408
  %v410 = vpop.f32.mrb[0].mxu0
  %411 = vmatprep.mubr.bf16.mxu0 0
  %412 = vmatmul.mubr.bf16.gmra.mrb[0].mxu0 %v249
  %v413 = vpop.f32.mrb[0].mxu0
  %v414 = vadd.f32 %v92, %v413
  %v415 = vpop.f32.mrb[0].mxu0
  %v416 = vpop.f32.mrb[0].mxu0
  %v417 = vadd.f32 %v92, %v416
  %v418 = vpop.f32.mrb[0].mxu0
  %419 = vmatprep.mubr.bf16.mxu0 0
  %420 = vmatmul.mubr.bf16.gmra.mrb[0].mxu0 %v252
  %v421 = vpop.f32.mrb[0].mxu0
  %v422 = vadd.f32 %v92, %v421
  %v423 = vpop.f32.mrb[0].mxu0
  %v424 = vpop.f32.mrb[0].mxu0
  %v425 = vadd.f32 %v92, %v424
  %v426 = vpop.f32.mrb[0].mxu0
  %427 = vmatprep.mubr.bf16.mxu0 0
  %428 = vmatmul.mubr.bf16.gmra.mrb[0].mxu0 %v255
  %v429 = vpop.f32.mrb[0].mxu0
  %v430 = vadd.f32 %v92, %v429
  %v431 = vpop.f32.mrb[0].mxu0
  %v432 = vpop.f32.mrb[0].mxu0
  %v433 = vadd.f32 %v92, %v432
  %v434 = vpop.f32.mrb[0].mxu0
  %435 = vmatprep.mubr.bf16.mxu0 0
  %436 = vmatmul.mubr.bf16.gmra.mrb[0].mxu0 %v258
  %v437 = vpop.f32.mrb[0].mxu0
  %v438 = vadd.f32 %v92, %v437
  %v439 = vpop.f32.mrb[0].mxu0
  %v440 = vpop.f32.mrb[0].mxu0
  %v441 = vadd.f32 %v92, %v440
  %v442 = vpop.f32.mrb[0].mxu0
  %443 = vmatprep.mubr.bf16.mxu0 0
  %444 = vmatmul.mubr.bf16.gmra.mrb[0].mxu0 %v261
  %v445 = vpop.f32.mrb[0].mxu0
  %v446 = vadd.f32 %v92, %v445
  %v447 = vpop.f32.mrb[0].mxu0
  %v448 = vpop.f32.mrb[0].mxu0
  %v449 = vadd.f32 %v92, %v448
  %v450 = vpop.f32.mrb[0].mxu0
  %451 = vmatprep.mubr.bf16.mxu0 0
  %452 = vmatmul.mubr.bf16.gmra.mrb[0].mxu0 %v264
  %v453 = vpop.f32.mrb[0].mxu0
  %v454 = vadd.f32 %v92, %v453
  %v455 = vpop.f32.mrb[0].mxu0
  %v456 = vpop.f32.mrb[0].mxu0
  %v457 = vadd.f32 %v92, %v456
  %v458 = vpop.f32.mrb[0].mxu0
  %459 = vmatprep.mubr.bf16.mxu0 0
  %460 = vmatmul.mubr.bf16.gmra.mrb[0].mxu0 %v267
  %v461 = vpop.f32.mrb[0].mxu0
  %v462 = vadd.f32 %v92, %v461
  %v463 = vpop.f32.mrb[0].mxu0
  %v464 = vpop.f32.mrb[0].mxu0
  %v465 = vadd.f32 %v92, %v464
  %v466 = vpop.f32.mrb[0].mxu0
  %467 = vmatprep.mubr.bf16.mxu0 0
  %468 = vmatmul.mubr.bf16.gmra.mrb[0].mxu0 %v270
  %v469 = vpop.f32.mrb[0].mxu0
  %v470 = vadd.f32 %v92, %v469
  %v471 = vpop.f32.mrb[0].mxu0
  %v472 = vpop.f32.mrb[0].mxu0
  %v473 = vadd.f32 %v92, %v472
  %v474 = vpop.f32.mrb[0].mxu0
  %475 = vmatprep.mubr.bf16.mxu0 0
  %476 = vmatmul.mubr.bf16.gmra.mrb[0].mxu0 %v273
  %v477 = vpop.f32.mrb[0].mxu0
  %v478 = vadd.f32 %v92, %v477
  %v479 = vpop.f32.mrb[0].mxu0
  %v480 = vpop.f32.mrb[0].mxu0
  %v481 = vadd.f32 %v92, %v480
  %v482 = vpop.f32.mrb[0].mxu0
  %483 = vmatprep.mubr.bf16.mxu0 0
  %484 = vmatmul.mubr.bf16.gmra.mrb[0].mxu0 %v276
  %v485 = vpop.f32.mrb[0].mxu0
  %v486 = vadd.f32 %v92, %v485
  %v487 = vpop.f32.mrb[0].mxu0
  %v488 = vpop.f32.mrb[0].mxu0
  %v489 = vadd.f32 %v92, %v488
  %v490 = vpop.f32.mrb[0].mxu0
  %491 = vmatprep.mubr.bf16.mxu0 0
  %492 = vmatmul.mubr.bf16.gmra.mrb[0].mxu0 %v279
  %v493 = vpop.f32.mrb[0].mxu0
  %v494 = vadd.f32 %v92, %v493
  %v495 = vpop.f32.mrb[0].mxu0
  %v496 = vpop.f32.mrb[0].mxu0
  %v497 = vadd.f32 %v92, %v496
  %v498 = vpop.f32.mrb[0].mxu0
  %499 = vmatprep.mubr.bf16.mxu0 0
  %500 = vmatmul.mubr.bf16.gmra.mrb[0].mxu0 %v282
  %v501 = vpop.f32.mrb[0].mxu0
  %v502 = vadd.f32 %v92, %v501
  %v503 = vpop.f32.mrb[0].mxu0
  %v504 = vpop.f32.mrb[0].mxu0
  %v505 = vadd.f32 %v92, %v504
  %v506 = vpop.f32.mrb[0].mxu0
  %507 = vdwg.mxu0
  %vm508 = vcmp.gt.f32.partialorder %v326, 0.0
  %vm509 = vcmp.gt.f32.partialorder %v329, 0.0
  %vm510 = vcmp.gt.f32.partialorder %v334, 0.0
  %vm511 = vcmp.gt.f32.partialorder %v337, 0.0
  %vm512 = vcmp.gt.f32.partialorder %v342, 0.0
  %vm513 = vcmp.gt.f32.partialorder %v345, 0.0
  %vm514 = vcmp.gt.f32.partialorder %v350, 0.0
  %vm515 = vcmp.gt.f32.partialorder %v353, 0.0
  %vm516 = vcmp.gt.f32.partialorder %v358, 0.0
  %vm517 = vcmp.gt.f32.partialorder %v361, 0.0
  %vm518 = vcmp.gt.f32.partialorder %v366, 0.0
  %vm519 = vcmp.gt.f32.partialorder %v369, 0.0
  %vm520 = vcmp.gt.f32.partialorder %v374, 0.0
  %vm521 = vcmp.gt.f32.partialorder %v377, 0.0
  %vm522 = vcmp.gt.f32.partialorder %v382, 0.0
  %vm523 = vcmp.gt.f32.partialorder %v385, 0.0
  %vm524 = vcmp.gt.f32.partialorder %v390, 0.0
  %vm525 = vcmp.gt.f32.partialorder %v393, 0.0
  %vm526 = vcmp.gt.f32.partialorder %v398, 0.0
  %vm527 = vcmp.gt.f32.partialorder %v401, 0.0
  %vm528 = vcmp.gt.f32.partialorder %v406, 0.0
  %vm529 = vcmp.gt.f32.partialorder %v409, 0.0
  %vm530 = vcmp.gt.f32.partialorder %v414, 0.0
  %vm531 = vcmp.gt.f32.partialorder %v417, 0.0
  %vm532 = vcmp.gt.f32.partialorder %v422, 0.0
  %vm533 = vcmp.gt.f32.partialorder %v425, 0.0
  %vm534 = vcmp.gt.f32.partialorder %v430, 0.0
  %vm535 = vcmp.gt.f32.partialorder %v433, 0.0
  %vm536 = vcmp.gt.f32.partialorder %v438, 0.0
  %vm537 = vcmp.gt.f32.partialorder %v441, 0.0
  %vm538 = vcmp.gt.f32.partialorder %v446, 0.0
  %vm539 = vcmp.gt.f32.partialorder %v449, 0.0
  %vm540 = vcmp.gt.f32.partialorder %v454, 0.0
  %vm541 = vcmp.gt.f32.partialorder %v457, 0.0
  %vm542 = vcmp.gt.f32.partialorder %v462, 0.0
  %vm543 = vcmp.gt.f32.partialorder %v465, 0.0
  %vm544 = vcmp.gt.f32.partialorder %v470, 0.0
  %vm545 = vcmp.gt.f32.partialorder %v473, 0.0
  %vm546 = vcmp.gt.f32.partialorder %v478, 0.0
  %vm547 = vcmp.gt.f32.partialorder %v481, 0.0
  %vm548 = vcmp.gt.f32.partialorder %v486, 0.0
  %vm549 = vcmp.gt.f32.partialorder %v489, 0.0
  %vm550 = vcmp.gt.f32.partialorder %v494, 0.0
  %vm551 = vcmp.gt.f32.partialorder %v497, 0.0
  %vm552 = vcmp.gt.f32.partialorder %v502, 0.0
  %vm553 = vcmp.gt.f32.partialorder %v505, 0.0
  %v554 = vmul.f32 %v326, 0.01
  %v555 = vmul.f32 %v329, 0.01
  %v556 = vmul.f32 %v334, 0.01
  %v557 = vmul.f32 %v337, 0.01
  %v558 = vmul.f32 %v342, 0.01
  %v559 = vmul.f32 %v345, 0.01
  %v560 = vmul.f32 %v350, 0.01
  %v561 = vmul.f32 %v353, 0.01
  %v562 = vmul.f32 %v358, 0.01
  %v563 = vmul.f32 %v361, 0.01
  %v564 = vmul.f32 %v366, 0.01
  %v565 = vmul.f32 %v369, 0.01
  %v566 = vmul.f32 %v374, 0.01
  %v567 = vmul.f32 %v377, 0.01
  %v568 = vmul.f32 %v382, 0.01
  %v569 = vmul.f32 %v385, 0.01
  %v570 = vmul.f32 %v390, 0.01
  %v571 = vmul.f32 %v393, 0.01
  %v572 = vmul.f32 %v398, 0.01
  %v573 = vmul.f32 %v401, 0.01
  %v574 = vmul.f32 %v406, 0.01
  %v575 = vmul.f32 %v409, 0.01
  %v576 = vmul.f32 %v414, 0.01
  %v577 = vmul.f32 %v417, 0.01
  %v578 = vmul.f32 %v422, 0.01
  %v579 = vmul.f32 %v425, 0.01
  %v580 = vmul.f32 %v430, 0.01
  %v581 = vmul.f32 %v433, 0.01
  %v582 = vmul.f32 %v438, 0.01
  %v583 = vmul.f32 %v441, 0.01
  %v584 = vmul.f32 %v446, 0.01
  %v585 = vmul.f32 %v449, 0.01
  %v586 = vmul.f32 %v454, 0.01
  %v587 = vmul.f32 %v457, 0.01
  %v588 = vmul.f32 %v462, 0.01
  %v589 = vmul.f32 %v465, 0.01
  %v590 = vmul.f32 %v470, 0.01
  %v591 = vmul.f32 %v473, 0.01
  %v592 = vmul.f32 %v478, 0.01
  %v593 = vmul.f32 %v481, 0.01
  %v594 = vmul.f32 %v486, 0.01
  %v595 = vmul.f32 %v489, 0.01
  %v596 = vmul.f32 %v494, 0.01
  %v597 = vmul.f32 %v497, 0.01
  %v598 = vmul.f32 %v502, 0.01
  %v599 = vmul.f32 %v505, 0.01
  %v600 = vsel %vm508, %v326, %v554
  %v601 = vsel %vm509, %v329, %v555
  %v602 = vsel %vm510, %v334, %v556
  %v603 = vsel %vm511, %v337, %v557
  %v604 = vsel %vm512, %v342, %v558
  %v605 = vsel %vm513, %v345, %v559
  %v606 = vsel %vm514, %v350, %v560
  %v607 = vsel %vm515, %v353, %v561
  %v608 = vsel %vm516, %v358, %v562
  %v609 = vsel %vm517, %v361, %v563
  %v610 = vsel %vm518, %v366, %v564
  %v611 = vsel %vm519, %v369, %v565
  %v612 = vsel %vm520, %v374, %v566
  %v613 = vsel %vm521, %v377, %v567
  %v614 = vsel %vm522, %v382, %v568
  %v615 = vsel %vm523, %v385, %v569
  %v616 = vsel %vm524, %v390, %v570
  %v617 = vsel %vm525, %v393, %v571
  %v618 = vsel %vm526, %v398, %v572
  %v619 = vsel %vm527, %v401, %v573
  %v620 = vsel %vm528, %v406, %v574
  %v621 = vsel %vm529, %v409, %v575
  %v622 = vsel %vm530, %v414, %v576
  %v623 = vsel %vm531, %v417, %v577
  %v624 = vsel %vm532, %v422, %v578
  %v625 = vsel %vm533, %v425, %v579
  %v626 = vsel %vm534, %v430, %v580
  %v627 = vsel %vm535, %v433, %v581
  %v628 = vsel %vm536, %v438, %v582
  %v629 = vsel %vm537, %v441, %v583
  %v630 = vsel %vm538, %v446, %v584
  %v631 = vsel %vm539, %v449, %v585
  %v632 = vsel %vm540, %v454, %v586
  %v633 = vsel %vm541, %v457, %v587
  %v634 = vsel %vm542, %v462, %v588
  %v635 = vsel %vm543, %v465, %v589
  %v636 = vsel %vm544, %v470, %v590
  %v637 = vsel %vm545, %v473, %v591
  %v638 = vsel %vm546, %v478, %v592
  %v639 = vsel %vm547, %v481, %v593
  %v640 = vsel %vm548, %v486, %v594
  %v641 = vsel %vm549, %v489, %v595
  %v642 = vsel %vm550, %v494, %v596
  %v643 = vsel %vm551, %v497, %v597
  %v644 = vsel %vm552, %v502, %v598
  %v645 = vsel %vm553, %v505, %v599
  %vm646 = vcmask 261120
  %647 = vst.msk [vmem:[#allocation2] sm:$0xff] %vm646, %v600
  %648 = vst.msk [vmem:[#allocation2 + $0x8] sm:$0xff] %vm646, %v601
  %649 = vst.msk [vmem:[#allocation2 + $0x10] sm:$0xff] %vm646, %v602
  %650 = vst.msk [vmem:[#allocation2 + $0x18] sm:$0xff] %vm646, %v603
  %651 = vst.msk [vmem:[#allocation2 + $0x20] sm:$0xff] %vm646, %v604
  %652 = vst.msk [vmem:[#allocation2 + $0x28] sm:$0xff] %vm646, %v605
  %653 = vst.msk [vmem:[#allocation2 + $0x30] sm:$0xff] %vm646, %v606
  %654 = vst.msk [vmem:[#allocation2 + $0x38] sm:$0xff] %vm646, %v607
  %655 = vst.msk [vmem:[#allocation2 + $0x40] sm:$0xff] %vm646, %v608
  %656 = vst.msk [vmem:[#allocation2 + $0x48] sm:$0xff] %vm646, %v609
  %657 = vst.msk [vmem:[#allocation2 + $0x50] sm:$0xff] %vm646, %v610
  %658 = vst.msk [vmem:[#allocation2 + $0x58] sm:$0xff] %vm646, %v611
  %659 = vst.msk [vmem:[#allocation2 + $0x60] sm:$0xff] %vm646, %v612
  %660 = vst.msk [vmem:[#allocation2 + $0x68] sm:$0xff] %vm646, %v613
  %661 = vst.msk [vmem:[#allocation2 + $0x70] sm:$0xff] %vm646, %v614
  %662 = vst.msk [vmem:[#allocation2 + $0x78] sm:$0xff] %vm646, %v615
  %663 = vst.msk [vmem:[#allocation2 + $0x80] sm:$0xff] %vm646, %v616
  %664 = vst.msk [vmem:[#allocation2 + $0x88] sm:$0xff] %vm646, %v617
  %665 = vst.msk [vmem:[#allocation2 + $0x90] sm:$0xff] %vm646, %v618
  %666 = vst.msk [vmem:[#allocation2 + $0x98] sm:$0xff] %vm646, %v619
  %667 = vst.msk [vmem:[#allocation2 + $0xa0] sm:$0xff] %vm646, %v620
  %668 = vst.msk [vmem:[#allocation2 + $0xa8] sm:$0xff] %vm646, %v621
  %669 = vst.msk [vmem:[#allocation2 + $0xb0] sm:$0xff] %vm646, %v622
  %670 = vst.msk [vmem:[#allocation2 + $0xb8] sm:$0xff] %vm646, %v623
  %671 = vst.msk [vmem:[#allocation2 + $0xc0] sm:$0xff] %vm646, %v624
  %672 = vst.msk [vmem:[#allocation2 + $0xc8] sm:$0xff] %vm646, %v625
  %673 = vst.msk [vmem:[#allocation2 + $0xd0] sm:$0xff] %vm646, %v626
  %674 = vst.msk [vmem:[#allocation2 + $0xd8] sm:$0xff] %vm646, %v627
  %675 = vst.msk [vmem:[#allocation2 + $0xe0] sm:$0xff] %vm646, %v628
  %676 = vst.msk [vmem:[#allocation2 + $0xe8] sm:$0xff] %vm646, %v629
  %677 = vst.msk [vmem:[#allocation2 + $0xf0] sm:$0xff] %vm646, %v630
  %678 = vst.msk [vmem:[#allocation2 + $0xf8] sm:$0xff] %vm646, %v631
  %679 = vst.msk [vmem:[#allocation2 + $0x100] sm:$0xff] %vm646, %v632
  %680 = vst.msk [vmem:[#allocation2 + $0x108] sm:$0xff] %vm646, %v633
  %681 = vst.msk [vmem:[#allocation2 + $0x110] sm:$0xff] %vm646, %v634
  %682 = vst.msk [vmem:[#allocation2 + $0x118] sm:$0xff] %vm646, %v635
  %683 = vst.msk [vmem:[#allocation2 + $0x120] sm:$0xff] %vm646, %v636
  %684 = vst.msk [vmem:[#allocation2 + $0x128] sm:$0xff] %vm646, %v637
  %685 = vst.msk [vmem:[#allocation2 + $0x130] sm:$0xff] %vm646, %v638
  %686 = vst.msk [vmem:[#allocation2 + $0x138] sm:$0xff] %vm646, %v639
  %687 = vst.msk [vmem:[#allocation2 + $0x140] sm:$0xff] %vm646, %v640
  %688 = vst.msk [vmem:[#allocation2 + $0x148] sm:$0xff] %vm646, %v641
  %689 = vst.msk [vmem:[#allocation2 + $0x150] sm:$0xff] %vm646, %v642
  %690 = vst.msk [vmem:[#allocation2 + $0x158] sm:$0xff] %vm646, %v643
  %691 = vst.msk [vmem:[#allocation2 + $0x160] sm:$0xff] %vm646, %v644
  %vm692 = vcmask 257024
  %693 = vst.msk [vmem:[#allocation2 + $0x168] sm:$0xf] %vm692, %v645
  %v694 = vld [vmem:[#allocation2] sm:$0xff]
  %v695 = vld [vmem:[#allocation2 + $0x8] sm:$0xf]
  %v696 = vld [vmem:[#allocation2 + $0xe] sm:$0xff]
  %v697 = vld [vmem:[#allocation2 + $0x16] sm:$0xf]
  %v698 = vld [vmem:[#allocation2 + $0x2] sm:$0xff]
  %v699 = vld [vmem:[#allocation2 + $0xa] sm:$0xf]
  %v700 = vld [vmem:[#allocation2 + $0x1c] sm:$0xff]
  %v701 = vld [vmem:[#allocation2 + $0x24] sm:$0xf]
  %v702 = vld [vmem:[#allocation2 + $0x2a] sm:$0xff]
  %v703 = vld [vmem:[#allocation2 + $0x32] sm:$0xf]
  %v704 = vld [vmem:[#allocation2 + $0x1e] sm:$0xff]
  %v705 = vld [vmem:[#allocation2 + $0x26] sm:$0xf]
  %v706 = vld [vmem:[#allocation2 + $0x38] sm:$0xff]
  %v707 = vld [vmem:[#allocation2 + $0x40] sm:$0xf]
  %v708 = vld [vmem:[#allocation2 + $0x46] sm:$0xff]
  %v709 = vld [vmem:[#allocation2 + $0x4e] sm:$0xf]
  %v710 = vld [vmem:[#allocation2 + $0x3a] sm:$0xff]
  %v711 = vld [vmem:[#allocation2 + $0x42] sm:$0xf]
  %714 = vrot.lane.b32.xlu0 %v696, 32
  %v715 = vpop.permute.xlu0 %714
  %716 = vrot.lane.b32.xlu0 %v697, 32
  %v717 = vpop.permute.xlu0 %716
  %722 = vrot.lane.b32.xlu0 %v698, 64
  %v723 = vpop.permute.xlu0 %722
  %724 = vrot.lane.b32.xlu0 %v699, 64
  %v725 = vpop.permute.xlu0 %724
  %730 = vrot.lane.b32.xlu0 %v700, 96
  %v731 = vpop.permute.xlu0 %730
  %732 = vrot.lane.b32.xlu0 %v701, 96
  %v733 = vpop.permute.xlu0 %732
  %738 = vrot.lane.b32.xlu0 %v704, 32
  %v739 = vpop.permute.xlu0 %738
  %740 = vrot.lane.b32.xlu0 %v705, 32
  %v741 = vpop.permute.xlu0 %740
  %746 = vrot.lane.b32.xlu0 %v706, 64
  %v747 = vpop.permute.xlu0 %746
  %748 = vrot.lane.b32.xlu0 %v707, 64
  %v749 = vpop.permute.xlu0 %748
  %754 = vrot.lane.b32.xlu0 %v708, 96
  %v755 = vpop.permute.xlu0 %754
  %756 = vrot.lane.b32.xlu0 %v709, 96
  %v757 = vpop.permute.xlu0 %756
  %v760 = vsel %vm646, %v694, %v715
  %v761 = vsel %vm646, %v695, %v717
  %vm762 = vcmask 523264
  %v763 = vsel %vm762, %v760, %v723
  %v764 = vsel %vm762, %v761, %v725
  %vm765 = vcmask 785408
  %v766 = vsel %vm765, %v763, %v731
  %v767 = vsel %vm765, %v764, %v733
  %v768 = vsel %vm646, %v702, %v739
  %v769 = vsel %vm646, %v703, %v741
  %v770 = vsel %vm762, %v768, %v747
  %v771 = vsel %vm762, %v769, %v749
  %v772 = vsel %vm765, %v770, %v755
  %v773 = vsel %vm765, %v771, %v757
  %v774 = vpack.c.bf16 %v767, %v766
  %v775 = vpack.c.bf16 %v773, %v772
  %v776 = vpack.c.bf16 %v711, %v710
  %v777 = vld [vmem:[%s3] sm:$0xf]
  %v778 = vld [vmem:[%s3 + $0x4] sm:$0xf]
  %v779 = vld [vmem:[%s3 + $0x8] sm:$0xf]
  %v780 = vld [vmem:[%s3 + $0xc] sm:$0xf]
  %v781 = vld [vmem:[%s3 + $0x10] sm:$0xf]
  %v782 = vld [vmem:[%s3 + $0x14] sm:$0xf]
  %v783 = vld [vmem:[%s3 + $0x18] sm:$0xf]
  %v784 = vld [vmem:[%s3 + $0x1c] sm:$0xf]
  %v785 = vld [vmem:[%s3 + $0x20] sm:$0xf]
  %v786 = vld [vmem:[%s3 + $0x24] sm:$0xf]
  %v787 = vld [vmem:[%s3 + $0x28] sm:$0xf]
  %v788 = vld [vmem:[%s3 + $0x2c] sm:$0xf]
  %v789 = vld [vmem:[%s3 + $0x30] sm:$0xf]
  %v790 = vld [vmem:[%s3 + $0x34] sm:$0xf]
  %v791 = vld [vmem:[%s3 + $0x38] sm:$0xf]
  %v792 = vld [vmem:[%s3 + $0x3c] sm:$0xf]
  %v793 = vld [vmem:[%s3 + $0x40] sm:$0xf]
  %v794 = vld [vmem:[%s3 + $0x44] sm:$0xf]
  %v795 = vld [vmem:[%s3 + $0x48] sm:$0xf]
  %v796 = vld [vmem:[%s3 + $0x4c] sm:$0xf]
  %v797 = vld [vmem:[%s3 + $0x50] sm:$0xf]
  %v798 = vld [vmem:[%s3 + $0x54] sm:$0xf]
  %v799 = vld [vmem:[%s3 + $0x58] sm:$0xf]
  %v800 = vld [vmem:[%s3 + $0x5c] sm:$0xf]
  %v801 = vld [vmem:[%s3 + $0x60] sm:$0xf]
  %v802 = vld [vmem:[%s3 + $0x64] sm:$0xf]
  %v803 = vld [vmem:[%s3 + $0x68] sm:$0xf]
  %v804 = vld [vmem:[%s3 + $0x6c] sm:$0xf]
  %v805 = vld [vmem:[%s3 + $0x70] sm:$0xf]
  %v806 = vld [vmem:[%s3 + $0x74] sm:$0xf]
  %v807 = vld [vmem:[%s3 + $0x78] sm:$0xf]
  %v808 = vld [vmem:[%s3 + $0x7c] sm:$0xf]
  %v809 = vld [vmem:[%s3 + $0x80] sm:$0xf]
  %v810 = vld [vmem:[%s3 + $0x84] sm:$0xf]
  %v811 = vld [vmem:[%s3 + $0x88] sm:$0xf]
  %v812 = vld [vmem:[%s3 + $0x8c] sm:$0xf]
  %v849 = vunpack.c.l.b16 %v777
  %v850 = vunpack.c.l.b16 %v778
  %v851 = vunpack.c.l.b16 %v779
  %v852 = vunpack.c.l.b16 %v780
  %v853 = vunpack.c.l.b16 %v781
  %v854 = vunpack.c.l.b16 %v782
  %v855 = vunpack.c.l.b16 %v783
  %v856 = vunpack.c.l.b16 %v784
  %v857 = vunpack.c.l.b16 %v785
  %v858 = vunpack.c.l.b16 %v786
  %v859 = vunpack.c.l.b16 %v787
  %v860 = vunpack.c.l.b16 %v788
  %v861 = vunpack.c.l.b16 %v789
  %v862 = vunpack.c.l.b16 %v790
  %v863 = vunpack.c.l.b16 %v791
  %v864 = vunpack.c.l.b16 %v792
  %v865 = vunpack.c.l.b16 %v793
  %v866 = vunpack.c.l.b16 %v794
  %v867 = vunpack.c.l.b16 %v795
  %v868 = vunpack.c.l.b16 %v796
  %v869 = vunpack.c.l.b16 %v797
  %v870 = vunpack.c.l.b16 %v798
  %v871 = vunpack.c.l.b16 %v799
  %v872 = vunpack.c.l.b16 %v800
  %v873 = vunpack.c.l.b16 %v801
  %v874 = vunpack.c.l.b16 %v802
  %v875 = vunpack.c.l.b16 %v803
  %v876 = vunpack.c.l.b16 %v804
  %v877 = vunpack.c.l.b16 %v805
  %v878 = vunpack.c.l.b16 %v806
  %v879 = vunpack.c.l.b16 %v807
  %v880 = vunpack.c.l.b16 %v808
  %v881 = vunpack.c.l.b16 %v809
  %v882 = vunpack.c.l.b16 %v810
  %v883 = vunpack.c.l.b16 %v811
  %v884 = vunpack.c.l.b16 %v812
  %v885 = vpack.c.b16 %v850, %v849
  %v886 = vpack.c.b16 %v852, %v851
  %v887 = vpack.c.b16 %v854, %v853
  %v888 = vpack.c.b16 %v856, %v855
  %v889 = vpack.c.b16 %v858, %v857
  %v890 = vpack.c.b16 %v860, %v859
  %v891 = vpack.c.b16 %v862, %v861
  %v892 = vpack.c.b16 %v864, %v863
  %v893 = vpack.c.b16 %v866, %v865
  %v894 = vpack.c.b16 %v868, %v867
  %v895 = vpack.c.b16 %v870, %v869
  %v896 = vpack.c.b16 %v872, %v871
  %v897 = vpack.c.b16 %v874, %v873
  %v898 = vpack.c.b16 %v876, %v875
  %v899 = vpack.c.b16 %v878, %v877
  %v900 = vpack.c.b16 %v880, %v879
  %v901 = vpack.c.b16 %v882, %v881
  %v902 = vpack.c.b16 %v884, %v883
  %v922 = vsel %vm646, %v776, 0
  %924 = vmatprep.subr.bf16.mxu0 0
  %925 = vmatpush1.bf16.msra.mxu0 %v885
  %926 = vmatprep.subr.bf16.mxu0 0
  %927 = vmatpush1.bf16.msra.mxu0 %v886
  %928 = vmatprep.subr.bf16.mxu0 0
  %929 = vmatpush1.bf16.msra.mxu0 %v887
  %930 = vmatprep.subr.bf16.mxu0 0
  %931 = vmatpush1.bf16.msra.mxu0 %v888
  %932 = vmatprep.subr.bf16.mxu0 0
  %933 = vmatpush1.bf16.msra.mxu0 %v889
  %934 = vmatprep.subr.bf16.mxu0 0
  %935 = vmatpush1.bf16.msra.mxu0 %v890
  %936 = vmatprep.subr.bf16.mxu0 0
  %937 = vmatpush1.bf16.msra.mxu0 %v891
  %938 = vmatprep.subr.bf16.mxu0 0
  %939 = vmatpush1.bf16.msra.mxu0 %v892
  %940 = vmatprep.subr.bf16.mxu0 0
  %941 = vmatpush1.bf16.msra.mxu0 %v893
  %942 = vmatprep.subr.bf16.mxu0 0
  %943 = vmatpush1.bf16.msra.mxu0 %v894
  %944 = vmatprep.subr.bf16.mxu0 0
  %945 = vmatpush1.bf16.msra.mxu0 %v895
  %946 = vmatprep.subr.bf16.mxu0 0
  %947 = vmatpush1.bf16.msra.mxu0 %v896
  %948 = vmatprep.subr.bf16.mxu0 0
  %949 = vmatpush1.bf16.msra.mxu0 %v897
  %950 = vmatprep.subr.bf16.mxu0 0
  %951 = vmatpush1.bf16.msra.mxu0 %v898
  %952 = vmatprep.subr.bf16.mxu0 0
  %953 = vmatpush1.bf16.msra.mxu0 %v899
  %954 = vmatprep.subr.bf16.mxu0 0
  %955 = vmatpush1.bf16.msra.mxu0 %v900
  %956 = vmatprep.mubr.bf16.mxu0 %v775
  %957 = vmatmul.mubr.bf16.gmra.mrb[0].mxu0 %v774
  %v958 = vpop.f32.mrb[0].mxu0
  %v959 = vadd.f32 0.0, %v958
  %v960 = vpop.f32.mrb[0].mxu0
  %v961 = vpop.f32.mrb[0].mxu0
  %v962 = vadd.f32 0.0, %v961
  %v963 = vpop.f32.mrb[0].mxu0
  %964 = vdwg.mxu0
  %965 = vmatprep.subr.bf16.mxu0 0
  %966 = vmatpush1.bf16.msra.mxu0 %v901
  %967 = vmatprep.subr.bf16.mxu0 0
  %968 = vmatpush1.bf16.msra.mxu0 %v902
  %969 = vmatprep.subr.bf16.mxu0 0
  %970 = vmatpush1.bf16.msra.mxu0 0
  %971 = vmatprep.subr.bf16.mxu0 0
  %972 = vmatpush1.bf16.msra.mxu0 0
  %973 = vmatprep.subr.bf16.mxu0 0
  %974 = vmatpush1.bf16.msra.mxu0 0
  %975 = vmatprep.subr.bf16.mxu0 0
  %976 = vmatpush1.bf16.msra.mxu0 0
  %977 = vmatprep.subr.bf16.mxu0 0
  %978 = vmatpush1.bf16.msra.mxu0 0
  %979 = vmatprep.subr.bf16.mxu0 0
  %980 = vmatpush1.bf16.msra.mxu0 0
  %981 = vmatprep.subr.bf16.mxu0 0
  %982 = vmatpush1.bf16.msra.mxu0 0
  %983 = vmatprep.subr.bf16.mxu0 0
  %984 = vmatpush1.bf16.msra.mxu0 0
  %985 = vmatprep.subr.bf16.mxu0 0
  %986 = vmatpush1.bf16.msra.mxu0 0
  %987 = vmatprep.subr.bf16.mxu0 0
  %988 = vmatpush1.bf16.msra.mxu0 0
  %989 = vmatprep.subr.bf16.mxu0 0
  %990 = vmatpush1.bf16.msra.mxu0 0
  %991 = vmatprep.subr.bf16.mxu0 0
  %992 = vmatpush1.bf16.msra.mxu0 0
  %993 = vmatprep.subr.bf16.mxu0 0
  %994 = vmatpush1.bf16.msra.mxu0 0
  %995 = vmatprep.subr.bf16.mxu0 0
  %996 = vmatpush1.bf16.msra.mxu0 0
  %997 = vmatprep.mubr.bf16.mxu0 0
  %998 = vmatmul.mubr.bf16.gmra.mrb[0].mxu0 %v922
  %v999 = vpop.f32.mrb[0].mxu0
  %v1000 = vadd.f32 %v959, %v999
  %v1001 = vpop.f32.mrb[0].mxu0
  %v1002 = vpop.f32.mrb[0].mxu0
  %v1003 = vadd.f32 %v962, %v1002
  %v1004 = vpop.f32.mrb[0].mxu0
  %1005 = vdwg.mxu0
  %1006 = vst.msk [vmem:[#allocation3] sm:$0xff] %vm646, %v1000
  %1007 = vst.msk [vmem:[#allocation3 + $0x8] sm:$0xf] %vm692, %v1003
  %v1008 = vld [vmem:[#allocation2 + $0x38] sm:$0xff]
  %v1009 = vld [vmem:[#allocation2 + $0x40] sm:$0xf]
  %v1010 = vld [vmem:[#allocation2 + $0x46] sm:$0xff]
  %v1011 = vld [vmem:[#allocation2 + $0x4e] sm:$0xf]
  %v1012 = vld [vmem:[#allocation2 + $0x3a] sm:$0xff]
  %v1013 = vld [vmem:[#allocation2 + $0x42] sm:$0xf]
  %v1014 = vld [vmem:[#allocation2 + $0x54] sm:$0xff]
  %v1015 = vld [vmem:[#allocation2 + $0x5c] sm:$0xf]
  %v1016 = vld [vmem:[#allocation2 + $0x62] sm:$0xff]
  %v1017 = vld [vmem:[#allocation2 + $0x6a] sm:$0xf]
  %v1018 = vld [vmem:[#allocation2 + $0x56] sm:$0xff]
  %v1019 = vld [vmem:[#allocation2 + $0x5e] sm:$0xf]
  %v1020 = vld [vmem:[#allocation2 + $0x70] sm:$0xff]
  %v1021 = vld [vmem:[#allocation2 + $0x78] sm:$0xf]
  %v1022 = vld [vmem:[#allocation2 + $0x7e] sm:$0xff]
  %v1023 = vld [vmem:[#allocation2 + $0x86] sm:$0xf]
  %v1024 = vld [vmem:[#allocation2 + $0x72] sm:$0xff]
  %v1025 = vld [vmem:[#allocation2 + $0x7a] sm:$0xf]
  %1028 = vrot.lane.b32.xlu0 %v1010, 32
  %v1029 = vpop.permute.xlu0 %1028
  %1030 = vrot.lane.b32.xlu0 %v1011, 32
  %v1031 = vpop.permute.xlu0 %1030
  %1036 = vrot.lane.b32.xlu0 %v1012, 64
  %v1037 = vpop.permute.xlu0 %1036
  %1038 = vrot.lane.b32.xlu0 %v1013, 64
  %v1039 = vpop.permute.xlu0 %1038
  %1044 = vrot.lane.b32.xlu0 %v1014, 96
  %v1045 = vpop.permute.xlu0 %1044
  %1046 = vrot.lane.b32.xlu0 %v1015, 96
  %v1047 = vpop.permute.xlu0 %1046
  %1052 = vrot.lane.b32.xlu0 %v1018, 32
  %v1053 = vpop.permute.xlu0 %1052
  %1054 = vrot.lane.b32.xlu0 %v1019, 32
  %v1055 = vpop.permute.xlu0 %1054
  %1060 = vrot.lane.b32.xlu0 %v1020, 64
  %v1061 = vpop.permute.xlu0 %1060
  %1062 = vrot.lane.b32.xlu0 %v1021, 64
  %v1063 = vpop.permute.xlu0 %1062
  %1068 = vrot.lane.b32.xlu0 %v1022, 96
  %v1069 = vpop.permute.xlu0 %1068
  %1070 = vrot.lane.b32.xlu0 %v1023, 96
  %v1071 = vpop.permute.xlu0 %1070
  %v1074 = vsel %vm646, %v1008, %v1029
  %v1075 = vsel %vm646, %v1009, %v1031
  %v1076 = vsel %vm762, %v1074, %v1037
  %v1077 = vsel %vm762, %v1075, %v1039
  %v1078 = vsel %vm765, %v1076, %v1045
  %v1079 = vsel %vm765, %v1077, %v1047
  %v1080 = vsel %vm646, %v1016, %v1053
  %v1081 = vsel %vm646, %v1017, %v1055
  %v1082 = vsel %vm762, %v1080, %v1061
  %v1083 = vsel %vm762, %v1081, %v1063
  %v1084 = vsel %vm765, %v1082, %v1069
  %v1085 = vsel %vm765, %v1083, %v1071
  %v1086 = vpack.c.bf16 %v1079, %v1078
  %v1087 = vpack.c.bf16 %v1085, %v1084
  %v1088 = vpack.c.bf16 %v1025, %v1024
  %v1089 = vld [vmem:[%s3] sm:$0xf]
  %v1090 = vld [vmem:[%s3 + $0x4] sm:$0xf]
  %v1091 = vld [vmem:[%s3 + $0x8] sm:$0xf]
  %v1092 = vld [vmem:[%s3 + $0xc] sm:$0xf]
  %v1093 = vld [vmem:[%s3 + $0x10] sm:$0xf]
  %v1094 = vld [vmem:[%s3 + $0x14] sm:$0xf]
  %v1095 = vld [vmem:[%s3 + $0x18] sm:$0xf]
  %v1096 = vld [vmem:[%s3 + $0x1c] sm:$0xf]
  %v1097 = vld [vmem:[%s3 + $0x20] sm:$0xf]
  %v1098 = vld [vmem:[%s3 + $0x24] sm:$0xf]
  %v1099 = vld [vmem:[%s3 + $0x28] sm:$0xf]
  %v1100 = vld [vmem:[%s3 + $0x2c] sm:$0xf]
  %v1101 = vld [vmem:[%s3 + $0x30] sm:$0xf]
  %v1102 = vld [vmem:[%s3 + $0x34] sm:$0xf]
  %v1103 = vld [vmem:[%s3 + $0x38] sm:$0xf]
  %v1104 = vld [vmem:[%s3 + $0x3c] sm:$0xf]
  %v1105 = vld [vmem:[%s3 + $0x40] sm:$0xf]
  %v1106 = vld [vmem:[%s3 + $0x44] sm:$0xf]
  %v1107 = vld [vmem:[%s3 + $0x48] sm:$0xf]
  %v1108 = vld [vmem:[%s3 + $0x4c] sm:$0xf]
  %v1109 = vld [vmem:[%s3 + $0x50] sm:$0xf]
  %v1110 = vld [vmem:[%s3 + $0x54] sm:$0xf]
  %v1111 = vld [vmem:[%s3 + $0x58] sm:$0xf]
  %v1112 = vld [vmem:[%s3 + $0x5c] sm:$0xf]
  %v1113 = vld [vmem:[%s3 + $0x60] sm:$0xf]
  %v1114 = vld [vmem:[%s3 + $0x64] sm:$0xf]
  %v1115 = vld [vmem:[%s3 + $0x68] sm:$0xf]
  %v1116 = vld [vmem:[%s3 + $0x6c] sm:$0xf]
  %v1117 = vld [vmem:[%s3 + $0x70] sm:$0xf]
  %v1118 = vld [vmem:[%s3 + $0x74] sm:$0xf]
  %v1119 = vld [vmem:[%s3 + $0x78] sm:$0xf]
  %v1120 = vld [vmem:[%s3 + $0x7c] sm:$0xf]
  %v1121 = vld [vmem:[%s3 + $0x80] sm:$0xf]
  %v1122 = vld [vmem:[%s3 + $0x84] sm:$0xf]
  %v1123 = vld [vmem:[%s3 + $0x88] sm:$0xf]
  %v1124 = vld [vmem:[%s3 + $0x8c] sm:$0xf]
  %v1161 = vunpack.c.l.b16 %v1089
  %v1162 = vunpack.c.l.b16 %v1090
  %v1163 = vunpack.c.l.b16 %v1091
  %v1164 = vunpack.c.l.b16 %v1092
  %v1165 = vunpack.c.l.b16 %v1093
  %v1166 = vunpack.c.l.b16 %v1094
  %v1167 = vunpack.c.l.b16 %v1095
  %v1168 = vunpack.c.l.b16 %v1096
  %v1169 = vunpack.c.l.b16 %v1097
  %v1170 = vunpack.c.l.b16 %v1098
  %v1171 = vunpack.c.l.b16 %v1099
  %v1172 = vunpack.c.l.b16 %v1100
  %v1173 = vunpack.c.l.b16 %v1101
  %v1174 = vunpack.c.l.b16 %v1102
  %v1175 = vunpack.c.l.b16 %v1103
  %v1176 = vunpack.c.l.b16 %v1104
  %v1177 = vunpack.c.l.b16 %v1105
  %v1178 = vunpack.c.l.b16 %v1106
  %v1179 = vunpack.c.l.b16 %v1107
  %v1180 = vunpack.c.l.b16 %v1108
  %v1181 = vunpack.c.l.b16 %v1109
  %v1182 = vunpack.c.l.b16 %v1110
  %v1183 = vunpack.c.l.b16 %v1111
  %v1184 = vunpack.c.l.b16 %v1112
  %v1185 = vunpack.c.l.b16 %v1113
  %v1186 = vunpack.c.l.b16 %v1114
  %v1187 = vunpack.c.l.b16 %v1115
  %v1188 = vunpack.c.l.b16 %v1116
  %v1189 = vunpack.c.l.b16 %v1117
  %v1190 = vunpack.c.l.b16 %v1118
  %v1191 = vunpack.c.l.b16 %v1119
  %v1192 = vunpack.c.l.b16 %v1120
  %v1193 = vunpack.c.l.b16 %v1121
  %v1194 = vunpack.c.l.b16 %v1122
  %v1195 = vunpack.c.l.b16 %v1123
  %v1196 = vunpack.c.l.b16 %v1124
  %v1197 = vpack.c.b16 %v1162, %v1161
  %v1198 = vpack.c.b16 %v1164, %v1163
  %v1199 = vpack.c.b16 %v1166, %v1165
  %v1200 = vpack.c.b16 %v1168, %v1167
  %v1201 = vpack.c.b16 %v1170, %v1169
  %v1202 = vpack.c.b16 %v1172, %v1171
  %v1203 = vpack.c.b16 %v1174, %v1173
  %v1204 = vpack.c.b16 %v1176, %v1175
  %v1205 = vpack.c.b16 %v1178, %v1177
  %v1206 = vpack.c.b16 %v1180, %v1179
  %v1207 = vpack.c.b16 %v1182, %v1181
  %v1208 = vpack.c.b16 %v1184, %v1183
  %v1209 = vpack.c.b16 %v1186, %v1185
  %v1210 = vpack.c.b16 %v1188, %v1187
  %v1211 = vpack.c.b16 %v1190, %v1189
  %v1212 = vpack.c.b16 %v1192, %v1191
  %v1213 = vpack.c.b16 %v1194, %v1193
  %v1214 = vpack.c.b16 %v1196, %v1195
  %v1234 = vsel %vm646, %v1088, 0
  %1236 = vmatprep.subr.bf16.mxu0 0
  %1237 = vmatpush1.bf16.msra.mxu0 %v1197
  %1238 = vmatprep.subr.bf16.mxu0 0
  %1239 = vmatpush1.bf16.msra.mxu0 %v1198
  %1240 = vmatprep.subr.bf16.mxu0 0
  %1241 = vmatpush1.bf16.msra.mxu0 %v1199
  %1242 = vmatprep.subr.bf16.mxu0 0
  %1243 = vmatpush1.bf16.msra.mxu0 %v1200
  %1244 = vmatprep.subr.bf16.mxu0 0
  %1245 = vmatpush1.bf16.msra.mxu0 %v1201
  %1246 = vmatprep.subr.bf16.mxu0 0
  %1247 = vmatpush1.bf16.msra.mxu0 %v1202
  %1248 = vmatprep.subr.bf16.mxu0 0
  %1249 = vmatpush1.bf16.msra.mxu0 %v1203
  %1250 = vmatprep.subr.bf16.mxu0 0
  %1251 = vmatpush1.bf16.msra.mxu0 %v1204
  %1252 = vmatprep.subr.bf16.mxu0 0
  %1253 = vmatpush1.bf16.msra.mxu0 %v1205
  %1254 = vmatprep.subr.bf16.mxu0 0
  %1255 = vmatpush1.bf16.msra.mxu0 %v1206
  %1256 = vmatprep.subr.bf16.mxu0 0
  %1257 = vmatpush1.bf16.msra.mxu0 %v1207
  %1258 = vmatprep.subr.bf16.mxu0 0
  %1259 = vmatpush1.bf16.msra.mxu0 %v1208
  %1260 = vmatprep.subr.bf16.mxu0 0
  %1261 = vmatpush1.bf16.msra.mxu0 %v1209
  %1262 = vmatprep.subr.bf16.mxu0 0
  %1263 = vmatpush1.bf16.msra.mxu0 %v1210
  %1264 = vmatprep.subr.bf16.mxu0 0
  %1265 = vmatpush1.bf16.msra.mxu0 %v1211
  %1266 = vmatprep.subr.bf16.mxu0 0
  %1267 = vmatpush1.bf16.msra.mxu0 %v1212
  %1268 = vmatprep.mubr.bf16.mxu0 %v1087
  %1269 = vmatmul.mubr.bf16.gmra.mrb[0].mxu0 %v1086
  %v1270 = vpop.f32.mrb[0].mxu0
  %v1271 = vadd.f32 0.0, %v1270
  %v1272 = vpop.f32.mrb[0].mxu0
  %v1273 = vpop.f32.mrb[0].mxu0
  %v1274 = vadd.f32 0.0, %v1273
  %v1275 = vpop.f32.mrb[0].mxu0
  %1276 = vdwg.mxu0
  %1277 = vmatprep.subr.bf16.mxu0 0
  %1278 = vmatpush1.bf16.msra.mxu0 %v1213
  %1279 = vmatprep.subr.bf16.mxu0 0
  %1280 = vmatpush1.bf16.msra.mxu0 %v1214
  %1281 = vmatprep.subr.bf16.mxu0 0
  %1282 = vmatpush1.bf16.msra.mxu0 0
  %1283 = vmatprep.subr.bf16.mxu0 0
  %1284 = vmatpush1.bf16.msra.mxu0 0
  %1285 = vmatprep.subr.bf16.mxu0 0
  %1286 = vmatpush1.bf16.msra.mxu0 0
  %1287 = vmatprep.subr.bf16.mxu0 0
  %1288 = vmatpush1.bf16.msra.mxu0 0
  %1289 = vmatprep.subr.bf16.mxu0 0
  %1290 = vmatpush1.bf16.msra.mxu0 0
  %1291 = vmatprep.subr.bf16.mxu0 0
  %1292 = vmatpush1.bf16.msra.mxu0 0
  %1293 = vmatprep.subr.bf16.mxu0 0
  %1294 = vmatpush1.bf16.msra.mxu0 0
  %1295 = vmatprep.subr.bf16.mxu0 0
  %1296 = vmatpush1.bf16.msra.mxu0 0
  %1297 = vmatprep.subr.bf16.mxu0 0
  %1298 = vmatpush1.bf16.msra.mxu0 0
  %1299 = vmatprep.subr.bf16.mxu0 0
  %1300 = vmatpush1.bf16.msra.mxu0 0
  %1301 = vmatprep.subr.bf16.mxu0 0
  %1302 = vmatpush1.bf16.msra.mxu0 0
  %1303 = vmatprep.subr.bf16.mxu0 0
  %1304 = vmatpush1.bf16.msra.mxu0 0
  %1305 = vmatprep.subr.bf16.mxu0 0
  %1306 = vmatpush1.bf16.msra.mxu0 0
  %1307 = vmatprep.subr.bf16.mxu0 0
  %1308 = vmatpush1.bf16.msra.mxu0 0
  %1309 = vmatprep.mubr.bf16.mxu0 0
  %1310 = vmatmul.mubr.bf16.gmra.mrb[0].mxu0 %v1234
  %v1311 = vpop.f32.mrb[0].mxu0
  %v1312 = vadd.f32 %v1271, %v1311
  %v1313 = vpop.f32.mrb[0].mxu0
  %v1314 = vpop.f32.mrb[0].mxu0
  %v1315 = vadd.f32 %v1274, %v1314
  %v1316 = vpop.f32.mrb[0].mxu0
  %1317 = vdwg.mxu0
  %1318 = vst.msk [vmem:[#allocation3 + $0xc] sm:$0xff] %vm646, %v1312
  %1319 = vst.msk [vmem:[#allocation3 + $0x14] sm:$0xf] %vm692, %v1315
  %v1320 = vld [vmem:[#allocation2 + $0x70] sm:$0xff]
  %v1321 = vld [vmem:[#allocation2 + $0x78] sm:$0xf]
  %v1322 = vld [vmem:[#allocation2 + $0x7e] sm:$0xff]
  %v1323 = vld [vmem:[#allocation2 + $0x86] sm:$0xf]
  %v1324 = vld [vmem:[#allocation2 + $0x72] sm:$0xff]
  %v1325 = vld [vmem:[#allocation2 + $0x7a] sm:$0xf]
  %v1326 = vld [vmem:[#allocation2 + $0x8c] sm:$0xff]
  %v1327 = vld [vmem:[#allocation2 + $0x94] sm:$0xf]
  %v1328 = vld [vmem:[#allocation2 + $0x9a] sm:$0xff]
  %v1329 = vld [vmem:[#allocation2 + $0xa2] sm:$0xf]
  %v1330 = vld [vmem:[#allocation2 + $0x8e] sm:$0xff]
  %v1331 = vld [vmem:[#allocation2 + $0x96] sm:$0xf]
  %v1332 = vld [vmem:[#allocation2 + $0xa8] sm:$0xff]
  %v1333 = vld [vmem:[#allocation2 + $0xb0] sm:$0xf]
  %v1334 = vld [vmem:[#allocation2 + $0xb6] sm:$0xff]
  %v1335 = vld [vmem:[#allocation2 + $0xbe] sm:$0xf]
  %v1336 = vld [vmem:[#allocation2 + $0xaa] sm:$0xff]
  %v1337 = vld [vmem:[#allocation2 + $0xb2] sm:$0xf]
  %1340 = vrot.lane.b32.xlu0 %v1322, 32
  %v1341 = vpop.permute.xlu0 %1340
  %1342 = vrot.lane.b32.xlu0 %v1323, 32
  %v1343 = vpop.permute.xlu0 %1342
  %1348 = vrot.lane.b32.xlu0 %v1324, 64
  %v1349 = vpop.permute.xlu0 %1348
  %1350 = vrot.lane.b32.xlu0 %v1325, 64
  %v1351 = vpop.permute.xlu0 %1350
  %1356 = vrot.lane.b32.xlu0 %v1326, 96
  %v1357 = vpop.permute.xlu0 %1356
  %1358 = vrot.lane.b32.xlu0 %v1327, 96
  %v1359 = vpop.permute.xlu0 %1358
  %1364 = vrot.lane.b32.xlu0 %v1330, 32
  %v1365 = vpop.permute.xlu0 %1364
  %1366 = vrot.lane.b32.xlu0 %v1331, 32
  %v1367 = vpop.permute.xlu0 %1366
  %1372 = vrot.lane.b32.xlu0 %v1332, 64
  %v1373 = vpop.permute.xlu0 %1372
  %1374 = vrot.lane.b32.xlu0 %v1333, 64
  %v1375 = vpop.permute.xlu0 %1374
  %1380 = vrot.lane.b32.xlu0 %v1334, 96
  %v1381 = vpop.permute.xlu0 %1380
  %1382 = vrot.lane.b32.xlu0 %v1335, 96
  %v1383 = vpop.permute.xlu0 %1382
  %v1386 = vsel %vm646, %v1320, %v1341
  %v1387 = vsel %vm646, %v1321, %v1343
  %v1388 = vsel %vm762, %v1386, %v1349
  %v1389 = vsel %vm762, %v1387, %v1351
  %v1390 = vsel %vm765, %v1388, %v1357
  %v1391 = vsel %vm765, %v1389, %v1359
  %v1392 = vsel %vm646, %v1328, %v1365
  %v1393 = vsel %vm646, %v1329, %v1367
  %v1394 = vsel %vm762, %v1392, %v1373
  %v1395 = vsel %vm762, %v1393, %v1375
  %v1396 = vsel %vm765, %v1394, %v1381
  %v1397 = vsel %vm765, %v1395, %v1383
  %v1398 = vpack.c.bf16 %v1391, %v1390
  %v1399 = vpack.c.bf16 %v1397, %v1396
  %v1400 = vpack.c.bf16 %v1337, %v1336
  %v1401 = vld [vmem:[%s3] sm:$0xf]
  %v1402 = vld [vmem:[%s3 + $0x4] sm:$0xf]
  %v1403 = vld [vmem:[%s3 + $0x8] sm:$0xf]
  %v1404 = vld [vmem:[%s3 + $0xc] sm:$0xf]
  %v1405 = vld [vmem:[%s3 + $0x10] sm:$0xf]
  %v1406 = vld [vmem:[%s3 + $0x14] sm:$0xf]
  %v1407 = vld [vmem:[%s3 + $0x18] sm:$0xf]
  %v1408 = vld [vmem:[%s3 + $0x1c] sm:$0xf]
  %v1409 = vld [vmem:[%s3 + $0x20] sm:$0xf]
  %v1410 = vld [vmem:[%s3 + $0x24] sm:$0xf]
  %v1411 = vld [vmem:[%s3 + $0x28] sm:$0xf]
  %v1412 = vld [vmem:[%s3 + $0x2c] sm:$0xf]
  %v1413 = vld [vmem:[%s3 + $0x30] sm:$0xf]
  %v1414 = vld [vmem:[%s3 + $0x34] sm:$0xf]
  %v1415 = vld [vmem:[%s3 + $0x38] sm:$0xf]
  %v1416 = vld [vmem:[%s3 + $0x3c] sm:$0xf]
  %v1417 = vld [vmem:[%s3 + $0x40] sm:$0xf]
  %v1418 = vld [vmem:[%s3 + $0x44] sm:$0xf]
  %v1419 = vld [vmem:[%s3 + $0x48] sm:$0xf]
  %v1420 = vld [vmem:[%s3 + $0x4c] sm:$0xf]
  %v1421 = vld [vmem:[%s3 + $0x50] sm:$0xf]
  %v1422 = vld [vmem:[%s3 + $0x54] sm:$0xf]
  %v1423 = vld [vmem:[%s3 + $0x58] sm:$0xf]
  %v1424 = vld [vmem:[%s3 + $0x5c] sm:$0xf]
  %v1425 = vld [vmem:[%s3 + $0x60] sm:$0xf]
  %v1426 = vld [vmem:[%s3 + $0x64] sm:$0xf]
  %v1427 = vld [vmem:[%s3 + $0x68] sm:$0xf]
  %v1428 = vld [vmem:[%s3 + $0x6c] sm:$0xf]
  %v1429 = vld [vmem:[%s3 + $0x70] sm:$0xf]
  %v1430 = vld [vmem:[%s3 + $0x74] sm:$0xf]
  %v1431 = vld [vmem:[%s3 + $0x78] sm:$0xf]
  %v1432 = vld [vmem:[%s3 + $0x7c] sm:$0xf]
  %v1433 = vld [vmem:[%s3 + $0x80] sm:$0xf]
  %v1434 = vld [vmem:[%s3 + $0x84] sm:$0xf]
  %v1435 = vld [vmem:[%s3 + $0x88] sm:$0xf]
  %v1436 = vld [vmem:[%s3 + $0x8c] sm:$0xf]
  %v1473 = vunpack.c.l.b16 %v1401
  %v1474 = vunpack.c.l.b16 %v1402
  %v1475 = vunpack.c.l.b16 %v1403
  %v1476 = vunpack.c.l.b16 %v1404
  %v1477 = vunpack.c.l.b16 %v1405
  %v1478 = vunpack.c.l.b16 %v1406
  %v1479 = vunpack.c.l.b16 %v1407
  %v1480 = vunpack.c.l.b16 %v1408
  %v1481 = vunpack.c.l.b16 %v1409
  %v1482 = vunpack.c.l.b16 %v1410
  %v1483 = vunpack.c.l.b16 %v1411
  %v1484 = vunpack.c.l.b16 %v1412
  %v1485 = vunpack.c.l.b16 %v1413
  %v1486 = vunpack.c.l.b16 %v1414
  %v1487 = vunpack.c.l.b16 %v1415
  %v1488 = vunpack.c.l.b16 %v1416
  %v1489 = vunpack.c.l.b16 %v1417
  %v1490 = vunpack.c.l.b16 %v1418
  %v1491 = vunpack.c.l.b16 %v1419
  %v1492 = vunpack.c.l.b16 %v1420
  %v1493 = vunpack.c.l.b16 %v1421
  %v1494 = vunpack.c.l.b16 %v1422
  %v1495 = vunpack.c.l.b16 %v1423
  %v1496 = vunpack.c.l.b16 %v1424
  %v1497 = vunpack.c.l.b16 %v1425
  %v1498 = vunpack.c.l.b16 %v1426
  %v1499 = vunpack.c.l.b16 %v1427
  %v1500 = vunpack.c.l.b16 %v1428
  %v1501 = vunpack.c.l.b16 %v1429
  %v1502 = vunpack.c.l.b16 %v1430
  %v1503 = vunpack.c.l.b16 %v1431
  %v1504 = vunpack.c.l.b16 %v1432
  %v1505 = vunpack.c.l.b16 %v1433
  %v1506 = vunpack.c.l.b16 %v1434
  %v1507 = vunpack.c.l.b16 %v1435
  %v1508 = vunpack.c.l.b16 %v1436
  %v1509 = vpack.c.b16 %v1474, %v1473
  %v1510 = vpack.c.b16 %v1476, %v1475
  %v1511 = vpack.c.b16 %v1478, %v1477
  %v1512 = vpack.c.b16 %v1480, %v1479
  %v1513 = vpack.c.b16 %v1482, %v1481
  %v1514 = vpack.c.b16 %v1484, %v1483
  %v1515 = vpack.c.b16 %v1486, %v1485
  %v1516 = vpack.c.b16 %v1488, %v1487
  %v1517 = vpack.c.b16 %v1490, %v1489
  %v1518 = vpack.c.b16 %v1492, %v1491
  %v1519 = vpack.c.b16 %v1494, %v1493
  %v1520 = vpack.c.b16 %v1496, %v1495
  %v1521 = vpack.c.b16 %v1498, %v1497
  %v1522 = vpack.c.b16 %v1500, %v1499
  %v1523 = vpack.c.b16 %v1502, %v1501
  %v1524 = vpack.c.b16 %v1504, %v1503
  %v1525 = vpack.c.b16 %v1506, %v1505
  %v1526 = vpack.c.b16 %v1508, %v1507
  %v1546 = vsel %vm646, %v1400, 0
  %1548 = vmatprep.subr.bf16.mxu0 0
  %1549 = vmatpush1.bf16.msra.mxu0 %v1509
  %1550 = vmatprep.subr.bf16.mxu0 0
  %1551 = vmatpush1.bf16.msra.mxu0 %v1510
  %1552 = vmatprep.subr.bf16.mxu0 0
  %1553 = vmatpush1.bf16.msra.mxu0 %v1511
  %1554 = vmatprep.subr.bf16.mxu0 0
  %1555 = vmatpush1.bf16.msra.mxu0 %v1512
  %1556 = vmatprep.subr.bf16.mxu0 0
  %1557 = vmatpush1.bf16.msra.mxu0 %v1513
  %1558 = vmatprep.subr.bf16.mxu0 0
  %1559 = vmatpush1.bf16.msra.mxu0 %v1514
  %1560 = vmatprep.subr.bf16.mxu0 0
  %1561 = vmatpush1.bf16.msra.mxu0 %v1515
  %1562 = vmatprep.subr.bf16.mxu0 0
  %1563 = vmatpush1.bf16.msra.mxu0 %v1516
  %1564 = vmatprep.subr.bf16.mxu0 0
  %1565 = vmatpush1.bf16.msra.mxu0 %v1517
  %1566 = vmatprep.subr.bf16.mxu0 0
  %1567 = vmatpush1.bf16.msra.mxu0 %v1518
  %1568 = vmatprep.subr.bf16.mxu0 0
  %1569 = vmatpush1.bf16.msra.mxu0 %v1519
  %1570 = vmatprep.subr.bf16.mxu0 0
  %1571 = vmatpush1.bf16.msra.mxu0 %v1520
  %1572 = vmatprep.subr.bf16.mxu0 0
  %1573 = vmatpush1.bf16.msra.mxu0 %v1521
  %1574 = vmatprep.subr.bf16.mxu0 0
  %1575 = vmatpush1.bf16.msra.mxu0 %v1522
  %1576 = vmatprep.subr.bf16.mxu0 0
  %1577 = vmatpush1.bf16.msra.mxu0 %v1523
  %1578 = vmatprep.subr.bf16.mxu0 0
  %1579 = vmatpush1.bf16.msra.mxu0 %v1524
  %1580 = vmatprep.mubr.bf16.mxu0 %v1399
  %1581 = vmatmul.mubr.bf16.gmra.mrb[0].mxu0 %v1398
  %v1582 = vpop.f32.mrb[0].mxu0
  %v1583 = vadd.f32 0.0, %v1582
  %v1584 = vpop.f32.mrb[0].mxu0
  %v1585 = vpop.f32.mrb[0].mxu0
  %v1586 = vadd.f32 0.0, %v1585
  %v1587 = vpop.f32.mrb[0].mxu0
  %1588 = vdwg.mxu0
  %1589 = vmatprep.subr.bf16.mxu0 0
  %1590 = vmatpush1.bf16.msra.mxu0 %v1525
  %1591 = vmatprep.subr.bf16.mxu0 0
  %1592 = vmatpush1.bf16.msra.mxu0 %v1526
  %1593 = vmatprep.subr.bf16.mxu0 0
  %1594 = vmatpush1.bf16.msra.mxu0 0
  %1595 = vmatprep.subr.bf16.mxu0 0
  %1596 = vmatpush1.bf16.msra.mxu0 0
  %1597 = vmatprep.subr.bf16.mxu0 0
  %1598 = vmatpush1.bf16.msra.mxu0 0
  %1599 = vmatprep.subr.bf16.mxu0 0
  %1600 = vmatpush1.bf16.msra.mxu0 0
  %1601 = vmatprep.subr.bf16.mxu0 0
  %1602 = vmatpush1.bf16.msra.mxu0 0
  %1603 = vmatprep.subr.bf16.mxu0 0
  %1604 = vmatpush1.bf16.msra.mxu0 0
  %1605 = vmatprep.subr.bf16.mxu0 0
  %1606 = vmatpush1.bf16.msra.mxu0 0
  %1607 = vmatprep.subr.bf16.mxu0 0
  %1608 = vmatpush1.bf16.msra.mxu0 0
  %1609 = vmatprep.subr.bf16.mxu0 0
  %1610 = vmatpush1.bf16.msra.mxu0 0
  %1611 = vmatprep.subr.bf16.mxu0 0
  %1612 = vmatpush1.bf16.msra.mxu0 0
  %1613 = vmatprep.subr.bf16.mxu0 0
  %1614 = vmatpush1.bf16.msra.mxu0 0
  %1615 = vmatprep.subr.bf16.mxu0 0
  %1616 = vmatpush1.bf16.msra.mxu0 0
  %1617 = vmatprep.subr.bf16.mxu0 0
  %1618 = vmatpush1.bf16.msra.mxu0 0
  %1619 = vmatprep.subr.bf16.mxu0 0
  %1620 = vmatpush1.bf16.msra.mxu0 0
  %1621 = vmatprep.mubr.bf16.mxu0 0
  %1622 = vmatmul.mubr.bf16.gmra.mrb[0].mxu0 %v1546
  %v1623 = vpop.f32.mrb[0].mxu0
  %v1624 = vadd.f32 %v1583, %v1623
  %v1625 = vpop.f32.mrb[0].mxu0
  %v1626 = vpop.f32.mrb[0].mxu0
  %v1627 = vadd.f32 %v1586, %v1626
  %v1628 = vpop.f32.mrb[0].mxu0
  %1629 = vdwg.mxu0
  %1630 = vst.msk [vmem:[#allocation3 + $0x18] sm:$0xff] %vm646, %v1624
  %1631 = vst.msk [vmem:[#allocation3 + $0x20] sm:$0xf] %vm692, %v1627
  %v1632 = vld [vmem:[#allocation2 + $0xa8] sm:$0xff]
  %v1633 = vld [vmem:[#allocation2 + $0xb0] sm:$0xf]
  %v1634 = vld [vmem:[#allocation2 + $0xb6] sm:$0xff]
  %v1635 = vld [vmem:[#allocation2 + $0xbe] sm:$0xf]
  %v1636 = vld [vmem:[#allocation2 + $0xaa] sm:$0xff]
  %v1637 = vld [vmem:[#allocation2 + $0xb2] sm:$0xf]
  %v1638 = vld [vmem:[#allocation2 + $0xc4] sm:$0xff]
  %v1639 = vld [vmem:[#allocation2 + $0xcc] sm:$0xf]
  %v1640 = vld [vmem:[#allocation2 + $0xd2] sm:$0xff]
  %v1641 = vld [vmem:[#allocation2 + $0xda] sm:$0xf]
  %v1642 = vld [vmem:[#allocation2 + $0xc6] sm:$0xff]
  %v1643 = vld [vmem:[#allocation2 + $0xce] sm:$0xf]
  %v1644 = vld [vmem:[#allocation2 + $0xe0] sm:$0xff]
  %v1645 = vld [vmem:[#allocation2 + $0xe8] sm:$0xf]
  %v1646 = vld [vmem:[#allocation2 + $0xee] sm:$0xff]
  %v1647 = vld [vmem:[#allocation2 + $0xf6] sm:$0xf]
  %v1648 = vld [vmem:[#allocation2 + $0xe2] sm:$0xff]
  %v1649 = vld [vmem:[#allocation2 + $0xea] sm:$0xf]
  %1652 = vrot.lane.b32.xlu0 %v1634, 32
  %v1653 = vpop.permute.xlu0 %1652
  %1654 = vrot.lane.b32.xlu0 %v1635, 32
  %v1655 = vpop.permute.xlu0 %1654
  %1660 = vrot.lane.b32.xlu0 %v1636, 64
  %v1661 = vpop.permute.xlu0 %1660
  %1662 = vrot.lane.b32.xlu0 %v1637, 64
  %v1663 = vpop.permute.xlu0 %1662
  %1668 = vrot.lane.b32.xlu0 %v1638, 96
  %v1669 = vpop.permute.xlu0 %1668
  %1670 = vrot.lane.b32.xlu0 %v1639, 96
  %v1671 = vpop.permute.xlu0 %1670
  %1676 = vrot.lane.b32.xlu0 %v1642, 32
  %v1677 = vpop.permute.xlu0 %1676
  %1678 = vrot.lane.b32.xlu0 %v1643, 32
  %v1679 = vpop.permute.xlu0 %1678
  %1684 = vrot.lane.b32.xlu0 %v1644, 64
  %v1685 = vpop.permute.xlu0 %1684
  %1686 = vrot.lane.b32.xlu0 %v1645, 64
  %v1687 = vpop.permute.xlu0 %1686
  %1692 = vrot.lane.b32.xlu0 %v1646, 96
  %v1693 = vpop.permute.xlu0 %1692
  %1694 = vrot.lane.b32.xlu0 %v1647, 96
  %v1695 = vpop.permute.xlu0 %1694
  %v1698 = vsel %vm646, %v1632, %v1653
  %v1699 = vsel %vm646, %v1633, %v1655
  %v1700 = vsel %vm762, %v1698, %v1661
  %v1701 = vsel %vm762, %v1699, %v1663
  %v1702 = vsel %vm765, %v1700, %v1669
  %v1703 = vsel %vm765, %v1701, %v1671
  %v1704 = vsel %vm646, %v1640, %v1677
  %v1705 = vsel %vm646, %v1641, %v1679
  %v1706 = vsel %vm762, %v1704, %v1685
  %v1707 = vsel %vm762, %v1705, %v1687
  %v1708 = vsel %vm765, %v1706, %v1693
  %v1709 = vsel %vm765, %v1707, %v1695
  %v1710 = vpack.c.bf16 %v1703, %v1702
  %v1711 = vpack.c.bf16 %v1709, %v1708
  %v1712 = vpack.c.bf16 %v1649, %v1648
  %v1713 = vld [vmem:[%s3] sm:$0xf]
  %v1714 = vld [vmem:[%s3 + $0x4] sm:$0xf]
  %v1715 = vld [vmem:[%s3 + $0x8] sm:$0xf]
  %v1716 = vld [vmem:[%s3 + $0xc] sm:$0xf]
  %v1717 = vld [vmem:[%s3 + $0x10] sm:$0xf]
  %v1718 = vld [vmem:[%s3 + $0x14] sm:$0xf]
  %v1719 = vld [vmem:[%s3 + $0x18] sm:$0xf]
  %v1720 = vld [vmem:[%s3 + $0x1c] sm:$0xf]
  %v1721 = vld [vmem:[%s3 + $0x20] sm:$0xf]
  %v1722 = vld [vmem:[%s3 + $0x24] sm:$0xf]
  %v1723 = vld [vmem:[%s3 + $0x28] sm:$0xf]
  %v1724 = vld [vmem:[%s3 + $0x2c] sm:$0xf]
  %v1725 = vld [vmem:[%s3 + $0x30] sm:$0xf]
  %v1726 = vld [vmem:[%s3 + $0x34] sm:$0xf]
  %v1727 = vld [vmem:[%s3 + $0x38] sm:$0xf]
  %v1728 = vld [vmem:[%s3 + $0x3c] sm:$0xf]
  %v1729 = vld [vmem:[%s3 + $0x40] sm:$0xf]
  %v1730 = vld [vmem:[%s3 + $0x44] sm:$0xf]
  %v1731 = vld [vmem:[%s3 + $0x48] sm:$0xf]
  %v1732 = vld [vmem:[%s3 + $0x4c] sm:$0xf]
  %v1733 = vld [vmem:[%s3 + $0x50] sm:$0xf]
  %v1734 = vld [vmem:[%s3 + $0x54] sm:$0xf]
  %v1735 = vld [vmem:[%s3 + $0x58] sm:$0xf]
  %v1736 = vld [vmem:[%s3 + $0x5c] sm:$0xf]
  %v1737 = vld [vmem:[%s3 + $0x60] sm:$0xf]
  %v1738 = vld [vmem:[%s3 + $0x64] sm:$0xf]
  %v1739 = vld [vmem:[%s3 + $0x68] sm:$0xf]
  %v1740 = vld [vmem:[%s3 + $0x6c] sm:$0xf]
  %v1741 = vld [vmem:[%s3 + $0x70] sm:$0xf]
  %v1742 = vld [vmem:[%s3 + $0x74] sm:$0xf]
  %v1743 = vld [vmem:[%s3 + $0x78] sm:$0xf]
  %v1744 = vld [vmem:[%s3 + $0x7c] sm:$0xf]
  %v1745 = vld [vmem:[%s3 + $0x80] sm:$0xf]
  %v1746 = vld [vmem:[%s3 + $0x84] sm:$0xf]
  %v1747 = vld [vmem:[%s3 + $0x88] sm:$0xf]
  %v1748 = vld [vmem:[%s3 + $0x8c] sm:$0xf]
  %v1785 = vunpack.c.l.b16 %v1713
  %v1786 = vunpack.c.l.b16 %v1714
  %v1787 = vunpack.c.l.b16 %v1715
  %v1788 = vunpack.c.l.b16 %v1716
  %v1789 = vunpack.c.l.b16 %v1717
  %v1790 = vunpack.c.l.b16 %v1718
  %v1791 = vunpack.c.l.b16 %v1719
  %v1792 = vunpack.c.l.b16 %v1720
  %v1793 = vunpack.c.l.b16 %v1721
  %v1794 = vunpack.c.l.b16 %v1722
  %v1795 = vunpack.c.l.b16 %v1723
  %v1796 = vunpack.c.l.b16 %v1724
  %v1797 = vunpack.c.l.b16 %v1725
  %v1798 = vunpack.c.l.b16 %v1726
  %v1799 = vunpack.c.l.b16 %v1727
  %v1800 = vunpack.c.l.b16 %v1728
  %v1801 = vunpack.c.l.b16 %v1729
  %v1802 = vunpack.c.l.b16 %v1730
  %v1803 = vunpack.c.l.b16 %v1731
  %v1804 = vunpack.c.l.b16 %v1732
  %v1805 = vunpack.c.l.b16 %v1733
  %v1806 = vunpack.c.l.b16 %v1734
  %v1807 = vunpack.c.l.b16 %v1735
  %v1808 = vunpack.c.l.b16 %v1736
  %v1809 = vunpack.c.l.b16 %v1737
  %v1810 = vunpack.c.l.b16 %v1738
  %v1811 = vunpack.c.l.b16 %v1739
  %v1812 = vunpack.c.l.b16 %v1740
  %v1813 = vunpack.c.l.b16 %v1741
  %v1814 = vunpack.c.l.b16 %v1742
  %v1815 = vunpack.c.l.b16 %v1743
  %v1816 = vunpack.c.l.b16 %v1744
  %v1817 = vunpack.c.l.b16 %v1745
  %v1818 = vunpack.c.l.b16 %v1746
  %v1819 = vunpack.c.l.b16 %v1747
  %v1820 = vunpack.c.l.b16 %v1748
  %v1821 = vpack.c.b16 %v1786, %v1785
  %v1822 = vpack.c.b16 %v1788, %v1787
  %v1823 = vpack.c.b16 %v1790, %v1789
  %v1824 = vpack.c.b16 %v1792, %v1791
  %v1825 = vpack.c.b16 %v1794, %v1793
  %v1826 = vpack.c.b16 %v1796, %v1795
  %v1827 = vpack.c.b16 %v1798, %v1797
  %v1828 = vpack.c.b16 %v1800, %v1799
  %v1829 = vpack.c.b16 %v1802, %v1801
  %v1830 = vpack.c.b16 %v1804, %v1803
  %v1831 = vpack.c.b16 %v1806, %v1805
  %v1832 = vpack.c.b16 %v1808, %v1807
  %v1833 = vpack.c.b16 %v1810, %v1809
  %v1834 = vpack.c.b16 %v1812, %v1811
  %v1835 = vpack.c.b16 %v1814, %v1813
  %v1836 = vpack.c.b16 %v1816, %v1815
  %v1837 = vpack.c.b16 %v1818, %v1817
  %v1838 = vpack.c.b16 %v1820, %v1819
  %v1858 = vsel %vm646, %v1712, 0
  %1860 = vmatprep.subr.bf16.mxu0 0
  %1861 = vmatpush1.bf16.msra.mxu0 %v1821
  %1862 = vmatprep.subr.bf16.mxu0 0
  %1863 = vmatpush1.bf16.msra.mxu0 %v1822
  %1864 = vmatprep.subr.bf16.mxu0 0
  %1865 = vmatpush1.bf16.msra.mxu0 %v1823
  %1866 = vmatprep.subr.bf16.mxu0 0
  %1867 = vmatpush1.bf16.msra.mxu0 %v1824
  %1868 = vmatprep.subr.bf16.mxu0 0
  %1869 = vmatpush1.bf16.msra.mxu0 %v1825
  %1870 = vmatprep.subr.bf16.mxu0 0
  %1871 = vmatpush1.bf16.msra.mxu0 %v1826
  %1872 = vmatprep.subr.bf16.mxu0 0
  %1873 = vmatpush1.bf16.msra.mxu0 %v1827
  %1874 = vmatprep.subr.bf16.mxu0 0
  %1875 = vmatpush1.bf16.msra.mxu0 %v1828
  %1876 = vmatprep.subr.bf16.mxu0 0
  %1877 = vmatpush1.bf16.msra.mxu0 %v1829
  %1878 = vmatprep.subr.bf16.mxu0 0
  %1879 = vmatpush1.bf16.msra.mxu0 %v1830
  %1880 = vmatprep.subr.bf16.mxu0 0
  %1881 = vmatpush1.bf16.msra.mxu0 %v1831
  %1882 = vmatprep.subr.bf16.mxu0 0
  %1883 = vmatpush1.bf16.msra.mxu0 %v1832
  %1884 = vmatprep.subr.bf16.mxu0 0
  %1885 = vmatpush1.bf16.msra.mxu0 %v1833
  %1886 = vmatprep.subr.bf16.mxu0 0
  %1887 = vmatpush1.bf16.msra.mxu0 %v1834
  %1888 = vmatprep.subr.bf16.mxu0 0
  %1889 = vmatpush1.bf16.msra.mxu0 %v1835
  %1890 = vmatprep.subr.bf16.mxu0 0
  %1891 = vmatpush1.bf16.msra.mxu0 %v1836
  %1892 = vmatprep.mubr.bf16.mxu0 %v1711
  %1893 = vmatmul.mubr.bf16.gmra.mrb[0].mxu0 %v1710
  %v1894 = vpop.f32.mrb[0].mxu0
  %v1895 = vadd.f32 0.0, %v1894
  %v1896 = vpop.f32.mrb[0].mxu0
  %v1897 = vpop.f32.mrb[0].mxu0
  %v1898 = vadd.f32 0.0, %v1897
  %v1899 = vpop.f32.mrb[0].mxu0
  %1900 = vdwg.mxu0
  %1901 = vmatprep.subr.bf16.mxu0 0
  %1902 = vmatpush1.bf16.msra.mxu0 %v1837
  %1903 = vmatprep.subr.bf16.mxu0 0
  %1904 = vmatpush1.bf16.msra.mxu0 %v1838
  %1905 = vmatprep.subr.bf16.mxu0 0
  %1906 = vmatpush1.bf16.msra.mxu0 0
  %1907 = vmatprep.subr.bf16.mxu0 0
  %1908 = vmatpush1.bf16.msra.mxu0 0
  %1909 = vmatprep.subr.bf16.mxu0 0
  %1910 = vmatpush1.bf16.msra.mxu0 0
  %1911 = vmatprep.subr.bf16.mxu0 0
  %1912 = vmatpush1.bf16.msra.mxu0 0
  %1913 = vmatprep.subr.bf16.mxu0 0
  %1914 = vmatpush1.bf16.msra.mxu0 0
  %1915 = vmatprep.subr.bf16.mxu0 0
  %1916 = vmatpush1.bf16.msra.mxu0 0
  %1917 = vmatprep.subr.bf16.mxu0 0
  %1918 = vmatpush1.bf16.msra.mxu0 0
  %1919 = vmatprep.subr.bf16.mxu0 0
  %1920 = vmatpush1.bf16.msra.mxu0 0
  %1921 = vmatprep.subr.bf16.mxu0 0
  %1922 = vmatpush1.bf16.msra.mxu0 0
  %1923 = vmatprep.subr.bf16.mxu0 0
  %1924 = vmatpush1.bf16.msra.mxu0 0
  %1925 = vmatprep.subr.bf16.mxu0 0
  %1926 = vmatpush1.bf16.msra.mxu0 0
  %1927 = vmatprep.subr.bf16.mxu0 0
  %1928 = vmatpush1.bf16.msra.mxu0 0
  %1929 = vmatprep.subr.bf16.mxu0 0
  %1930 = vmatpush1.bf16.msra.mxu0 0
  %1931 = vmatprep.subr.bf16.mxu0 0
  %1932 = vmatpush1.bf16.msra.mxu0 0
  %1933 = vmatprep.mubr.bf16.mxu0 0
  %1934 = vmatmul.mubr.bf16.gmra.mrb[0].mxu0 %v1858
  %v1935 = vpop.f32.mrb[0].mxu0
  %v1936 = vadd.f32 %v1895, %v1935
  %v1937 = vpop.f32.mrb[0].mxu0
  %v1938 = vpop.f32.mrb[0].mxu0
  %v1939 = vadd.f32 %v1898, %v1938
  %v1940 = vpop.f32.mrb[0].mxu0
  %1941 = vdwg.mxu0
  %1942 = vst.msk [vmem:[#allocation3 + $0x24] sm:$0xff] %vm646, %v1936
  %1943 = vst.msk [vmem:[#allocation3 + $0x2c] sm:$0xf] %vm692, %v1939
  %v1944 = vld [vmem:[#allocation2 + $0xe0] sm:$0xff]
  %v1945 = vld [vmem:[#allocation2 + $0xe8] sm:$0xf]
  %v1946 = vld [vmem:[#allocation2 + $0xee] sm:$0xff]
  %v1947 = vld [vmem:[#allocation2 + $0xf6] sm:$0xf]
  %v1948 = vld [vmem:[#allocation2 + $0xe2] sm:$0xff]
  %v1949 = vld [vmem:[#allocation2 + $0xea] sm:$0xf]
  %v1950 = vld [vmem:[#allocation2 + $0xfc] sm:$0xff]
  %v1951 = vld [vmem:[#allocation2 + $0x104] sm:$0xf]
  %v1952 = vld [vmem:[#allocation2 + $0x10a] sm:$0xff]
  %v1953 = vld [vmem:[#allocation2 + $0x112] sm:$0xf]
  %v1954 = vld [vmem:[#allocation2 + $0xfe] sm:$0xff]
  %v1955 = vld [vmem:[#allocation2 + $0x106] sm:$0xf]
  %v1956 = vld [vmem:[#allocation2 + $0x118] sm:$0xff]
  %v1957 = vld [vmem:[#allocation2 + $0x120] sm:$0xf]
  %v1958 = vld [vmem:[#allocation2 + $0x126] sm:$0xff]
  %v1959 = vld [vmem:[#allocation2 + $0x12e] sm:$0xf]
  %v1960 = vld [vmem:[#allocation2 + $0x11a] sm:$0xff]
  %v1961 = vld [vmem:[#allocation2 + $0x122] sm:$0xf]
  %1964 = vrot.lane.b32.xlu0 %v1946, 32
  %v1965 = vpop.permute.xlu0 %1964
  %1966 = vrot.lane.b32.xlu0 %v1947, 32
  %v1967 = vpop.permute.xlu0 %1966
  %1972 = vrot.lane.b32.xlu0 %v1948, 64
  %v1973 = vpop.permute.xlu0 %1972
  %1974 = vrot.lane.b32.xlu0 %v1949, 64
  %v1975 = vpop.permute.xlu0 %1974
  %1980 = vrot.lane.b32.xlu0 %v1950, 96
  %v1981 = vpop.permute.xlu0 %1980
  %1982 = vrot.lane.b32.xlu0 %v1951, 96
  %v1983 = vpop.permute.xlu0 %1982
  %1988 = vrot.lane.b32.xlu0 %v1954, 32
  %v1989 = vpop.permute.xlu0 %1988
  %1990 = vrot.lane.b32.xlu0 %v1955, 32
  %v1991 = vpop.permute.xlu0 %1990
  %1996 = vrot.lane.b32.xlu0 %v1956, 64
  %v1997 = vpop.permute.xlu0 %1996
  %1998 = vrot.lane.b32.xlu0 %v1957, 64
  %v1999 = vpop.permute.xlu0 %1998
  %2004 = vrot.lane.b32.xlu0 %v1958, 96
  %v2005 = vpop.permute.xlu0 %2004
  %2006 = vrot.lane.b32.xlu0 %v1959, 96
  %v2007 = vpop.permute.xlu0 %2006
  %v2010 = vsel %vm646, %v1944, %v1965
  %v2011 = vsel %vm646, %v1945, %v1967
  %v2012 = vsel %vm762, %v2010, %v1973
  %v2013 = vsel %vm762, %v2011, %v1975
  %v2014 = vsel %vm765, %v2012, %v1981
  %v2015 = vsel %vm765, %v2013, %v1983
  %v2016 = vsel %vm646, %v1952, %v1989
  %v2017 = vsel %vm646, %v1953, %v1991
  %v2018 = vsel %vm762, %v2016, %v1997
  %v2019 = vsel %vm762, %v2017, %v1999
  %v2020 = vsel %vm765, %v2018, %v2005
  %v2021 = vsel %vm765, %v2019, %v2007
  %v2022 = vpack.c.bf16 %v2015, %v2014
  %v2023 = vpack.c.bf16 %v2021, %v2020
  %v2024 = vpack.c.bf16 %v1961, %v1960
  %v2025 = vld [vmem:[%s3] sm:$0xf]
  %v2026 = vld [vmem:[%s3 + $0x4] sm:$0xf]
  %v2027 = vld [vmem:[%s3 + $0x8] sm:$0xf]
  %v2028 = vld [vmem:[%s3 + $0xc] sm:$0xf]
  %v2029 = vld [vmem:[%s3 + $0x10] sm:$0xf]
  %v2030 = vld [vmem:[%s3 + $0x14] sm:$0xf]
  %v2031 = vld [vmem:[%s3 + $0x18] sm:$0xf]
  %v2032 = vld [vmem:[%s3 + $0x1c] sm:$0xf]
  %v2033 = vld [vmem:[%s3 + $0x20] sm:$0xf]
  %v2034 = vld [vmem:[%s3 + $0x24] sm:$0xf]
  %v2035 = vld [vmem:[%s3 + $0x28] sm:$0xf]
  %v2036 = vld [vmem:[%s3 + $0x2c] sm:$0xf]
  %v2037 = vld [vmem:[%s3 + $0x30] sm:$0xf]
  %v2038 = vld [vmem:[%s3 + $0x34] sm:$0xf]
  %v2039 = vld [vmem:[%s3 + $0x38] sm:$0xf]
  %v2040 = vld [vmem:[%s3 + $0x3c] sm:$0xf]
  %v2041 = vld [vmem:[%s3 + $0x40] sm:$0xf]
  %v2042 = vld [vmem:[%s3 + $0x44] sm:$0xf]
  %v2043 = vld [vmem:[%s3 + $0x48] sm:$0xf]
  %v2044 = vld [vmem:[%s3 + $0x4c] sm:$0xf]
  %v2045 = vld [vmem:[%s3 + $0x50] sm:$0xf]
  %v2046 = vld [vmem:[%s3 + $0x54] sm:$0xf]
  %v2047 = vld [vmem:[%s3 + $0x58] sm:$0xf]
  %v2048 = vld [vmem:[%s3 + $0x5c] sm:$0xf]
  %v2049 = vld [vmem:[%s3 + $0x60] sm:$0xf]
  %v2050 = vld [vmem:[%s3 + $0x64] sm:$0xf]
  %v2051 = vld [vmem:[%s3 + $0x68] sm:$0xf]
  %v2052 = vld [vmem:[%s3 + $0x6c] sm:$0xf]
  %v2053 = vld [vmem:[%s3 + $0x70] sm:$0xf]
  %v2054 = vld [vmem:[%s3 + $0x74] sm:$0xf]
  %v2055 = vld [vmem:[%s3 + $0x78] sm:$0xf]
  %v2056 = vld [vmem:[%s3 + $0x7c] sm:$0xf]
  %v2057 = vld [vmem:[%s3 + $0x80] sm:$0xf]
  %v2058 = vld [vmem:[%s3 + $0x84] sm:$0xf]
  %v2059 = vld [vmem:[%s3 + $0x88] sm:$0xf]
  %v2060 = vld [vmem:[%s3 + $0x8c] sm:$0xf]
  %v2097 = vunpack.c.l.b16 %v2025
  %v2098 = vunpack.c.l.b16 %v2026
  %v2099 = vunpack.c.l.b16 %v2027
  %v2100 = vunpack.c.l.b16 %v2028
  %v2101 = vunpack.c.l.b16 %v2029
  %v2102 = vunpack.c.l.b16 %v2030
  %v2103 = vunpack.c.l.b16 %v2031
  %v2104 = vunpack.c.l.b16 %v2032
  %v2105 = vunpack.c.l.b16 %v2033
  %v2106 = vunpack.c.l.b16 %v2034
  %v2107 = vunpack.c.l.b16 %v2035
  %v2108 = vunpack.c.l.b16 %v2036
  %v2109 = vunpack.c.l.b16 %v2037
  %v2110 = vunpack.c.l.b16 %v2038
  %v2111 = vunpack.c.l.b16 %v2039
  %v2112 = vunpack.c.l.b16 %v2040
  %v2113 = vunpack.c.l.b16 %v2041
  %v2114 = vunpack.c.l.b16 %v2042
  %v2115 = vunpack.c.l.b16 %v2043
  %v2116 = vunpack.c.l.b16 %v2044
  %v2117 = vunpack.c.l.b16 %v2045
  %v2118 = vunpack.c.l.b16 %v2046
  %v2119 = vunpack.c.l.b16 %v2047
  %v2120 = vunpack.c.l.b16 %v2048
  %v2121 = vunpack.c.l.b16 %v2049
  %v2122 = vunpack.c.l.b16 %v2050
  %v2123 = vunpack.c.l.b16 %v2051
  %v2124 = vunpack.c.l.b16 %v2052
  %v2125 = vunpack.c.l.b16 %v2053
  %v2126 = vunpack.c.l.b16 %v2054
  %v2127 = vunpack.c.l.b16 %v2055
  %v2128 = vunpack.c.l.b16 %v2056
  %v2129 = vunpack.c.l.b16 %v2057
  %v2130 = vunpack.c.l.b16 %v2058
  %v2131 = vunpack.c.l.b16 %v2059
  %v2132 = vunpack.c.l.b16 %v2060
  %v2133 = vpack.c.b16 %v2098, %v2097
  %v2134 = vpack.c.b16 %v2100, %v2099
  %v2135 = vpack.c.b16 %v2102, %v2101
  %v2136 = vpack.c.b16 %v2104, %v2103
  %v2137 = vpack.c.b16 %v2106, %v2105
  %v2138 = vpack.c.b16 %v2108, %v2107
  %v2139 = vpack.c.b16 %v2110, %v2109
  %v2140 = vpack.c.b16 %v2112, %v2111
  %v2141 = vpack.c.b16 %v2114, %v2113
  %v2142 = vpack.c.b16 %v2116, %v2115
  %v2143 = vpack.c.b16 %v2118, %v2117
  %v2144 = vpack.c.b16 %v2120, %v2119
  %v2145 = vpack.c.b16 %v2122, %v2121
  %v2146 = vpack.c.b16 %v2124, %v2123
  %v2147 = vpack.c.b16 %v2126, %v2125
  %v2148 = vpack.c.b16 %v2128, %v2127
  %v2149 = vpack.c.b16 %v2130, %v2129
  %v2150 = vpack.c.b16 %v2132, %v2131
  %v2170 = vsel %vm646, %v2024, 0
  %2172 = vmatprep.subr.bf16.mxu0 0
  %2173 = vmatpush1.bf16.msra.mxu0 %v2133
  %2174 = vmatprep.subr.bf16.mxu0 0
  %2175 = vmatpush1.bf16.msra.mxu0 %v2134
  %2176 = vmatprep.subr.bf16.mxu0 0
  %2177 = vmatpush1.bf16.msra.mxu0 %v2135
  %2178 = vmatprep.subr.bf16.mxu0 0
  %2179 = vmatpush1.bf16.msra.mxu0 %v2136
  %2180 = vmatprep.subr.bf16.mxu0 0
  %2181 = vmatpush1.bf16.msra.mxu0 %v2137
  %2182 = vmatprep.subr.bf16.mxu0 0
  %2183 = vmatpush1.bf16.msra.mxu0 %v2138
  %2184 = vmatprep.subr.bf16.mxu0 0
  %2185 = vmatpush1.bf16.msra.mxu0 %v2139
  %2186 = vmatprep.subr.bf16.mxu0 0
  %2187 = vmatpush1.bf16.msra.mxu0 %v2140
  %2188 = vmatprep.subr.bf16.mxu0 0
  %2189 = vmatpush1.bf16.msra.mxu0 %v2141
  %2190 = vmatprep.subr.bf16.mxu0 0
  %2191 = vmatpush1.bf16.msra.mxu0 %v2142
  %2192 = vmatprep.subr.bf16.mxu0 0
  %2193 = vmatpush1.bf16.msra.mxu0 %v2143
  %2194 = vmatprep.subr.bf16.mxu0 0
  %2195 = vmatpush1.bf16.msra.mxu0 %v2144
  %2196 = vmatprep.subr.bf16.mxu0 0
  %2197 = vmatpush1.bf16.msra.mxu0 %v2145
  %2198 = vmatprep.subr.bf16.mxu0 0
  %2199 = vmatpush1.bf16.msra.mxu0 %v2146
  %2200 = vmatprep.subr.bf16.mxu0 0
  %2201 = vmatpush1.bf16.msra.mxu0 %v2147
  %2202 = vmatprep.subr.bf16.mxu0 0
  %2203 = vmatpush1.bf16.msra.mxu0 %v2148
  %2204 = vmatprep.mubr.bf16.mxu0 %v2023
  %2205 = vmatmul.mubr.bf16.gmra.mrb[0].mxu0 %v2022
  %v2206 = vpop.f32.mrb[0].mxu0
  %v2207 = vadd.f32 0.0, %v2206
  %v2208 = vpop.f32.mrb[0].mxu0
  %v2209 = vpop.f32.mrb[0].mxu0
  %v2210 = vadd.f32 0.0, %v2209
  %v2211 = vpop.f32.mrb[0].mxu0
  %2212 = vdwg.mxu0
  %2213 = vmatprep.subr.bf16.mxu0 0
  %2214 = vmatpush1.bf16.msra.mxu0 %v2149
  %2215 = vmatprep.subr.bf16.mxu0 0
  %2216 = vmatpush1.bf16.msra.mxu0 %v2150
  %2217 = vmatprep.subr.bf16.mxu0 0
  %2218 = vmatpush1.bf16.msra.mxu0 0
  %2219 = vmatprep.subr.bf16.mxu0 0
  %2220 = vmatpush1.bf16.msra.mxu0 0
  %2221 = vmatprep.subr.bf16.mxu0 0
  %2222 = vmatpush1.bf16.msra.mxu0 0
  %2223 = vmatprep.subr.bf16.mxu0 0
  %2224 = vmatpush1.bf16.msra.mxu0 0
  %2225 = vmatprep.subr.bf16.mxu0 0
  %2226 = vmatpush1.bf16.msra.mxu0 0
  %2227 = vmatprep.subr.bf16.mxu0 0
  %2228 = vmatpush1.bf16.msra.mxu0 0
  %2229 = vmatprep.subr.bf16.mxu0 0
  %2230 = vmatpush1.bf16.msra.mxu0 0
  %2231 = vmatprep.subr.bf16.mxu0 0
  %2232 = vmatpush1.bf16.msra.mxu0 0
  %2233 = vmatprep.subr.bf16.mxu0 0
  %2234 = vmatpush1.bf16.msra.mxu0 0
  %2235 = vmatprep.subr.bf16.mxu0 0
  %2236 = vmatpush1.bf16.msra.mxu0 0
  %2237 = vmatprep.subr.bf16.mxu0 0
  %2238 = vmatpush1.bf16.msra.mxu0 0
  %2239 = vmatprep.subr.bf16.mxu0 0
  %2240 = vmatpush1.bf16.msra.mxu0 0
  %2241 = vmatprep.subr.bf16.mxu0 0
  %2242 = vmatpush1.bf16.msra.mxu0 0
  %2243 = vmatprep.subr.bf16.mxu0 0
  %2244 = vmatpush1.bf16.msra.mxu0 0
  %2245 = vmatprep.mubr.bf16.mxu0 0
  %2246 = vmatmul.mubr.bf16.gmra.mrb[0].mxu0 %v2170
  %v2247 = vpop.f32.mrb[0].mxu0
  %v2248 = vadd.f32 %v2207, %v2247
  %v2249 = vpop.f32.mrb[0].mxu0
  %v2250 = vpop.f32.mrb[0].mxu0
  %v2251 = vadd.f32 %v2210, %v2250
  %v2252 = vpop.f32.mrb[0].mxu0
  %2253 = vdwg.mxu0
  %2254 = vst.msk [vmem:[#allocation3 + $0x30] sm:$0xff] %vm646, %v2248
  %2255 = vst.msk [vmem:[#allocation3 + $0x38] sm:$0xf] %vm692, %v2251
  %v2256 = vld [vmem:[#allocation2 + $0x118] sm:$0xff]
  %v2257 = vld [vmem:[#allocation2 + $0x120] sm:$0xf]
  %v2258 = vld [vmem:[#allocation2 + $0x126] sm:$0xff]
  %v2259 = vld [vmem:[#allocation2 + $0x12e] sm:$0xf]
  %v2260 = vld [vmem:[#allocation2 + $0x11a] sm:$0xff]
  %v2261 = vld [vmem:[#allocation2 + $0x122] sm:$0xf]
  %v2262 = vld [vmem:[#allocation2 + $0x134] sm:$0xff]
  %v2263 = vld [vmem:[#allocation2 + $0x13c] sm:$0xf]
  %v2264 = vld [vmem:[#allocation2 + $0x142] sm:$0xff]
  %v2265 = vld [vmem:[#allocation2 + $0x14a] sm:$0xf]
  %v2266 = vld [vmem:[#allocation2 + $0x136] sm:$0xff]
  %v2267 = vld [vmem:[#allocation2 + $0x13e] sm:$0xf]
  %v2268 = vld [vmem:[#allocation2 + $0x150] sm:$0xff]
  %v2269 = vld [vmem:[#allocation2 + $0x158] sm:$0xf]
  %v2270 = vld [vmem:[#allocation2 + $0x15e] sm:$0xff]
  %v2271 = vld [vmem:[#allocation2 + $0x166] sm:$0xf]
  %v2272 = vld [vmem:[#allocation2 + $0x152] sm:$0xff]
  %v2273 = vld [vmem:[#allocation2 + $0x15a] sm:$0xf]
  %2276 = vrot.lane.b32.xlu0 %v2258, 32
  %v2277 = vpop.permute.xlu0 %2276
  %2278 = vrot.lane.b32.xlu0 %v2259, 32
  %v2279 = vpop.permute.xlu0 %2278
  %2284 = vrot.lane.b32.xlu0 %v2260, 64
  %v2285 = vpop.permute.xlu0 %2284
  %2286 = vrot.lane.b32.xlu0 %v2261, 64
  %v2287 = vpop.permute.xlu0 %2286
  %2292 = vrot.lane.b32.xlu0 %v2262, 96
  %v2293 = vpop.permute.xlu0 %2292
  %2294 = vrot.lane.b32.xlu0 %v2263, 96
  %v2295 = vpop.permute.xlu0 %2294
  %2300 = vrot.lane.b32.xlu0 %v2266, 32
  %v2301 = vpop.permute.xlu0 %2300
  %2302 = vrot.lane.b32.xlu0 %v2267, 32
  %v2303 = vpop.permute.xlu0 %2302
  %2308 = vrot.lane.b32.xlu0 %v2268, 64
  %v2309 = vpop.permute.xlu0 %2308
  %2310 = vrot.lane.b32.xlu0 %v2269, 64
  %v2311 = vpop.permute.xlu0 %2310
  %2316 = vrot.lane.b32.xlu0 %v2270, 96
  %v2317 = vpop.permute.xlu0 %2316
  %2318 = vrot.lane.b32.xlu0 %v2271, 96
  %v2319 = vpop.permute.xlu0 %2318
  %v2322 = vsel %vm646, %v2256, %v2277
  %v2323 = vsel %vm646, %v2257, %v2279
  %v2324 = vsel %vm762, %v2322, %v2285
  %v2325 = vsel %vm762, %v2323, %v2287
  %v2326 = vsel %vm765, %v2324, %v2293
  %v2327 = vsel %vm765, %v2325, %v2295
  %v2328 = vsel %vm646, %v2264, %v2301
  %v2329 = vsel %vm646, %v2265, %v2303
  %v2330 = vsel %vm762, %v2328, %v2309
  %v2331 = vsel %vm762, %v2329, %v2311
  %v2332 = vsel %vm765, %v2330, %v2317
  %v2333 = vsel %vm765, %v2331, %v2319
  %v2334 = vpack.c.bf16 %v2327, %v2326
  %v2335 = vpack.c.bf16 %v2333, %v2332
  %v2336 = vpack.c.bf16 %v2273, %v2272
  %v2337 = vld [vmem:[%s3] sm:$0xf]
  %v2338 = vld [vmem:[%s3 + $0x4] sm:$0xf]
  %v2339 = vld [vmem:[%s3 + $0x8] sm:$0xf]
  %v2340 = vld [vmem:[%s3 + $0xc] sm:$0xf]
  %v2341 = vld [vmem:[%s3 + $0x10] sm:$0xf]
  %v2342 = vld [vmem:[%s3 + $0x14] sm:$0xf]
  %v2343 = vld [vmem:[%s3 + $0x18] sm:$0xf]
  %v2344 = vld [vmem:[%s3 + $0x1c] sm:$0xf]
  %v2345 = vld [vmem:[%s3 + $0x20] sm:$0xf]
  %v2346 = vld [vmem:[%s3 + $0x24] sm:$0xf]
  %v2347 = vld [vmem:[%s3 + $0x28] sm:$0xf]
  %v2348 = vld [vmem:[%s3 + $0x2c] sm:$0xf]
  %v2349 = vld [vmem:[%s3 + $0x30] sm:$0xf]
  %v2350 = vld [vmem:[%s3 + $0x34] sm:$0xf]
  %v2351 = vld [vmem:[%s3 + $0x38] sm:$0xf]
  %v2352 = vld [vmem:[%s3 + $0x3c] sm:$0xf]
  %v2353 = vld [vmem:[%s3 + $0x40] sm:$0xf]
  %v2354 = vld [vmem:[%s3 + $0x44] sm:$0xf]
  %v2355 = vld [vmem:[%s3 + $0x48] sm:$0xf]
  %v2356 = vld [vmem:[%s3 + $0x4c] sm:$0xf]
  %v2357 = vld [vmem:[%s3 + $0x50] sm:$0xf]
  %v2358 = vld [vmem:[%s3 + $0x54] sm:$0xf]
  %v2359 = vld [vmem:[%s3 + $0x58] sm:$0xf]
  %v2360 = vld [vmem:[%s3 + $0x5c] sm:$0xf]
  %v2361 = vld [vmem:[%s3 + $0x60] sm:$0xf]
  %v2362 = vld [vmem:[%s3 + $0x64] sm:$0xf]
  %v2363 = vld [vmem:[%s3 + $0x68] sm:$0xf]
  %v2364 = vld [vmem:[%s3 + $0x6c] sm:$0xf]
  %v2365 = vld [vmem:[%s3 + $0x70] sm:$0xf]
  %v2366 = vld [vmem:[%s3 + $0x74] sm:$0xf]
  %v2367 = vld [vmem:[%s3 + $0x78] sm:$0xf]
  %v2368 = vld [vmem:[%s3 + $0x7c] sm:$0xf]
  %v2369 = vld [vmem:[%s3 + $0x80] sm:$0xf]
  %v2370 = vld [vmem:[%s3 + $0x84] sm:$0xf]
  %v2371 = vld [vmem:[%s3 + $0x88] sm:$0xf]
  %v2372 = vld [vmem:[%s3 + $0x8c] sm:$0xf]
  %v2409 = vunpack.c.l.b16 %v2337
  %v2410 = vunpack.c.l.b16 %v2338
  %v2411 = vunpack.c.l.b16 %v2339
  %v2412 = vunpack.c.l.b16 %v2340
  %v2413 = vunpack.c.l.b16 %v2341
  %v2414 = vunpack.c.l.b16 %v2342
  %v2415 = vunpack.c.l.b16 %v2343
  %v2416 = vunpack.c.l.b16 %v2344
  %v2417 = vunpack.c.l.b16 %v2345
  %v2418 = vunpack.c.l.b16 %v2346
  %v2419 = vunpack.c.l.b16 %v2347
  %v2420 = vunpack.c.l.b16 %v2348
  %v2421 = vunpack.c.l.b16 %v2349
  %v2422 = vunpack.c.l.b16 %v2350
  %v2423 = vunpack.c.l.b16 %v2351
  %v2424 = vunpack.c.l.b16 %v2352
  %v2425 = vunpack.c.l.b16 %v2353
  %v2426 = vunpack.c.l.b16 %v2354
  %v2427 = vunpack.c.l.b16 %v2355
  %v2428 = vunpack.c.l.b16 %v2356
  %v2429 = vunpack.c.l.b16 %v2357
  %v2430 = vunpack.c.l.b16 %v2358
  %v2431 = vunpack.c.l.b16 %v2359
  %v2432 = vunpack.c.l.b16 %v2360
  %v2433 = vunpack.c.l.b16 %v2361
  %v2434 = vunpack.c.l.b16 %v2362
  %v2435 = vunpack.c.l.b16 %v2363
  %v2436 = vunpack.c.l.b16 %v2364
  %v2437 = vunpack.c.l.b16 %v2365
  %v2438 = vunpack.c.l.b16 %v2366
  %v2439 = vunpack.c.l.b16 %v2367
  %v2440 = vunpack.c.l.b16 %v2368
  %v2441 = vunpack.c.l.b16 %v2369
  %v2442 = vunpack.c.l.b16 %v2370
  %v2443 = vunpack.c.l.b16 %v2371
  %v2444 = vunpack.c.l.b16 %v2372
  %v2445 = vpack.c.b16 %v2410, %v2409
  %v2446 = vpack.c.b16 %v2412, %v2411
  %v2447 = vpack.c.b16 %v2414, %v2413
  %v2448 = vpack.c.b16 %v2416, %v2415
  %v2449 = vpack.c.b16 %v2418, %v2417
  %v2450 = vpack.c.b16 %v2420, %v2419
  %v2451 = vpack.c.b16 %v2422, %v2421
  %v2452 = vpack.c.b16 %v2424, %v2423
  %v2453 = vpack.c.b16 %v2426, %v2425
  %v2454 = vpack.c.b16 %v2428, %v2427
  %v2455 = vpack.c.b16 %v2430, %v2429
  %v2456 = vpack.c.b16 %v2432, %v2431
  %v2457 = vpack.c.b16 %v2434, %v2433
  %v2458 = vpack.c.b16 %v2436, %v2435
  %v2459 = vpack.c.b16 %v2438, %v2437
  %v2460 = vpack.c.b16 %v2440, %v2439
  %v2461 = vpack.c.b16 %v2442, %v2441
  %v2462 = vpack.c.b16 %v2444, %v2443
  %v2482 = vsel %vm646, %v2336, 0
  %2484 = vmatprep.subr.bf16.mxu0 0
  %2485 = vmatpush1.bf16.msra.mxu0 %v2445
  %2486 = vmatprep.subr.bf16.mxu0 0
  %2487 = vmatpush1.bf16.msra.mxu0 %v2446
  %2488 = vmatprep.subr.bf16.mxu0 0
  %2489 = vmatpush1.bf16.msra.mxu0 %v2447
  %2490 = vmatprep.subr.bf16.mxu0 0
  %2491 = vmatpush1.bf16.msra.mxu0 %v2448
  %2492 = vmatprep.subr.bf16.mxu0 0
  %2493 = vmatpush1.bf16.msra.mxu0 %v2449
  %2494 = vmatprep.subr.bf16.mxu0 0
  %2495 = vmatpush1.bf16.msra.mxu0 %v2450
  %2496 = vmatprep.subr.bf16.mxu0 0
  %2497 = vmatpush1.bf16.msra.mxu0 %v2451
  %2498 = vmatprep.subr.bf16.mxu0 0
  %2499 = vmatpush1.bf16.msra.mxu0 %v2452
  %2500 = vmatprep.subr.bf16.mxu0 0
  %2501 = vmatpush1.bf16.msra.mxu0 %v2453
  %2502 = vmatprep.subr.bf16.mxu0 0
  %2503 = vmatpush1.bf16.msra.mxu0 %v2454
  %2504 = vmatprep.subr.bf16.mxu0 0
  %2505 = vmatpush1.bf16.msra.mxu0 %v2455
  %2506 = vmatprep.subr.bf16.mxu0 0
  %2507 = vmatpush1.bf16.msra.mxu0 %v2456
  %2508 = vmatprep.subr.bf16.mxu0 0
  %2509 = vmatpush1.bf16.msra.mxu0 %v2457
  %2510 = vmatprep.subr.bf16.mxu0 0
  %2511 = vmatpush1.bf16.msra.mxu0 %v2458
  %2512 = vmatprep.subr.bf16.mxu0 0
  %2513 = vmatpush1.bf16.msra.mxu0 %v2459
  %2514 = vmatprep.subr.bf16.mxu0 0
  %2515 = vmatpush1.bf16.msra.mxu0 %v2460
  %2516 = vmatprep.mubr.bf16.mxu0 %v2335
  %2517 = vmatmul.mubr.bf16.gmra.mrb[0].mxu0 %v2334
  %v2518 = vpop.f32.mrb[0].mxu0
  %v2519 = vadd.f32 0.0, %v2518
  %v2520 = vpop.f32.mrb[0].mxu0
  %v2521 = vpop.f32.mrb[0].mxu0
  %v2522 = vadd.f32 0.0, %v2521
  %v2523 = vpop.f32.mrb[0].mxu0
  %2524 = vdwg.mxu0
  %2525 = vmatprep.subr.bf16.mxu0 0
  %2526 = vmatpush1.bf16.msra.mxu0 %v2461
  %2527 = vmatprep.subr.bf16.mxu0 0
  %2528 = vmatpush1.bf16.msra.mxu0 %v2462
  %2529 = vmatprep.subr.bf16.mxu0 0
  %2530 = vmatpush1.bf16.msra.mxu0 0
  %2531 = vmatprep.subr.bf16.mxu0 0
  %2532 = vmatpush1.bf16.msra.mxu0 0
  %2533 = vmatprep.subr.bf16.mxu0 0
  %2534 = vmatpush1.bf16.msra.mxu0 0
  %2535 = vmatprep.subr.bf16.mxu0 0
  %2536 = vmatpush1.bf16.msra.mxu0 0
  %2537 = vmatprep.subr.bf16.mxu0 0
  %2538 = vmatpush1.bf16.msra.mxu0 0
  %2539 = vmatprep.subr.bf16.mxu0 0
  %2540 = vmatpush1.bf16.msra.mxu0 0
  %2541 = vmatprep.subr.bf16.mxu0 0
  %2542 = vmatpush1.bf16.msra.mxu0 0
  %2543 = vmatprep.subr.bf16.mxu0 0
  %2544 = vmatpush1.bf16.msra.mxu0 0
  %2545 = vmatprep.subr.bf16.mxu0 0
  %2546 = vmatpush1.bf16.msra.mxu0 0
  %2547 = vmatprep.subr.bf16.mxu0 0
  %2548 = vmatpush1.bf16.msra.mxu0 0
  %2549 = vmatprep.subr.bf16.mxu0 0
  %2550 = vmatpush1.bf16.msra.mxu0 0
  %2551 = vmatprep.subr.bf16.mxu0 0
  %2552 = vmatpush1.bf16.msra.mxu0 0
  %2553 = vmatprep.subr.bf16.mxu0 0
  %2554 = vmatpush1.bf16.msra.mxu0 0
  %2555 = vmatprep.subr.bf16.mxu0 0
  %2556 = vmatpush1.bf16.msra.mxu0 0
  %2557 = vmatprep.mubr.bf16.mxu0 0
  %2558 = vmatmul.mubr.bf16.gmra.mrb[0].mxu0 %v2482
  %v2559 = vpop.f32.mrb[0].mxu0
  %v2560 = vadd.f32 %v2519, %v2559
  %v2561 = vpop.f32.mrb[0].mxu0
  %v2562 = vpop.f32.mrb[0].mxu0
  %v2563 = vadd.f32 %v2522, %v2562
  %v2564 = vpop.f32.mrb[0].mxu0
  %2565 = vdwg.mxu0
  %2566 = vst.msk [vmem:[#allocation3 + $0x3c] sm:$0xff] %vm646, %v2560
  %2567 = vst.msk [vmem:[#allocation3 + $0x44] sm:$0xf] %vm692, %v2563
  %v2568 = vld [vmem:[#allocation3] sm:$0xff]
  %v2569 = vld [vmem:[#allocation3 + $0x8] sm:$0xff]
  %v2570 = vld [vmem:[#allocation3 + $0x10] sm:$0xff]
  %v2571 = vld [vmem:[#allocation3 + $0x18] sm:$0xff]
  %v2572 = vld [vmem:[#allocation3 + $0x20] sm:$0xff]
  %v2573 = vld [vmem:[#allocation3 + $0x28] sm:$0xff]
  %v2574 = vld [vmem:[#allocation3 + $0x30] sm:$0xff]
  %v2575 = vld [vmem:[#allocation3 + $0x38] sm:$0xff]
  %v2576 = vld [vmem:[#allocation3 + $0x40] sm:$0xff]
  %v2577 = vld [vmem:[%s4] sm:$0x1]
  %v2578 = vld [vmem:[%s5] sm:$0x1]
  %v2579 = vsel %vm646, %v2568, 0.0
  %v2580 = vsel %vm646, %v2569, 0.0
  %v2581 = vadd.f32 %v2579, %v2580
  %v2582 = vsel %vm646, %v2570, 0.0
  %v2583 = vadd.f32 %v2581, %v2582
  %v2584 = vsel %vm646, %v2571, 0.0
  %v2585 = vadd.f32 %v2583, %v2584
  %v2586 = vsel %vm646, %v2572, 0.0
  %v2587 = vadd.f32 %v2585, %v2586
  %v2588 = vsel %vm646, %v2573, 0.0
  %v2589 = vadd.f32 %v2587, %v2588
  %v2590 = vsel %vm646, %v2574, 0.0
  %v2591 = vadd.f32 %v2589, %v2590
  %v2592 = vsel %vm646, %v2575, 0.0
  %v2593 = vadd.f32 %v2591, %v2592
  %v2594 = vsel %vm646, %v2576, 0.0
  %v2595 = vadd.f32 %v2593, %v2594
  %v2596 = vrot.slane %v2595, 4
  %v2597 = vadd.f32 %v2595, %v2596
  %v2598 = vrot.slane %v2597, 2
  %v2599 = vadd.f32 %v2597, %v2598
  %v2600 = vrot.slane %v2599, 1
  %v2601 = vadd.f32 %v2599, %v2600
  %v2602 = vrcp.pop 72.0
  %v2603 = vmul.f32 %v2601, %v2602
  %v2604 = vsub.f32 %v2568, %v2603
  %v2605 = vsub.f32 %v2569, %v2603
  %v2606 = vsub.f32 %v2570, %v2603
  %v2607 = vsub.f32 %v2571, %v2603
  %v2608 = vsub.f32 %v2572, %v2603
  %v2609 = vsub.f32 %v2573, %v2603
  %v2610 = vsub.f32 %v2574, %v2603
  %v2611 = vsub.f32 %v2575, %v2603
  %v2612 = vsub.f32 %v2576, %v2603
  %v2613 = vmul.f32 %v2604, %v2604
  %v2614 = vmul.f32 %v2605, %v2605
  %v2615 = vmul.f32 %v2606, %v2606
  %v2616 = vmul.f32 %v2607, %v2607
  %v2617 = vmul.f32 %v2608, %v2608
  %v2618 = vmul.f32 %v2609, %v2609
  %v2619 = vmul.f32 %v2610, %v2610
  %v2620 = vmul.f32 %v2611, %v2611
  %v2621 = vmul.f32 %v2612, %v2612
  %v2622 = vsel %vm646, %v2613, 0.0
  %v2623 = vsel %vm646, %v2614, 0.0
  %v2624 = vadd.f32 %v2622, %v2623
  %v2625 = vsel %vm646, %v2615, 0.0
  %v2626 = vadd.f32 %v2624, %v2625
  %v2627 = vsel %vm646, %v2616, 0.0
  %v2628 = vadd.f32 %v2626, %v2627
  %v2629 = vsel %vm646, %v2617, 0.0
  %v2630 = vadd.f32 %v2628, %v2629
  %v2631 = vsel %vm646, %v2618, 0.0
  %v2632 = vadd.f32 %v2630, %v2631
  %v2633 = vsel %vm646, %v2619, 0.0
  %v2634 = vadd.f32 %v2632, %v2633
  %v2635 = vsel %vm646, %v2620, 0.0
  %v2636 = vadd.f32 %v2634, %v2635
  %v2637 = vsel %vm646, %v2621, 0.0
  %v2638 = vadd.f32 %v2636, %v2637
  %v2639 = vrot.slane %v2638, 4
  %v2640 = vadd.f32 %v2638, %v2639
  %v2641 = vrot.slane %v2640, 2
  %v2642 = vadd.f32 %v2640, %v2641
  %v2643 = vrot.slane %v2642, 1
  %v2644 = vadd.f32 %v2642, %v2643
  %v2645 = vmul.f32 %v2644, %v2602
  %v2646 = vadd.f32 %v2645, 1e-05
  %v2647 = vrsqrt.pop %v2646
  %v2648 = vmul.f32 %v2604, %v2647
  %v2649 = vmul.f32 %v2605, %v2647
  %v2650 = vmul.f32 %v2606, %v2647
  %v2651 = vmul.f32 %v2607, %v2647
  %v2652 = vmul.f32 %v2608, %v2647
  %v2653 = vmul.f32 %v2609, %v2647
  %v2654 = vmul.f32 %v2610, %v2647
  %v2655 = vmul.f32 %v2611, %v2647
  %v2656 = vmul.f32 %v2612, %v2647
  %v2658 = vlaneseq
  %v2659 = vshrl.u32 %v2658, 7
  %v2660 = vsub.s32 0, %v2659
  %v2661 = vrot.slane %v2577, %v2660
  %v2663 = vmul.f32 %v2648, %v2661
  %v2664 = vmul.f32 %v2649, %v2661
  %v2665 = vmul.f32 %v2650, %v2661
  %v2666 = vmul.f32 %v2651, %v2661
  %v2667 = vmul.f32 %v2652, %v2661
  %v2668 = vmul.f32 %v2653, %v2661
  %v2669 = vmul.f32 %v2654, %v2661
  %v2670 = vmul.f32 %v2655, %v2661
  %v2671 = vmul.f32 %v2656, %v2661
  %v2673 = vlaneseq
  %v2674 = vshrl.u32 %v2673, 7
  %v2675 = vsub.s32 0, %v2674
  %v2676 = vrot.slane %v2578, %v2675
  %v2678 = vadd.f32 %v2663, %v2676
  %v2679 = vadd.f32 %v2664, %v2676
  %v2680 = vadd.f32 %v2665, %v2676
  %v2681 = vadd.f32 %v2666, %v2676
  %v2682 = vadd.f32 %v2667, %v2676
  %v2683 = vadd.f32 %v2668, %v2676
  %v2684 = vadd.f32 %v2669, %v2676
  %v2685 = vadd.f32 %v2670, %v2676
  %v2686 = vadd.f32 %v2671, %v2676
  %vm2687 = vcmp.gt.f32.partialorder %v2678, 0.0
  %vm2688 = vcmp.gt.f32.partialorder %v2679, 0.0
  %vm2689 = vcmp.gt.f32.partialorder %v2680, 0.0
  %vm2690 = vcmp.gt.f32.partialorder %v2681, 0.0
  %vm2691 = vcmp.gt.f32.partialorder %v2682, 0.0
  %vm2692 = vcmp.gt.f32.partialorder %v2683, 0.0
  %vm2693 = vcmp.gt.f32.partialorder %v2684, 0.0
  %vm2694 = vcmp.gt.f32.partialorder %v2685, 0.0
  %vm2695 = vcmp.gt.f32.partialorder %v2686, 0.0
  %v2696 = vmul.f32 %v2678, 0.01
  %v2697 = vmul.f32 %v2679, 0.01
  %v2698 = vmul.f32 %v2680, 0.01
  %v2699 = vmul.f32 %v2681, 0.01
  %v2700 = vmul.f32 %v2682, 0.01
  %v2701 = vmul.f32 %v2683, 0.01
  %v2702 = vmul.f32 %v2684, 0.01
  %v2703 = vmul.f32 %v2685, 0.01
  %v2704 = vmul.f32 %v2686, 0.01
  %v2705 = vsel %vm2687, %v2678, %v2696
  %v2706 = vsel %vm2688, %v2679, %v2697
  %v2707 = vsel %vm2689, %v2680, %v2698
  %v2708 = vsel %vm2690, %v2681, %v2699
  %v2709 = vsel %vm2691, %v2682, %v2700
  %v2710 = vsel %vm2692, %v2683, %v2701
  %v2711 = vsel %vm2693, %v2684, %v2702
  %v2712 = vsel %vm2694, %v2685, %v2703
  %v2713 = vsel %vm2695, %v2686, %v2704
  %2714 = vst.msk [vmem:[#allocation3] sm:$0xff] %vm646, %v2705
  %2715 = vst.msk [vmem:[#allocation3 + $0x8] sm:$0xff] %vm646, %v2706
  %2716 = vst.msk [vmem:[#allocation3 + $0x10] sm:$0xff] %vm646, %v2707
  %2717 = vst.msk [vmem:[#allocation3 + $0x18] sm:$0xff] %vm646, %v2708
  %2718 = vst.msk [vmem:[#allocation3 + $0x20] sm:$0xff] %vm646, %v2709
  %2719 = vst.msk [vmem:[#allocation3 + $0x28] sm:$0xff] %vm646, %v2710
  %2720 = vst.msk [vmem:[#allocation3 + $0x30] sm:$0xff] %vm646, %v2711
  %2721 = vst.msk [vmem:[#allocation3 + $0x38] sm:$0xff] %vm646, %v2712
  %2722 = vst.msk [vmem:[#allocation3 + $0x40] sm:$0xff] %vm646, %v2713
  %v2723 = vld [vmem:[#allocation3] sm:$0xff]
  %v2724 = vld [vmem:[#allocation3 + $0x2] sm:$0xff]
  %v2725 = vld [vmem:[#allocation3 + $0x4] sm:$0xff]
  %v2726 = vld [vmem:[#allocation3 + $0xc] sm:$0xff]
  %v2727 = vld [vmem:[#allocation3 + $0xe] sm:$0xff]
  %v2728 = vld [vmem:[#allocation3 + $0x10] sm:$0xff]
  %v2729 = vld [vmem:[#allocation3 + $0x18] sm:$0xff]
  %v2730 = vld [vmem:[#allocation3 + $0x1a] sm:$0xff]
  %v2731 = vld [vmem:[#allocation3 + $0x1c] sm:$0xff]
  %2733 = vrot.lane.b32.xlu0 %v2724, 32
  %v2734 = vpop.permute.xlu0 %2733
  %2737 = vrot.lane.b32.xlu0 %v2725, 64
  %v2738 = vpop.permute.xlu0 %2737
  %2741 = vrot.lane.b32.xlu0 %v2726, 96
  %v2742 = vpop.permute.xlu0 %2741
  %2745 = vrot.lane.b32.xlu0 %v2728, 32
  %v2746 = vpop.permute.xlu0 %2745
  %2749 = vrot.lane.b32.xlu0 %v2729, 64
  %v2750 = vpop.permute.xlu0 %2749
  %2753 = vrot.lane.b32.xlu0 %v2730, 96
  %v2754 = vpop.permute.xlu0 %2753
  %v2756 = vsel %vm646, %v2723, %v2734
  %v2757 = vsel %vm762, %v2756, %v2738
  %v2758 = vsel %vm765, %v2757, %v2742
  %v2759 = vsel %vm646, %v2727, %v2746
  %v2760 = vsel %vm762, %v2759, %v2750
  %v2761 = vsel %vm765, %v2760, %v2754
  %v2762 = vpack.c.bf16 %v2758, %v2758
  %v2763 = vpack.c.bf16 %v2761, %v2761
  %v2764 = vpack.c.bf16 %v2731, %v2731
  %v2765 = vld [vmem:[%s6] sm:$0xf]
  %v2766 = vld [vmem:[%s6 + $0x4] sm:$0xf]
  %v2767 = vld [vmem:[%s6 + $0x8] sm:$0xf]
  %v2768 = vld [vmem:[%s6 + $0xc] sm:$0xf]
  %v2769 = vld [vmem:[%s6 + $0x10] sm:$0xf]
  %v2770 = vld [vmem:[%s6 + $0x14] sm:$0xf]
  %v2771 = vld [vmem:[%s6 + $0x18] sm:$0xf]
  %v2772 = vld [vmem:[%s6 + $0x1c] sm:$0xf]
  %v2773 = vld [vmem:[%s6 + $0x20] sm:$0xf]
  %v2774 = vld [vmem:[%s6 + $0x24] sm:$0xf]
  %v2775 = vld [vmem:[%s6 + $0x28] sm:$0xf]
  %v2776 = vld [vmem:[%s6 + $0x2c] sm:$0xf]
  %v2777 = vld [vmem:[%s6 + $0x30] sm:$0xf]
  %v2778 = vld [vmem:[%s6 + $0x34] sm:$0xf]
  %v2779 = vld [vmem:[%s6 + $0x38] sm:$0xf]
  %v2780 = vld [vmem:[%s6 + $0x3c] sm:$0xf]
  %v2781 = vld [vmem:[%s6 + $0x40] sm:$0xf]
  %v2782 = vld [vmem:[%s6 + $0x44] sm:$0xf]
  %v2783 = vld [vmem:[%s6 + $0x48] sm:$0xf]
  %v2784 = vld [vmem:[%s6 + $0x4c] sm:$0xf]
  %v2785 = vld [vmem:[%s6 + $0x50] sm:$0xf]
  %v2786 = vld [vmem:[%s6 + $0x54] sm:$0xf]
  %v2787 = vld [vmem:[%s6 + $0x58] sm:$0xf]
  %v2788 = vld [vmem:[%s6 + $0x5c] sm:$0xf]
  %v2789 = vld [vmem:[%s6 + $0x60] sm:$0xf]
  %v2790 = vld [vmem:[%s6 + $0x64] sm:$0xf]
  %v2791 = vld [vmem:[%s6 + $0x68] sm:$0xf]
  %v2792 = vld [vmem:[%s6 + $0x6c] sm:$0xf]
  %v2793 = vld [vmem:[%s6 + $0x70] sm:$0xf]
  %v2794 = vld [vmem:[%s6 + $0x74] sm:$0xf]
  %v2795 = vld [vmem:[%s6 + $0x78] sm:$0xf]
  %v2796 = vld [vmem:[%s6 + $0x7c] sm:$0xf]
  %v2797 = vld [vmem:[%s6 + $0x80] sm:$0xf]
  %v2798 = vld [vmem:[%s6 + $0x84] sm:$0xf]
  %v2799 = vld [vmem:[%s6 + $0x88] sm:$0xf]
  %v2800 = vld [vmem:[%s6 + $0x8c] sm:$0xf]
  %v2837 = vunpack.c.l.b16 %v2765
  %v2838 = vunpack.c.l.b16 %v2766
  %v2839 = vunpack.c.l.b16 %v2767
  %v2840 = vunpack.c.l.b16 %v2768
  %v2841 = vunpack.c.l.b16 %v2769
  %v2842 = vunpack.c.l.b16 %v2770
  %v2843 = vunpack.c.l.b16 %v2771
  %v2844 = vunpack.c.l.b16 %v2772
  %v2845 = vunpack.c.l.b16 %v2773
  %v2846 = vunpack.c.l.b16 %v2774
  %v2847 = vunpack.c.l.b16 %v2775
  %v2848 = vunpack.c.l.b16 %v2776
  %v2849 = vunpack.c.l.b16 %v2777
  %v2850 = vunpack.c.l.b16 %v2778
  %v2851 = vunpack.c.l.b16 %v2779
  %v2852 = vunpack.c.l.b16 %v2780
  %v2853 = vunpack.c.l.b16 %v2781
  %v2854 = vunpack.c.l.b16 %v2782
  %v2855 = vunpack.c.l.b16 %v2783
  %v2856 = vunpack.c.l.b16 %v2784
  %v2857 = vunpack.c.l.b16 %v2785
  %v2858 = vunpack.c.l.b16 %v2786
  %v2859 = vunpack.c.l.b16 %v2787
  %v2860 = vunpack.c.l.b16 %v2788
  %v2861 = vunpack.c.l.b16 %v2789
  %v2862 = vunpack.c.l.b16 %v2790
  %v2863 = vunpack.c.l.b16 %v2791
  %v2864 = vunpack.c.l.b16 %v2792
  %v2865 = vunpack.c.l.b16 %v2793
  %v2866 = vunpack.c.l.b16 %v2794
  %v2867 = vunpack.c.l.b16 %v2795
  %v2868 = vunpack.c.l.b16 %v2796
  %v2869 = vunpack.c.l.b16 %v2797
  %v2870 = vunpack.c.l.b16 %v2798
  %v2871 = vunpack.c.l.b16 %v2799
  %v2872 = vunpack.c.l.b16 %v2800
  %v2873 = vpack.c.b16 %v2838, %v2837
  %v2874 = vpack.c.b16 %v2840, %v2839
  %v2875 = vpack.c.b16 %v2842, %v2841
  %v2876 = vpack.c.b16 %v2844, %v2843
  %v2877 = vpack.c.b16 %v2846, %v2845
  %v2878 = vpack.c.b16 %v2848, %v2847
  %v2879 = vpack.c.b16 %v2850, %v2849
  %v2880 = vpack.c.b16 %v2852, %v2851
  %v2881 = vpack.c.b16 %v2854, %v2853
  %v2882 = vpack.c.b16 %v2856, %v2855
  %v2883 = vpack.c.b16 %v2858, %v2857
  %v2884 = vpack.c.b16 %v2860, %v2859
  %v2885 = vpack.c.b16 %v2862, %v2861
  %v2886 = vpack.c.b16 %v2864, %v2863
  %v2887 = vpack.c.b16 %v2866, %v2865
  %v2888 = vpack.c.b16 %v2868, %v2867
  %v2889 = vpack.c.b16 %v2870, %v2869
  %v2890 = vpack.c.b16 %v2872, %v2871
  %v2910 = vsel %vm646, %v2764, 0
  %2912 = vmatprep.subr.bf16.mxu0 0
  %2913 = vmatpush1.bf16.msra.mxu0 %v2873
  %2914 = vmatprep.subr.bf16.mxu0 0
  %2915 = vmatpush1.bf16.msra.mxu0 %v2874
  %2916 = vmatprep.subr.bf16.mxu0 0
  %2917 = vmatpush1.bf16.msra.mxu0 %v2875
  %2918 = vmatprep.subr.bf16.mxu0 0
  %2919 = vmatpush1.bf16.msra.mxu0 %v2876
  %2920 = vmatprep.subr.bf16.mxu0 0
  %2921 = vmatpush1.bf16.msra.mxu0 %v2877
  %2922 = vmatprep.subr.bf16.mxu0 0
  %2923 = vmatpush1.bf16.msra.mxu0 %v2878
  %2924 = vmatprep.subr.bf16.mxu0 0
  %2925 = vmatpush1.bf16.msra.mxu0 %v2879
  %2926 = vmatprep.subr.bf16.mxu0 0
  %2927 = vmatpush1.bf16.msra.mxu0 %v2880
  %2928 = vmatprep.subr.bf16.mxu0 0
  %2929 = vmatpush1.bf16.msra.mxu0 %v2881
  %2930 = vmatprep.subr.bf16.mxu0 0
  %2931 = vmatpush1.bf16.msra.mxu0 %v2882
  %2932 = vmatprep.subr.bf16.mxu0 0
  %2933 = vmatpush1.bf16.msra.mxu0 %v2883
  %2934 = vmatprep.subr.bf16.mxu0 0
  %2935 = vmatpush1.bf16.msra.mxu0 %v2884
  %2936 = vmatprep.subr.bf16.mxu0 0
  %2937 = vmatpush1.bf16.msra.mxu0 %v2885
  %2938 = vmatprep.subr.bf16.mxu0 0
  %2939 = vmatpush1.bf16.msra.mxu0 %v2886
  %2940 = vmatprep.subr.bf16.mxu0 0
  %2941 = vmatpush1.bf16.msra.mxu0 %v2887
  %2942 = vmatprep.subr.bf16.mxu0 0
  %2943 = vmatpush1.bf16.msra.mxu0 %v2888
  %2944 = vmatprep.mubr.bf16.mxu0 %v2763
  %2945 = vmatmul.mubr.bf16.gmra.mrb[0].mxu0 %v2762
  %v2946 = vpop.f32.mrb[0].mxu0
  %v2947 = vadd.f32 0.0, %v2946
  %v2948 = vpop.f32.mrb[0].mxu0
  %v2949 = vpop.f32.mrb[0].mxu0
  %v2950 = vpop.f32.mrb[0].mxu0
  %2951 = vdwg.mxu0
  %2952 = vmatprep.subr.bf16.mxu0 0
  %2953 = vmatpush1.bf16.msra.mxu0 %v2889
  %2954 = vmatprep.subr.bf16.mxu0 0
  %2955 = vmatpush1.bf16.msra.mxu0 %v2890
  %2956 = vmatprep.subr.bf16.mxu0 0
  %2957 = vmatpush1.bf16.msra.mxu0 0
  %2958 = vmatprep.subr.bf16.mxu0 0
  %2959 = vmatpush1.bf16.msra.mxu0 0
  %2960 = vmatprep.subr.bf16.mxu0 0
  %2961 = vmatpush1.bf16.msra.mxu0 0
  %2962 = vmatprep.subr.bf16.mxu0 0
  %2963 = vmatpush1.bf16.msra.mxu0 0
  %2964 = vmatprep.subr.bf16.mxu0 0
  %2965 = vmatpush1.bf16.msra.mxu0 0
  %2966 = vmatprep.subr.bf16.mxu0 0
  %2967 = vmatpush1.bf16.msra.mxu0 0
  %2968 = vmatprep.subr.bf16.mxu0 0
  %2969 = vmatpush1.bf16.msra.mxu0 0
  %2970 = vmatprep.subr.bf16.mxu0 0
  %2971 = vmatpush1.bf16.msra.mxu0 0
  %2972 = vmatprep.subr.bf16.mxu0 0
  %2973 = vmatpush1.bf16.msra.mxu0 0
  %2974 = vmatprep.subr.bf16.mxu0 0
  %2975 = vmatpush1.bf16.msra.mxu0 0
  %2976 = vmatprep.subr.bf16.mxu0 0
  %2977 = vmatpush1.bf16.msra.mxu0 0
  %2978 = vmatprep.subr.bf16.mxu0 0
  %2979 = vmatpush1.bf16.msra.mxu0 0
  %2980 = vmatprep.subr.bf16.mxu0 0
  %2981 = vmatpush1.bf16.msra.mxu0 0
  %2982 = vmatprep.subr.bf16.mxu0 0
  %2983 = vmatpush1.bf16.msra.mxu0 0
  %2984 = vmatprep.mubr.bf16.mxu0 0
  %2985 = vmatmul.mubr.bf16.gmra.mrb[0].mxu0 %v2910
  %v2986 = vpop.f32.mrb[0].mxu0
  %v2987 = vadd.f32 %v2947, %v2986
  %v2988 = vpop.f32.mrb[0].mxu0
  %v2989 = vpop.f32.mrb[0].mxu0
  %v2990 = vpop.f32.mrb[0].mxu0
  %2991 = vdwg.mxu0
  %2992 = vst.msk [vmem:[#allocation4] sm:$0xff] %vm646, %v2987
  %v2993 = vld [vmem:[#allocation3 + $0xc] sm:$0xff]
  %v2994 = vld [vmem:[#allocation3 + $0xe] sm:$0xff]
  %v2995 = vld [vmem:[#allocation3 + $0x10] sm:$0xff]
  %v2996 = vld [vmem:[#allocation3 + $0x18] sm:$0xff]
  %v2997 = vld [vmem:[#allocation3 + $0x1a] sm:$0xff]
  %v2998 = vld [vmem:[#allocation3 + $0x1c] sm:$0xff]
  %v2999 = vld [vmem:[#allocation3 + $0x24] sm:$0xff]
  %v3000 = vld [vmem:[#allocation3 + $0x26] sm:$0xff]
  %v3001 = vld [vmem:[#allocation3 + $0x28] sm:$0xff]
  %3003 = vrot.lane.b32.xlu0 %v2994, 32
  %v3004 = vpop.permute.xlu0 %3003
  %3007 = vrot.lane.b32.xlu0 %v2995, 64
  %v3008 = vpop.permute.xlu0 %3007
  %3011 = vrot.lane.b32.xlu0 %v2996, 96
  %v3012 = vpop.permute.xlu0 %3011
  %3015 = vrot.lane.b32.xlu0 %v2998, 32
  %v3016 = vpop.permute.xlu0 %3015
  %3019 = vrot.lane.b32.xlu0 %v2999, 64
  %v3020 = vpop.permute.xlu0 %3019
  %3023 = vrot.lane.b32.xlu0 %v3000, 96
  %v3024 = vpop.permute.xlu0 %3023
  %v3026 = vsel %vm646, %v2993, %v3004
  %v3027 = vsel %vm762, %v3026, %v3008
  %v3028 = vsel %vm765, %v3027, %v3012
  %v3029 = vsel %vm646, %v2997, %v3016
  %v3030 = vsel %vm762, %v3029, %v3020
  %v3031 = vsel %vm765, %v3030, %v3024
  %v3032 = vpack.c.bf16 %v3028, %v3028
  %v3033 = vpack.c.bf16 %v3031, %v3031
  %v3034 = vpack.c.bf16 %v3001, %v3001
  %v3035 = vld [vmem:[%s6] sm:$0xf]
  %v3036 = vld [vmem:[%s6 + $0x4] sm:$0xf]
  %v3037 = vld [vmem:[%s6 + $0x8] sm:$0xf]
  %v3038 = vld [vmem:[%s6 + $0xc] sm:$0xf]
  %v3039 = vld [vmem:[%s6 + $0x10] sm:$0xf]
  %v3040 = vld [vmem:[%s6 + $0x14] sm:$0xf]
  %v3041 = vld [vmem:[%s6 + $0x18] sm:$0xf]
  %v3042 = vld [vmem:[%s6 + $0x1c] sm:$0xf]
  %v3043 = vld [vmem:[%s6 + $0x20] sm:$0xf]
  %v3044 = vld [vmem:[%s6 + $0x24] sm:$0xf]
  %v3045 = vld [vmem:[%s6 + $0x28] sm:$0xf]
  %v3046 = vld [vmem:[%s6 + $0x2c] sm:$0xf]
  %v3047 = vld [vmem:[%s6 + $0x30] sm:$0xf]
  %v3048 = vld [vmem:[%s6 + $0x34] sm:$0xf]
  %v3049 = vld [vmem:[%s6 + $0x38] sm:$0xf]
  %v3050 = vld [vmem:[%s6 + $0x3c] sm:$0xf]
  %v3051 = vld [vmem:[%s6 + $0x40] sm:$0xf]
  %v3052 = vld [vmem:[%s6 + $0x44] sm:$0xf]
  %v3053 = vld [vmem:[%s6 + $0x48] sm:$0xf]
  %v3054 = vld [vmem:[%s6 + $0x4c] sm:$0xf]
  %v3055 = vld [vmem:[%s6 + $0x50] sm:$0xf]
  %v3056 = vld [vmem:[%s6 + $0x54] sm:$0xf]
  %v3057 = vld [vmem:[%s6 + $0x58] sm:$0xf]
  %v3058 = vld [vmem:[%s6 + $0x5c] sm:$0xf]
  %v3059 = vld [vmem:[%s6 + $0x60] sm:$0xf]
  %v3060 = vld [vmem:[%s6 + $0x64] sm:$0xf]
  %v3061 = vld [vmem:[%s6 + $0x68] sm:$0xf]
  %v3062 = vld [vmem:[%s6 + $0x6c] sm:$0xf]
  %v3063 = vld [vmem:[%s6 + $0x70] sm:$0xf]
  %v3064 = vld [vmem:[%s6 + $0x74] sm:$0xf]
  %v3065 = vld [vmem:[%s6 + $0x78] sm:$0xf]
  %v3066 = vld [vmem:[%s6 + $0x7c] sm:$0xf]
  %v3067 = vld [vmem:[%s6 + $0x80] sm:$0xf]
  %v3068 = vld [vmem:[%s6 + $0x84] sm:$0xf]
  %v3069 = vld [vmem:[%s6 + $0x88] sm:$0xf]
  %v3070 = vld [vmem:[%s6 + $0x8c] sm:$0xf]
  %v3107 = vunpack.c.l.b16 %v3035
  %v3108 = vunpack.c.l.b16 %v3036
  %v3109 = vunpack.c.l.b16 %v3037
  %v3110 = vunpack.c.l.b16 %v3038
  %v3111 = vunpack.c.l.b16 %v3039
  %v3112 = vunpack.c.l.b16 %v3040
  %v3113 = vunpack.c.l.b16 %v3041
  %v3114 = vunpack.c.l.b16 %v3042
  %v3115 = vunpack.c.l.b16 %v3043
  %v3116 = vunpack.c.l.b16 %v3044
  %v3117 = vunpack.c.l.b16 %v3045
  %v3118 = vunpack.c.l.b16 %v3046
  %v3119 = vunpack.c.l.b16 %v3047
  %v3120 = vunpack.c.l.b16 %v3048
  %v3121 = vunpack.c.l.b16 %v3049
  %v3122 = vunpack.c.l.b16 %v3050
  %v3123 = vunpack.c.l.b16 %v3051
  %v3124 = vunpack.c.l.b16 %v3052
  %v3125 = vunpack.c.l.b16 %v3053
  %v3126 = vunpack.c.l.b16 %v3054
  %v3127 = vunpack.c.l.b16 %v3055
  %v3128 = vunpack.c.l.b16 %v3056
  %v3129 = vunpack.c.l.b16 %v3057
  %v3130 = vunpack.c.l.b16 %v3058
  %v3131 = vunpack.c.l.b16 %v3059
  %v3132 = vunpack.c.l.b16 %v3060
  %v3133 = vunpack.c.l.b16 %v3061
  %v3134 = vunpack.c.l.b16 %v3062
  %v3135 = vunpack.c.l.b16 %v3063
  %v3136 = vunpack.c.l.b16 %v3064
  %v3137 = vunpack.c.l.b16 %v3065
  %v3138 = vunpack.c.l.b16 %v3066
  %v3139 = vunpack.c.l.b16 %v3067
  %v3140 = vunpack.c.l.b16 %v3068
  %v3141 = vunpack.c.l.b16 %v3069
  %v3142 = vunpack.c.l.b16 %v3070
  %v3143 = vpack.c.b16 %v3108, %v3107
  %v3144 = vpack.c.b16 %v3110, %v3109
  %v3145 = vpack.c.b16 %v3112, %v3111
  %v3146 = vpack.c.b16 %v3114, %v3113
  %v3147 = vpack.c.b16 %v3116, %v3115
  %v3148 = vpack.c.b16 %v3118, %v3117
  %v3149 = vpack.c.b16 %v3120, %v3119
  %v3150 = vpack.c.b16 %v3122, %v3121
  %v3151 = vpack.c.b16 %v3124, %v3123
  %v3152 = vpack.c.b16 %v3126, %v3125
  %v3153 = vpack.c.b16 %v3128, %v3127
  %v3154 = vpack.c.b16 %v3130, %v3129
  %v3155 = vpack.c.b16 %v3132, %v3131
  %v3156 = vpack.c.b16 %v3134, %v3133
  %v3157 = vpack.c.b16 %v3136, %v3135
  %v3158 = vpack.c.b16 %v3138, %v3137
  %v3159 = vpack.c.b16 %v3140, %v3139
  %v3160 = vpack.c.b16 %v3142, %v3141
  %v3180 = vsel %vm646, %v3034, 0
  %3182 = vmatprep.subr.bf16.mxu0 0
  %3183 = vmatpush1.bf16.msra.mxu0 %v3143
  %3184 = vmatprep.subr.bf16.mxu0 0
  %3185 = vmatpush1.bf16.msra.mxu0 %v3144
  %3186 = vmatprep.subr.bf16.mxu0 0
  %3187 = vmatpush1.bf16.msra.mxu0 %v3145
  %3188 = vmatprep.subr.bf16.mxu0 0
  %3189 = vmatpush1.bf16.msra.mxu0 %v3146
  %3190 = vmatprep.subr.bf16.mxu0 0
  %3191 = vmatpush1.bf16.msra.mxu0 %v3147
  %3192 = vmatprep.subr.bf16.mxu0 0
  %3193 = vmatpush1.bf16.msra.mxu0 %v3148
  %3194 = vmatprep.subr.bf16.mxu0 0
  %3195 = vmatpush1.bf16.msra.mxu0 %v3149
  %3196 = vmatprep.subr.bf16.mxu0 0
  %3197 = vmatpush1.bf16.msra.mxu0 %v3150
  %3198 = vmatprep.subr.bf16.mxu0 0
  %3199 = vmatpush1.bf16.msra.mxu0 %v3151
  %3200 = vmatprep.subr.bf16.mxu0 0
  %3201 = vmatpush1.bf16.msra.mxu0 %v3152
  %3202 = vmatprep.subr.bf16.mxu0 0
  %3203 = vmatpush1.bf16.msra.mxu0 %v3153
  %3204 = vmatprep.subr.bf16.mxu0 0
  %3205 = vmatpush1.bf16.msra.mxu0 %v3154
  %3206 = vmatprep.subr.bf16.mxu0 0
  %3207 = vmatpush1.bf16.msra.mxu0 %v3155
  %3208 = vmatprep.subr.bf16.mxu0 0
  %3209 = vmatpush1.bf16.msra.mxu0 %v3156
  %3210 = vmatprep.subr.bf16.mxu0 0
  %3211 = vmatpush1.bf16.msra.mxu0 %v3157
  %3212 = vmatprep.subr.bf16.mxu0 0
  %3213 = vmatpush1.bf16.msra.mxu0 %v3158
  %3214 = vmatprep.mubr.bf16.mxu0 %v3033
  %3215 = vmatmul.mubr.bf16.gmra.mrb[0].mxu0 %v3032
  %v3216 = vpop.f32.mrb[0].mxu0
  %v3217 = vadd.f32 0.0, %v3216
  %v3218 = vpop.f32.mrb[0].mxu0
  %v3219 = vpop.f32.mrb[0].mxu0
  %v3220 = vpop.f32.mrb[0].mxu0
  %3221 = vdwg.mxu0
  %3222 = vmatprep.subr.bf16.mxu0 0
  %3223 = vmatpush1.bf16.msra.mxu0 %v3159
  %3224 = vmatprep.subr.bf16.mxu0 0
  %3225 = vmatpush1.bf16.msra.mxu0 %v3160
  %3226 = vmatprep.subr.bf16.mxu0 0
  %3227 = vmatpush1.bf16.msra.mxu0 0
  %3228 = vmatprep.subr.bf16.mxu0 0
  %3229 = vmatpush1.bf16.msra.mxu0 0
  %3230 = vmatprep.subr.bf16.mxu0 0
  %3231 = vmatpush1.bf16.msra.mxu0 0
  %3232 = vmatprep.subr.bf16.mxu0 0
  %3233 = vmatpush1.bf16.msra.mxu0 0
  %3234 = vmatprep.subr.bf16.mxu0 0
  %3235 = vmatpush1.bf16.msra.mxu0 0
  %3236 = vmatprep.subr.bf16.mxu0 0
  %3237 = vmatpush1.bf16.msra.mxu0 0
  %3238 = vmatprep.subr.bf16.mxu0 0
  %3239 = vmatpush1.bf16.msra.mxu0 0
  %3240 = vmatprep.subr.bf16.mxu0 0
  %3241 = vmatpush1.bf16.msra.mxu0 0
  %3242 = vmatprep.subr.bf16.mxu0 0
  %3243 = vmatpush1.bf16.msra.mxu0 0
  %3244 = vmatprep.subr.bf16.mxu0 0
  %3245 = vmatpush1.bf16.msra.mxu0 0
  %3246 = vmatprep.subr.bf16.mxu0 0
  %3247 = vmatpush1.bf16.msra.mxu0 0
  %3248 = vmatprep.subr.bf16.mxu0 0
  %3249 = vmatpush1.bf16.msra.mxu0 0
  %3250 = vmatprep.subr.bf16.mxu0 0
  %3251 = vmatpush1.bf16.msra.mxu0 0
  %3252 = vmatprep.subr.bf16.mxu0 0
  %3253 = vmatpush1.bf16.msra.mxu0 0
  %3254 = vmatprep.mubr.bf16.mxu0 0
  %3255 = vmatmul.mubr.bf16.gmra.mrb[0].mxu0 %v3180
  %v3256 = vpop.f32.mrb[0].mxu0
  %v3257 = vadd.f32 %v3217, %v3256
  %v3258 = vpop.f32.mrb[0].mxu0
  %v3259 = vpop.f32.mrb[0].mxu0
  %v3260 = vpop.f32.mrb[0].mxu0
  %3261 = vdwg.mxu0
  %3262 = vst.msk [vmem:[#allocation4 + $0x8] sm:$0xff] %vm646, %v3257
  %v3263 = vld [vmem:[#allocation3 + $0x18] sm:$0xff]
  %v3264 = vld [vmem:[#allocation3 + $0x1a] sm:$0xff]
  %v3265 = vld [vmem:[#allocation3 + $0x1c] sm:$0xff]
  %v3266 = vld [vmem:[#allocation3 + $0x24] sm:$0xff]
  %v3267 = vld [vmem:[#allocation3 + $0x26] sm:$0xff]
  %v3268 = vld [vmem:[#allocation3 + $0x28] sm:$0xff]
  %v3269 = vld [vmem:[#allocation3 + $0x30] sm:$0xff]
  %v3270 = vld [vmem:[#allocation3 + $0x32] sm:$0xff]
  %v3271 = vld [vmem:[#allocation3 + $0x34] sm:$0xff]
  %3273 = vrot.lane.b32.xlu0 %v3264, 32
  %v3274 = vpop.permute.xlu0 %3273
  %3277 = vrot.lane.b32.xlu0 %v3265, 64
  %v3278 = vpop.permute.xlu0 %3277
  %3281 = vrot.lane.b32.xlu0 %v3266, 96
  %v3282 = vpop.permute.xlu0 %3281
  %3285 = vrot.lane.b32.xlu0 %v3268, 32
  %v3286 = vpop.permute.xlu0 %3285
  %3289 = vrot.lane.b32.xlu0 %v3269, 64
  %v3290 = vpop.permute.xlu0 %3289
  %3293 = vrot.lane.b32.xlu0 %v3270, 96
  %v3294 = vpop.permute.xlu0 %3293
  %v3296 = vsel %vm646, %v3263, %v3274
  %v3297 = vsel %vm762, %v3296, %v3278
  %v3298 = vsel %vm765, %v3297, %v3282
  %v3299 = vsel %vm646, %v3267, %v3286
  %v3300 = vsel %vm762, %v3299, %v3290
  %v3301 = vsel %vm765, %v3300, %v3294
  %v3302 = vpack.c.bf16 %v3298, %v3298
  %v3303 = vpack.c.bf16 %v3301, %v3301
  %v3304 = vpack.c.bf16 %v3271, %v3271
  %v3305 = vld [vmem:[%s6] sm:$0xf]
  %v3306 = vld [vmem:[%s6 + $0x4] sm:$0xf]
  %v3307 = vld [vmem:[%s6 + $0x8] sm:$0xf]
  %v3308 = vld [vmem:[%s6 + $0xc] sm:$0xf]
  %v3309 = vld [vmem:[%s6 + $0x10] sm:$0xf]
  %v3310 = vld [vmem:[%s6 + $0x14] sm:$0xf]
  %v3311 = vld [vmem:[%s6 + $0x18] sm:$0xf]
  %v3312 = vld [vmem:[%s6 + $0x1c] sm:$0xf]
  %v3313 = vld [vmem:[%s6 + $0x20] sm:$0xf]
  %v3314 = vld [vmem:[%s6 + $0x24] sm:$0xf]
  %v3315 = vld [vmem:[%s6 + $0x28] sm:$0xf]
  %v3316 = vld [vmem:[%s6 + $0x2c] sm:$0xf]
  %v3317 = vld [vmem:[%s6 + $0x30] sm:$0xf]
  %v3318 = vld [vmem:[%s6 + $0x34] sm:$0xf]
  %v3319 = vld [vmem:[%s6 + $0x38] sm:$0xf]
  %v3320 = vld [vmem:[%s6 + $0x3c] sm:$0xf]
  %v3321 = vld [vmem:[%s6 + $0x40] sm:$0xf]
  %v3322 = vld [vmem:[%s6 + $0x44] sm:$0xf]
  %v3323 = vld [vmem:[%s6 + $0x48] sm:$0xf]
  %v3324 = vld [vmem:[%s6 + $0x4c] sm:$0xf]
  %v3325 = vld [vmem:[%s6 + $0x50] sm:$0xf]
  %v3326 = vld [vmem:[%s6 + $0x54] sm:$0xf]
  %v3327 = vld [vmem:[%s6 + $0x58] sm:$0xf]
  %v3328 = vld [vmem:[%s6 + $0x5c] sm:$0xf]
  %v3329 = vld [vmem:[%s6 + $0x60] sm:$0xf]
  %v3330 = vld [vmem:[%s6 + $0x64] sm:$0xf]
  %v3331 = vld [vmem:[%s6 + $0x68] sm:$0xf]
  %v3332 = vld [vmem:[%s6 + $0x6c] sm:$0xf]
  %v3333 = vld [vmem:[%s6 + $0x70] sm:$0xf]
  %v3334 = vld [vmem:[%s6 + $0x74] sm:$0xf]
  %v3335 = vld [vmem:[%s6 + $0x78] sm:$0xf]
  %v3336 = vld [vmem:[%s6 + $0x7c] sm:$0xf]
  %v3337 = vld [vmem:[%s6 + $0x80] sm:$0xf]
  %v3338 = vld [vmem:[%s6 + $0x84] sm:$0xf]
  %v3339 = vld [vmem:[%s6 + $0x88] sm:$0xf]
  %v3340 = vld [vmem:[%s6 + $0x8c] sm:$0xf]
  %v3377 = vunpack.c.l.b16 %v3305
  %v3378 = vunpack.c.l.b16 %v3306
  %v3379 = vunpack.c.l.b16 %v3307
  %v3380 = vunpack.c.l.b16 %v3308
  %v3381 = vunpack.c.l.b16 %v3309
  %v3382 = vunpack.c.l.b16 %v3310
  %v3383 = vunpack.c.l.b16 %v3311
  %v3384 = vunpack.c.l.b16 %v3312
  %v3385 = vunpack.c.l.b16 %v3313
  %v3386 = vunpack.c.l.b16 %v3314
  %v3387 = vunpack.c.l.b16 %v3315
  %v3388 = vunpack.c.l.b16 %v3316
  %v3389 = vunpack.c.l.b16 %v3317
  %v3390 = vunpack.c.l.b16 %v3318
  %v3391 = vunpack.c.l.b16 %v3319
  %v3392 = vunpack.c.l.b16 %v3320
  %v3393 = vunpack.c.l.b16 %v3321
  %v3394 = vunpack.c.l.b16 %v3322
  %v3395 = vunpack.c.l.b16 %v3323
  %v3396 = vunpack.c.l.b16 %v3324
  %v3397 = vunpack.c.l.b16 %v3325
  %v3398 = vunpack.c.l.b16 %v3326
  %v3399 = vunpack.c.l.b16 %v3327
  %v3400 = vunpack.c.l.b16 %v3328
  %v3401 = vunpack.c.l.b16 %v3329
  %v3402 = vunpack.c.l.b16 %v3330
  %v3403 = vunpack.c.l.b16 %v3331
  %v3404 = vunpack.c.l.b16 %v3332
  %v3405 = vunpack.c.l.b16 %v3333
  %v3406 = vunpack.c.l.b16 %v3334
  %v3407 = vunpack.c.l.b16 %v3335
  %v3408 = vunpack.c.l.b16 %v3336
  %v3409 = vunpack.c.l.b16 %v3337
  %v3410 = vunpack.c.l.b16 %v3338
  %v3411 = vunpack.c.l.b16 %v3339
  %v3412 = vunpack.c.l.b16 %v3340
  %v3413 = vpack.c.b16 %v3378, %v3377
  %v3414 = vpack.c.b16 %v3380, %v3379
  %v3415 = vpack.c.b16 %v3382, %v3381
  %v3416 = vpack.c.b16 %v3384, %v3383
  %v3417 = vpack.c.b16 %v3386, %v3385
  %v3418 = vpack.c.b16 %v3388, %v3387
  %v3419 = vpack.c.b16 %v3390, %v3389
  %v3420 = vpack.c.b16 %v3392, %v3391
  %v3421 = vpack.c.b16 %v3394, %v3393
  %v3422 = vpack.c.b16 %v3396, %v3395
  %v3423 = vpack.c.b16 %v3398, %v3397
  %v3424 = vpack.c.b16 %v3400, %v3399
  %v3425 = vpack.c.b16 %v3402, %v3401
  %v3426 = vpack.c.b16 %v3404, %v3403
  %v3427 = vpack.c.b16 %v3406, %v3405
  %v3428 = vpack.c.b16 %v3408, %v3407
  %v3429 = vpack.c.b16 %v3410, %v3409
  %v3430 = vpack.c.b16 %v3412, %v3411
  %v3450 = vsel %vm646, %v3304, 0
  %3452 = vmatprep.subr.bf16.mxu0 0
  %3453 = vmatpush1.bf16.msra.mxu0 %v3413
  %3454 = vmatprep.subr.bf16.mxu0 0
  %3455 = vmatpush1.bf16.msra.mxu0 %v3414
  %3456 = vmatprep.subr.bf16.mxu0 0
  %3457 = vmatpush1.bf16.msra.mxu0 %v3415
  %3458 = vmatprep.subr.bf16.mxu0 0
  %3459 = vmatpush1.bf16.msra.mxu0 %v3416
  %3460 = vmatprep.subr.bf16.mxu0 0
  %3461 = vmatpush1.bf16.msra.mxu0 %v3417
  %3462 = vmatprep.subr.bf16.mxu0 0
  %3463 = vmatpush1.bf16.msra.mxu0 %v3418
  %3464 = vmatprep.subr.bf16.mxu0 0
  %3465 = vmatpush1.bf16.msra.mxu0 %v3419
  %3466 = vmatprep.subr.bf16.mxu0 0
  %3467 = vmatpush1.bf16.msra.mxu0 %v3420
  %3468 = vmatprep.subr.bf16.mxu0 0
  %3469 = vmatpush1.bf16.msra.mxu0 %v3421
  %3470 = vmatprep.subr.bf16.mxu0 0
  %3471 = vmatpush1.bf16.msra.mxu0 %v3422
  %3472 = vmatprep.subr.bf16.mxu0 0
  %3473 = vmatpush1.bf16.msra.mxu0 %v3423
  %3474 = vmatprep.subr.bf16.mxu0 0
  %3475 = vmatpush1.bf16.msra.mxu0 %v3424
  %3476 = vmatprep.subr.bf16.mxu0 0
  %3477 = vmatpush1.bf16.msra.mxu0 %v3425
  %3478 = vmatprep.subr.bf16.mxu0 0
  %3479 = vmatpush1.bf16.msra.mxu0 %v3426
  %3480 = vmatprep.subr.bf16.mxu0 0
  %3481 = vmatpush1.bf16.msra.mxu0 %v3427
  %3482 = vmatprep.subr.bf16.mxu0 0
  %3483 = vmatpush1.bf16.msra.mxu0 %v3428
  %3484 = vmatprep.mubr.bf16.mxu0 %v3303
  %3485 = vmatmul.mubr.bf16.gmra.mrb[0].mxu0 %v3302
  %v3486 = vpop.f32.mrb[0].mxu0
  %v3487 = vadd.f32 0.0, %v3486
  %v3488 = vpop.f32.mrb[0].mxu0
  %v3489 = vpop.f32.mrb[0].mxu0
  %v3490 = vpop.f32.mrb[0].mxu0
  %3491 = vdwg.mxu0
  %3492 = vmatprep.subr.bf16.mxu0 0
  %3493 = vmatpush1.bf16.msra.mxu0 %v3429
  %3494 = vmatprep.subr.bf16.mxu0 0
  %3495 = vmatpush1.bf16.msra.mxu0 %v3430
  %3496 = vmatprep.subr.bf16.mxu0 0
  %3497 = vmatpush1.bf16.msra.mxu0 0
  %3498 = vmatprep.subr.bf16.mxu0 0
  %3499 = vmatpush1.bf16.msra.mxu0 0
  %3500 = vmatprep.subr.bf16.mxu0 0
  %3501 = vmatpush1.bf16.msra.mxu0 0
  %3502 = vmatprep.subr.bf16.mxu0 0
  %3503 = vmatpush1.bf16.msra.mxu0 0
  %3504 = vmatprep.subr.bf16.mxu0 0
  %3505 = vmatpush1.bf16.msra.mxu0 0
  %3506 = vmatprep.subr.bf16.mxu0 0
  %3507 = vmatpush1.bf16.msra.mxu0 0
  %3508 = vmatprep.subr.bf16.mxu0 0
  %3509 = vmatpush1.bf16.msra.mxu0 0
  %3510 = vmatprep.subr.bf16.mxu0 0
  %3511 = vmatpush1.bf16.msra.mxu0 0
  %3512 = vmatprep.subr.bf16.mxu0 0
  %3513 = vmatpush1.bf16.msra.mxu0 0
  %3514 = vmatprep.subr.bf16.mxu0 0
  %3515 = vmatpush1.bf16.msra.mxu0 0
  %3516 = vmatprep.subr.bf16.mxu0 0
  %3517 = vmatpush1.bf16.msra.mxu0 0
  %3518 = vmatprep.subr.bf16.mxu0 0
  %3519 = vmatpush1.bf16.msra.mxu0 0
  %3520 = vmatprep.subr.bf16.mxu0 0
  %3521 = vmatpush1.bf16.msra.mxu0 0
  %3522 = vmatprep.subr.bf16.mxu0 0
  %3523 = vmatpush1.bf16.msra.mxu0 0
  %3524 = vmatprep.mubr.bf16.mxu0 0
  %3525 = vmatmul.mubr.bf16.gmra.mrb[0].mxu0 %v3450
  %v3526 = vpop.f32.mrb[0].mxu0
  %v3527 = vadd.f32 %v3487, %v3526
  %v3528 = vpop.f32.mrb[0].mxu0
  %v3529 = vpop.f32.mrb[0].mxu0
  %v3530 = vpop.f32.mrb[0].mxu0
  %3531 = vdwg.mxu0
  %3532 = vst.msk [vmem:[#allocation4 + $0x10] sm:$0xff] %vm646, %v3527
  %v3533 = vld [vmem:[#allocation3 + $0x24] sm:$0xff]
  %v3534 = vld [vmem:[#allocation3 + $0x26] sm:$0xff]
  %v3535 = vld [vmem:[#allocation3 + $0x28] sm:$0xff]
  %v3536 = vld [vmem:[#allocation3 + $0x30] sm:$0xff]
  %v3537 = vld [vmem:[#allocation3 + $0x32] sm:$0xff]
  %v3538 = vld [vmem:[#allocation3 + $0x34] sm:$0xff]
  %v3539 = vld [vmem:[#allocation3 + $0x3c] sm:$0xff]
  %v3540 = vld [vmem:[#allocation3 + $0x3e] sm:$0xff]
  %v3541 = vld [vmem:[#allocation3 + $0x40] sm:$0xff]
  %3543 = vrot.lane.b32.xlu0 %v3534, 32
  %v3544 = vpop.permute.xlu0 %3543
  %3547 = vrot.lane.b32.xlu0 %v3535, 64
  %v3548 = vpop.permute.xlu0 %3547
  %3551 = vrot.lane.b32.xlu0 %v3536, 96
  %v3552 = vpop.permute.xlu0 %3551
  %3555 = vrot.lane.b32.xlu0 %v3538, 32
  %v3556 = vpop.permute.xlu0 %3555
  %3559 = vrot.lane.b32.xlu0 %v3539, 64
  %v3560 = vpop.permute.xlu0 %3559
  %3563 = vrot.lane.b32.xlu0 %v3540, 96
  %v3564 = vpop.permute.xlu0 %3563
  %v3566 = vsel %vm646, %v3533, %v3544
  %v3567 = vsel %vm762, %v3566, %v3548
  %v3568 = vsel %vm765, %v3567, %v3552
  %v3569 = vsel %vm646, %v3537, %v3556
  %v3570 = vsel %vm762, %v3569, %v3560
  %v3571 = vsel %vm765, %v3570, %v3564
  %v3572 = vpack.c.bf16 %v3568, %v3568
  %v3573 = vpack.c.bf16 %v3571, %v3571
  %v3574 = vpack.c.bf16 %v3541, %v3541
  %v3575 = vld [vmem:[%s6] sm:$0xf]
  %v3576 = vld [vmem:[%s6 + $0x4] sm:$0xf]
  %v3577 = vld [vmem:[%s6 + $0x8] sm:$0xf]
  %v3578 = vld [vmem:[%s6 + $0xc] sm:$0xf]
  %v3579 = vld [vmem:[%s6 + $0x10] sm:$0xf]
  %v3580 = vld [vmem:[%s6 + $0x14] sm:$0xf]
  %v3581 = vld [vmem:[%s6 + $0x18] sm:$0xf]
  %v3582 = vld [vmem:[%s6 + $0x1c] sm:$0xf]
  %v3583 = vld [vmem:[%s6 + $0x20] sm:$0xf]
  %v3584 = vld [vmem:[%s6 + $0x24] sm:$0xf]
  %v3585 = vld [vmem:[%s6 + $0x28] sm:$0xf]
  %v3586 = vld [vmem:[%s6 + $0x2c] sm:$0xf]
  %v3587 = vld [vmem:[%s6 + $0x30] sm:$0xf]
  %v3588 = vld [vmem:[%s6 + $0x34] sm:$0xf]
  %v3589 = vld [vmem:[%s6 + $0x38] sm:$0xf]
  %v3590 = vld [vmem:[%s6 + $0x3c] sm:$0xf]
  %v3591 = vld [vmem:[%s6 + $0x40] sm:$0xf]
  %v3592 = vld [vmem:[%s6 + $0x44] sm:$0xf]
  %v3593 = vld [vmem:[%s6 + $0x48] sm:$0xf]
  %v3594 = vld [vmem:[%s6 + $0x4c] sm:$0xf]
  %v3595 = vld [vmem:[%s6 + $0x50] sm:$0xf]
  %v3596 = vld [vmem:[%s6 + $0x54] sm:$0xf]
  %v3597 = vld [vmem:[%s6 + $0x58] sm:$0xf]
  %v3598 = vld [vmem:[%s6 + $0x5c] sm:$0xf]
  %v3599 = vld [vmem:[%s6 + $0x60] sm:$0xf]
  %v3600 = vld [vmem:[%s6 + $0x64] sm:$0xf]
  %v3601 = vld [vmem:[%s6 + $0x68] sm:$0xf]
  %v3602 = vld [vmem:[%s6 + $0x6c] sm:$0xf]
  %v3603 = vld [vmem:[%s6 + $0x70] sm:$0xf]
  %v3604 = vld [vmem:[%s6 + $0x74] sm:$0xf]
  %v3605 = vld [vmem:[%s6 + $0x78] sm:$0xf]
  %v3606 = vld [vmem:[%s6 + $0x7c] sm:$0xf]
  %v3607 = vld [vmem:[%s6 + $0x80] sm:$0xf]
  %v3608 = vld [vmem:[%s6 + $0x84] sm:$0xf]
  %v3609 = vld [vmem:[%s6 + $0x88] sm:$0xf]
  %v3610 = vld [vmem:[%s6 + $0x8c] sm:$0xf]
  %v3647 = vunpack.c.l.b16 %v3575
  %v3648 = vunpack.c.l.b16 %v3576
  %v3649 = vunpack.c.l.b16 %v3577
  %v3650 = vunpack.c.l.b16 %v3578
  %v3651 = vunpack.c.l.b16 %v3579
  %v3652 = vunpack.c.l.b16 %v3580
  %v3653 = vunpack.c.l.b16 %v3581
  %v3654 = vunpack.c.l.b16 %v3582
  %v3655 = vunpack.c.l.b16 %v3583
  %v3656 = vunpack.c.l.b16 %v3584
  %v3657 = vunpack.c.l.b16 %v3585
  %v3658 = vunpack.c.l.b16 %v3586
  %v3659 = vunpack.c.l.b16 %v3587
  %v3660 = vunpack.c.l.b16 %v3588
  %v3661 = vunpack.c.l.b16 %v3589
  %v3662 = vunpack.c.l.b16 %v3590
  %v3663 = vunpack.c.l.b16 %v3591
  %v3664 = vunpack.c.l.b16 %v3592
  %v3665 = vunpack.c.l.b16 %v3593
  %v3666 = vunpack.c.l.b16 %v3594
  %v3667 = vunpack.c.l.b16 %v3595
  %v3668 = vunpack.c.l.b16 %v3596
  %v3669 = vunpack.c.l.b16 %v3597
  %v3670 = vunpack.c.l.b16 %v3598
  %v3671 = vunpack.c.l.b16 %v3599
  %v3672 = vunpack.c.l.b16 %v3600
  %v3673 = vunpack.c.l.b16 %v3601
  %v3674 = vunpack.c.l.b16 %v3602
  %v3675 = vunpack.c.l.b16 %v3603
  %v3676 = vunpack.c.l.b16 %v3604
  %v3677 = vunpack.c.l.b16 %v3605
  %v3678 = vunpack.c.l.b16 %v3606
  %v3679 = vunpack.c.l.b16 %v3607
  %v3680 = vunpack.c.l.b16 %v3608
  %v3681 = vunpack.c.l.b16 %v3609
  %v3682 = vunpack.c.l.b16 %v3610
  %v3683 = vpack.c.b16 %v3648, %v3647
  %v3684 = vpack.c.b16 %v3650, %v3649
  %v3685 = vpack.c.b16 %v3652, %v3651
  %v3686 = vpack.c.b16 %v3654, %v3653
  %v3687 = vpack.c.b16 %v3656, %v3655
  %v3688 = vpack.c.b16 %v3658, %v3657
  %v3689 = vpack.c.b16 %v3660, %v3659
  %v3690 = vpack.c.b16 %v3662, %v3661
  %v3691 = vpack.c.b16 %v3664, %v3663
  %v3692 = vpack.c.b16 %v3666, %v3665
  %v3693 = vpack.c.b16 %v3668, %v3667
  %v3694 = vpack.c.b16 %v3670, %v3669
  %v3695 = vpack.c.b16 %v3672, %v3671
  %v3696 = vpack.c.b16 %v3674, %v3673
  %v3697 = vpack.c.b16 %v3676, %v3675
  %v3698 = vpack.c.b16 %v3678, %v3677
  %v3699 = vpack.c.b16 %v3680, %v3679
  %v3700 = vpack.c.b16 %v3682, %v3681
  %v3720 = vsel %vm646, %v3574, 0
  %3722 = vmatprep.subr.bf16.mxu0 0
  %3723 = vmatpush1.bf16.msra.mxu0 %v3683
  %3724 = vmatprep.subr.bf16.mxu0 0
  %3725 = vmatpush1.bf16.msra.mxu0 %v3684
  %3726 = vmatprep.subr.bf16.mxu0 0
  %3727 = vmatpush1.bf16.msra.mxu0 %v3685
  %3728 = vmatprep.subr.bf16.mxu0 0
  %3729 = vmatpush1.bf16.msra.mxu0 %v3686
  %3730 = vmatprep.subr.bf16.mxu0 0
  %3731 = vmatpush1.bf16.msra.mxu0 %v3687
  %3732 = vmatprep.subr.bf16.mxu0 0
  %3733 = vmatpush1.bf16.msra.mxu0 %v3688
  %3734 = vmatprep.subr.bf16.mxu0 0
  %3735 = vmatpush1.bf16.msra.mxu0 %v3689
  %3736 = vmatprep.subr.bf16.mxu0 0
  %3737 = vmatpush1.bf16.msra.mxu0 %v3690
  %3738 = vmatprep.subr.bf16.mxu0 0
  %3739 = vmatpush1.bf16.msra.mxu0 %v3691
  %3740 = vmatprep.subr.bf16.mxu0 0
  %3741 = vmatpush1.bf16.msra.mxu0 %v3692
  %3742 = vmatprep.subr.bf16.mxu0 0
  %3743 = vmatpush1.bf16.msra.mxu0 %v3693
  %3744 = vmatprep.subr.bf16.mxu0 0
  %3745 = vmatpush1.bf16.msra.mxu0 %v3694
  %3746 = vmatprep.subr.bf16.mxu0 0
  %3747 = vmatpush1.bf16.msra.mxu0 %v3695
  %3748 = vmatprep.subr.bf16.mxu0 0
  %3749 = vmatpush1.bf16.msra.mxu0 %v3696
  %3750 = vmatprep.subr.bf16.mxu0 0
  %3751 = vmatpush1.bf16.msra.mxu0 %v3697
  %3752 = vmatprep.subr.bf16.mxu0 0
  %3753 = vmatpush1.bf16.msra.mxu0 %v3698
  %3754 = vmatprep.mubr.bf16.mxu0 %v3573
  %3755 = vmatmul.mubr.bf16.gmra.mrb[0].mxu0 %v3572
  %v3756 = vpop.f32.mrb[0].mxu0
  %v3757 = vadd.f32 0.0, %v3756
  %v3758 = vpop.f32.mrb[0].mxu0
  %v3759 = vpop.f32.mrb[0].mxu0
  %v3760 = vpop.f32.mrb[0].mxu0
  %3761 = vdwg.mxu0
  %3762 = vmatprep.subr.bf16.mxu0 0
  %3763 = vmatpush1.bf16.msra.mxu0 %v3699
  %3764 = vmatprep.subr.bf16.mxu0 0
  %3765 = vmatpush1.bf16.msra.mxu0 %v3700
  %3766 = vmatprep.subr.bf16.mxu0 0
  %3767 = vmatpush1.bf16.msra.mxu0 0
  %3768 = vmatprep.subr.bf16.mxu0 0
  %3769 = vmatpush1.bf16.msra.mxu0 0
  %3770 = vmatprep.subr.bf16.mxu0 0
  %3771 = vmatpush1.bf16.msra.mxu0 0
  %3772 = vmatprep.subr.bf16.mxu0 0
  %3773 = vmatpush1.bf16.msra.mxu0 0
  %3774 = vmatprep.subr.bf16.mxu0 0
  %3775 = vmatpush1.bf16.msra.mxu0 0
  %3776 = vmatprep.subr.bf16.mxu0 0
  %3777 = vmatpush1.bf16.msra.mxu0 0
  %3778 = vmatprep.subr.bf16.mxu0 0
  %3779 = vmatpush1.bf16.msra.mxu0 0
  %3780 = vmatprep.subr.bf16.mxu0 0
  %3781 = vmatpush1.bf16.msra.mxu0 0
  %3782 = vmatprep.subr.bf16.mxu0 0
  %3783 = vmatpush1.bf16.msra.mxu0 0
  %3784 = vmatprep.subr.bf16.mxu0 0
  %3785 = vmatpush1.bf16.msra.mxu0 0
  %3786 = vmatprep.subr.bf16.mxu0 0
  %3787 = vmatpush1.bf16.msra.mxu0 0
  %3788 = vmatprep.subr.bf16.mxu0 0
  %3789 = vmatpush1.bf16.msra.mxu0 0
  %3790 = vmatprep.subr.bf16.mxu0 0
  %3791 = vmatpush1.bf16.msra.mxu0 0
  %3792 = vmatprep.subr.bf16.mxu0 0
  %3793 = vmatpush1.bf16.msra.mxu0 0
  %3794 = vmatprep.mubr.bf16.mxu0 0
  %3795 = vmatmul.mubr.bf16.gmra.mrb[0].mxu0 %v3720
  %v3796 = vpop.f32.mrb[0].mxu0
  %v3797 = vadd.f32 %v3757, %v3796
  %v3798 = vpop.f32.mrb[0].mxu0
  %v3799 = vpop.f32.mrb[0].mxu0
  %v3800 = vpop.f32.mrb[0].mxu0
  %3801 = vdwg.mxu0
  %3802 = vst.msk [vmem:[#allocation4 + $0x18] sm:$0xff] %vm646, %v3797
  %v3803 = vld [vmem:[#allocation4] sm:$0xff]
  %v3804 = vld [vmem:[#allocation4 + $0x8] sm:$0xff]
  %v3805 = vld [vmem:[#allocation4 + $0x10] sm:$0xff]
  %v3806 = vld [vmem:[#allocation4 + $0x18] sm:$0xff]
  %v3807 = vld [vmem:[%s7] sm:$0x1]
  %v3808 = vld [vmem:[%s8] sm:$0x1]
  %v3809 = vsel %vm646, %v3803, 0.0
  %v3810 = vsel %vm646, %v3804, 0.0
  %v3811 = vadd.f32 %v3809, %v3810
  %v3812 = vsel %vm646, %v3805, 0.0
  %v3813 = vadd.f32 %v3811, %v3812
  %v3814 = vsel %vm646, %v3806, 0.0
  %v3815 = vadd.f32 %v3813, %v3814
  %v3816 = vrot.slane %v3815, 4
  %v3817 = vadd.f32 %v3815, %v3816
  %v3818 = vrot.slane %v3817, 2
  %v3819 = vadd.f32 %v3817, %v3818
  %v3820 = vrot.slane %v3819, 1
  %v3821 = vadd.f32 %v3819, %v3820
  %v3822 = vrcp.pop 32.0
  %v3823 = vmul.f32 %v3821, %v3822
  %v3824 = vsub.f32 %v3803, %v3823
  %v3825 = vsub.f32 %v3804, %v3823
  %v3826 = vsub.f32 %v3805, %v3823
  %v3827 = vsub.f32 %v3806, %v3823
  %v3828 = vmul.f32 %v3824, %v3824
  %v3829 = vmul.f32 %v3825, %v3825
  %v3830 = vmul.f32 %v3826, %v3826
  %v3831 = vmul.f32 %v3827, %v3827
  %v3832 = vsel %vm646, %v3828, 0.0
  %v3833 = vsel %vm646, %v3829, 0.0
  %v3834 = vadd.f32 %v3832, %v3833
  %v3835 = vsel %vm646, %v3830, 0.0
  %v3836 = vadd.f32 %v3834, %v3835
  %v3837 = vsel %vm646, %v3831, 0.0
  %v3838 = vadd.f32 %v3836, %v3837
  %v3839 = vrot.slane %v3838, 4
  %v3840 = vadd.f32 %v3838, %v3839
  %v3841 = vrot.slane %v3840, 2
  %v3842 = vadd.f32 %v3840, %v3841
  %v3843 = vrot.slane %v3842, 1
  %v3844 = vadd.f32 %v3842, %v3843
  %v3845 = vmul.f32 %v3844, %v3822
  %v3846 = vadd.f32 %v3845, 1e-05
  %v3847 = vrsqrt.pop %v3846
  %v3848 = vmul.f32 %v3824, %v3847
  %v3849 = vmul.f32 %v3825, %v3847
  %v3850 = vmul.f32 %v3826, %v3847
  %v3851 = vmul.f32 %v3827, %v3847
  %v3853 = vlaneseq
  %v3854 = vshrl.u32 %v3853, 7
  %v3855 = vsub.s32 0, %v3854
  %v3856 = vrot.slane %v3807, %v3855
  %v3858 = vmul.f32 %v3848, %v3856
  %v3859 = vmul.f32 %v3849, %v3856
  %v3860 = vmul.f32 %v3850, %v3856
  %v3861 = vmul.f32 %v3851, %v3856
  %v3863 = vlaneseq
  %v3864 = vshrl.u32 %v3863, 7
  %v3865 = vsub.s32 0, %v3864
  %v3866 = vrot.slane %v3808, %v3865
  %v3868 = vadd.f32 %v3858, %v3866
  %v3869 = vadd.f32 %v3859, %v3866
  %v3870 = vadd.f32 %v3860, %v3866
  %v3871 = vadd.f32 %v3861, %v3866
  %vm3872 = vcmp.gt.f32.partialorder %v3868, 0.0
  %vm3873 = vcmp.gt.f32.partialorder %v3869, 0.0
  %vm3874 = vcmp.gt.f32.partialorder %v3870, 0.0
  %vm3875 = vcmp.gt.f32.partialorder %v3871, 0.0
  %v3876 = vmul.f32 %v3868, 0.01
  %v3877 = vmul.f32 %v3869, 0.01
  %v3878 = vmul.f32 %v3870, 0.01
  %v3879 = vmul.f32 %v3871, 0.01
  %v3880 = vsel %vm3872, %v3868, %v3876
  %v3881 = vsel %vm3873, %v3869, %v3877
  %v3882 = vsel %vm3874, %v3870, %v3878
  %v3883 = vsel %vm3875, %v3871, %v3879
  %3884 = vst.msk [vmem:[#allocation4] sm:$0xff] %vm646, %v3880
  %3885 = vst.msk [vmem:[#allocation4 + $0x8] sm:$0xff] %vm646, %v3881
  %3886 = vst.msk [vmem:[#allocation4 + $0x10] sm:$0xff] %vm646, %v3882
  %3887 = vst.msk [vmem:[#allocation4 + $0x18] sm:$0xff] %vm646, %v3883
  %v3888 = vld [vmem:[#allocation4] sm:$0x3]
  %v3889 = vld [vmem:[#allocation4 + $0x2] sm:$0x3]
  %v3890 = vld [vmem:[#allocation4 + $0x4] sm:$0x3]
  %v3891 = vld [vmem:[#allocation4 + $0x8] sm:$0x3]
  %v3892 = vld [vmem:[#allocation4 + $0xa] sm:$0x3]
  %v3893 = vld [vmem:[#allocation4 + $0xc] sm:$0x3]
  %v3894 = vld [vmem:[#allocation4 + $0x10] sm:$0x3]
  %v3895 = vld [vmem:[#allocation4 + $0x12] sm:$0x3]
  %v3896 = vld [vmem:[#allocation4 + $0x14] sm:$0x3]
  %3898 = vrot.lane.b32.xlu0 %v3889, 32
  %v3899 = vpop.permute.xlu0 %3898
  %3902 = vrot.lane.b32.xlu0 %v3890, 64
  %v3903 = vpop.permute.xlu0 %3902
  %3906 = vrot.lane.b32.xlu0 %v3891, 96
  %v3907 = vpop.permute.xlu0 %3906
  %3910 = vrot.lane.b32.xlu0 %v3893, 32
  %v3911 = vpop.permute.xlu0 %3910
  %3914 = vrot.lane.b32.xlu0 %v3894, 64
  %v3915 = vpop.permute.xlu0 %3914
  %3918 = vrot.lane.b32.xlu0 %v3895, 96
  %v3919 = vpop.permute.xlu0 %3918
  %v3921 = vsel %vm646, %v3888, %v3899
  %v3922 = vsel %vm762, %v3921, %v3903
  %v3923 = vsel %vm765, %v3922, %v3907
  %v3924 = vsel %vm646, %v3892, %v3911
  %v3925 = vsel %vm762, %v3924, %v3915
  %v3926 = vsel %vm765, %v3925, %v3919
  %v3927 = vpack.c.bf16 %v3923, %v3923
  %v3928 = vpack.c.bf16 %v3926, %v3926
  %v3929 = vpack.c.bf16 %v3896, %v3896
  %v3930 = vld [vmem:[%s9] sm:$0xf]
  %v3931 = vld [vmem:[%s9 + $0x4] sm:$0xf]
  %v3932 = vld [vmem:[%s9 + $0x8] sm:$0xf]
  %v3933 = vld [vmem:[%s9 + $0xc] sm:$0xf]
  %v3934 = vld [vmem:[%s9 + $0x10] sm:$0xf]
  %v3935 = vld [vmem:[%s9 + $0x14] sm:$0xf]
  %v3936 = vld [vmem:[%s9 + $0x18] sm:$0xf]
  %v3937 = vld [vmem:[%s9 + $0x1c] sm:$0xf]
  %v3938 = vld [vmem:[%s9 + $0x20] sm:$0xf]
  %v3939 = vld [vmem:[%s9 + $0x24] sm:$0xf]
  %v3940 = vld [vmem:[%s9 + $0x28] sm:$0xf]
  %v3941 = vld [vmem:[%s9 + $0x2c] sm:$0xf]
  %v3942 = vld [vmem:[%s9 + $0x30] sm:$0xf]
  %v3943 = vld [vmem:[%s9 + $0x34] sm:$0xf]
  %v3944 = vld [vmem:[%s9 + $0x38] sm:$0xf]
  %v3945 = vld [vmem:[%s9 + $0x3c] sm:$0xf]
  %v3946 = vld [vmem:[%s9 + $0x40] sm:$0xf]
  %v3947 = vld [vmem:[%s9 + $0x44] sm:$0xf]
  %v3948 = vld [vmem:[%s9 + $0x48] sm:$0xf]
  %v3949 = vld [vmem:[%s9 + $0x4c] sm:$0xf]
  %v3950 = vld [vmem:[%s9 + $0x50] sm:$0xf]
  %v3951 = vld [vmem:[%s9 + $0x54] sm:$0xf]
  %v3952 = vld [vmem:[%s9 + $0x58] sm:$0xf]
  %v3953 = vld [vmem:[%s9 + $0x5c] sm:$0xf]
  %v3954 = vld [vmem:[%s9 + $0x60] sm:$0xf]
  %v3955 = vld [vmem:[%s9 + $0x64] sm:$0xf]
  %v3956 = vld [vmem:[%s9 + $0x68] sm:$0xf]
  %v3957 = vld [vmem:[%s9 + $0x6c] sm:$0xf]
  %v3958 = vld [vmem:[%s9 + $0x70] sm:$0xf]
  %v3959 = vld [vmem:[%s9 + $0x74] sm:$0xf]
  %v3960 = vld [vmem:[%s9 + $0x78] sm:$0xf]
  %v3961 = vld [vmem:[%s9 + $0x7c] sm:$0xf]
  %v3962 = vld [vmem:[%s9 + $0x80] sm:$0xf]
  %v3963 = vld [vmem:[%s9 + $0x84] sm:$0xf]
  %v3964 = vld [vmem:[%s9 + $0x88] sm:$0xf]
  %v3965 = vld [vmem:[%s9 + $0x8c] sm:$0xf]
  %v3966 = vld [vmem:[%s10] sm:$0x1]
  %v3968 = vlaneseq
  %v3969 = vshrl.u32 %v3968, 7
  %v3970 = vsub.s32 0, %v3969
  %v3971 = vrot.slane %v3966, %v3970
  %v4009 = vunpack.c.l.b16 %v3930
  %v4010 = vunpack.c.l.b16 %v3931
  %v4011 = vunpack.c.l.b16 %v3932
  %v4012 = vunpack.c.l.b16 %v3933
  %v4013 = vunpack.c.l.b16 %v3934
  %v4014 = vunpack.c.l.b16 %v3935
  %v4015 = vunpack.c.l.b16 %v3936
  %v4016 = vunpack.c.l.b16 %v3937
  %v4017 = vunpack.c.l.b16 %v3938
  %v4018 = vunpack.c.l.b16 %v3939
  %v4019 = vunpack.c.l.b16 %v3940
  %v4020 = vunpack.c.l.b16 %v3941
  %v4021 = vunpack.c.l.b16 %v3942
  %v4022 = vunpack.c.l.b16 %v3943
  %v4023 = vunpack.c.l.b16 %v3944
  %v4024 = vunpack.c.l.b16 %v3945
  %v4025 = vunpack.c.l.b16 %v3946
  %v4026 = vunpack.c.l.b16 %v3947
  %v4027 = vunpack.c.l.b16 %v3948
  %v4028 = vunpack.c.l.b16 %v3949
  %v4029 = vunpack.c.l.b16 %v3950
  %v4030 = vunpack.c.l.b16 %v3951
  %v4031 = vunpack.c.l.b16 %v3952
  %v4032 = vunpack.c.l.b16 %v3953
  %v4033 = vunpack.c.l.b16 %v3954
  %v4034 = vunpack.c.l.b16 %v3955
  %v4035 = vunpack.c.l.b16 %v3956
  %v4036 = vunpack.c.l.b16 %v3957
  %v4037 = vunpack.c.l.b16 %v3958
  %v4038 = vunpack.c.l.b16 %v3959
  %v4039 = vunpack.c.l.b16 %v3960
  %v4040 = vunpack.c.l.b16 %v3961
  %v4041 = vunpack.c.l.b16 %v3962
  %v4042 = vunpack.c.l.b16 %v3963
  %v4043 = vunpack.c.l.b16 %v3964
  %v4044 = vunpack.c.l.b16 %v3965
  %v4045 = vpack.c.b16 %v4010, %v4009
  %v4046 = vpack.c.b16 %v4012, %v4011
  %v4047 = vpack.c.b16 %v4014, %v4013
  %v4048 = vpack.c.b16 %v4016, %v4015
  %v4049 = vpack.c.b16 %v4018, %v4017
  %v4050 = vpack.c.b16 %v4020, %v4019
  %v4051 = vpack.c.b16 %v4022, %v4021
  %v4052 = vpack.c.b16 %v4024, %v4023
  %v4053 = vpack.c.b16 %v4026, %v4025
  %v4054 = vpack.c.b16 %v4028, %v4027
  %v4055 = vpack.c.b16 %v4030, %v4029
  %v4056 = vpack.c.b16 %v4032, %v4031
  %v4057 = vpack.c.b16 %v4034, %v4033
  %v4058 = vpack.c.b16 %v4036, %v4035
  %v4059 = vpack.c.b16 %v4038, %v4037
  %v4060 = vpack.c.b16 %v4040, %v4039
  %v4061 = vpack.c.b16 %v4042, %v4041
  %v4062 = vpack.c.b16 %v4044, %v4043
  %v4082 = vsel %vm646, %v3929, 0
  %4084 = vmatprep.subr.bf16.mxu0 0
  %4085 = vmatpush1.bf16.msra.mxu0 %v4045
  %4086 = vmatprep.subr.bf16.mxu0 0
  %4087 = vmatpush1.bf16.msra.mxu0 %v4046
  %4088 = vmatprep.subr.bf16.mxu0 0
  %4089 = vmatpush1.bf16.msra.mxu0 %v4047
  %4090 = vmatprep.subr.bf16.mxu0 0
  %4091 = vmatpush1.bf16.msra.mxu0 %v4048
  %4092 = vmatprep.subr.bf16.mxu0 0
  %4093 = vmatpush1.bf16.msra.mxu0 %v4049
  %4094 = vmatprep.subr.bf16.mxu0 0
  %4095 = vmatpush1.bf16.msra.mxu0 %v4050
  %4096 = vmatprep.subr.bf16.mxu0 0
  %4097 = vmatpush1.bf16.msra.mxu0 %v4051
  %4098 = vmatprep.subr.bf16.mxu0 0
  %4099 = vmatpush1.bf16.msra.mxu0 %v4052
  %4100 = vmatprep.subr.bf16.mxu0 0
  %4101 = vmatpush1.bf16.msra.mxu0 %v4053
  %4102 = vmatprep.subr.bf16.mxu0 0
  %4103 = vmatpush1.bf16.msra.mxu0 %v4054
  %4104 = vmatprep.subr.bf16.mxu0 0
  %4105 = vmatpush1.bf16.msra.mxu0 %v4055
  %4106 = vmatprep.subr.bf16.mxu0 0
  %4107 = vmatpush1.bf16.msra.mxu0 %v4056
  %4108 = vmatprep.subr.bf16.mxu0 0
  %4109 = vmatpush1.bf16.msra.mxu0 %v4057
  %4110 = vmatprep.subr.bf16.mxu0 0
  %4111 = vmatpush1.bf16.msra.mxu0 %v4058
  %4112 = vmatprep.subr.bf16.mxu0 0
  %4113 = vmatpush1.bf16.msra.mxu0 %v4059
  %4114 = vmatprep.subr.bf16.mxu0 0
  %4115 = vmatpush1.bf16.msra.mxu0 %v4060
  %4116 = vmatprep.mubr.bf16.mxu0 %v3928
  %4117 = vmatmul.mubr.bf16.gmra.mrb[0].mxu0 %v3927
  %v4118 = vpop.f32.mrb[0].mxu0
  %v4119 = vadd.f32 %v3971, %v4118
  %v4120 = vpop.f32.mrb[0].mxu0
  %v4121 = vpop.f32.mrb[0].mxu0
  %v4122 = vpop.f32.mrb[0].mxu0
  %4123 = vdwg.mxu0
  %4124 = vmatprep.subr.bf16.mxu0 0
  %4125 = vmatpush1.bf16.msra.mxu0 %v4061
  %4126 = vmatprep.subr.bf16.mxu0 0
  %4127 = vmatpush1.bf16.msra.mxu0 %v4062
  %4128 = vmatprep.subr.bf16.mxu0 0
  %4129 = vmatpush1.bf16.msra.mxu0 0
  %4130 = vmatprep.subr.bf16.mxu0 0
  %4131 = vmatpush1.bf16.msra.mxu0 0
  %4132 = vmatprep.subr.bf16.mxu0 0
  %4133 = vmatpush1.bf16.msra.mxu0 0
  %4134 = vmatprep.subr.bf16.mxu0 0
  %4135 = vmatpush1.bf16.msra.mxu0 0
  %4136 = vmatprep.subr.bf16.mxu0 0
  %4137 = vmatpush1.bf16.msra.mxu0 0
  %4138 = vmatprep.subr.bf16.mxu0 0
  %4139 = vmatpush1.bf16.msra.mxu0 0
  %4140 = vmatprep.subr.bf16.mxu0 0
  %4141 = vmatpush1.bf16.msra.mxu0 0
  %4142 = vmatprep.subr.bf16.mxu0 0
  %4143 = vmatpush1.bf16.msra.mxu0 0
  %4144 = vmatprep.subr.bf16.mxu0 0
  %4145 = vmatpush1.bf16.msra.mxu0 0
  %4146 = vmatprep.subr.bf16.mxu0 0
  %4147 = vmatpush1.bf16.msra.mxu0 0
  %4148 = vmatprep.subr.bf16.mxu0 0
  %4149 = vmatpush1.bf16.msra.mxu0 0
  %4150 = vmatprep.subr.bf16.mxu0 0
  %4151 = vmatpush1.bf16.msra.mxu0 0
  %4152 = vmatprep.subr.bf16.mxu0 0
  %4153 = vmatpush1.bf16.msra.mxu0 0
  %4154 = vmatprep.subr.bf16.mxu0 0
  %4155 = vmatpush1.bf16.msra.mxu0 0
  %4156 = vmatprep.mubr.bf16.mxu0 0
  %4157 = vmatmul.mubr.bf16.gmra.mrb[0].mxu0 %v4082
  %v4158 = vpop.f32.mrb[0].mxu0
  %v4159 = vadd.f32 %v4119, %v4158
  %v4160 = vpop.f32.mrb[0].mxu0
  %v4161 = vpop.f32.mrb[0].mxu0
  %v4162 = vpop.f32.mrb[0].mxu0
  %4163 = vdwg.mxu0
  %v4164 = vxor.u32 %v4159, 2147483648
  %v4165 = vmul.f32 %v4164, 1.442695
  %v4166 = vpow.pop %v4165
  %v4167 = vadd.f32 %v4166, 1.0
  %v4168 = vrcp.pop %v4167
  %v4169 = vmul.f32 1.0, %v4168
  %4170 = vst [vmem:[%s11] sm:$0x3] %v4169
  // Predicated region
  $region46: #{discriminator_forward.1} parent=0 // pred_check
    _
  $region47: #{discriminator_forward.1} parent=0 // pred_check_branch
    %4172 = sbr.rel (0) target = $region49
  $region48: #{discriminator_forward.1} parent=0 // pred_region
    _
  $region49: #{discriminator_forward.1} parent=0 // pred_fallthru
    _
  // Predicated region
  $region50: #{discriminator_forward.1} parent=0 // pred_check
    _
  $region51: #{discriminator_forward.1} parent=0 // pred_check_branch
    %4174 = sbr.rel (0) target = $region53
  $region52: #{discriminator_forward.1} parent=0 // pred_region
    _
  $region53: #{discriminator_forward.1} parent=0 // pred_fallthru
    _

</llo_original>
